<compile_context>
chip_gen: v7x
topology: tpu7x:2x2x1
jax: 0.10.0
libtpu: 0.0.40
codegen_flags: <defaults>
</compile_context>

<pallas_src>
import functools

import jax
import jax.numpy as jnp
from jax import lax
from jax.experimental import pallas as pl
from jax.experimental.pallas import tpu as pltpu


def _round_up(x, m):
    return -(-x // m) * m


# ----------------------------------------------------------------------------
# GRU kernel (single direction, masked "packed" semantics), time-chunked grid.
# When fuse_linear=True (reverse direction) the concat Linear is applied to
# (out_f_chunk, out_b_chunk) in the chunk epilogue and y is written directly.
# ----------------------------------------------------------------------------
def _gru_kernel(x_ref, len_ref, wih_ref, whh_ref, bih_ref, bhh_ref, *rest,
                reverse, fuse_linear):
    # x_ref:   [T_TILE, B_TILE, H]  bf16  embedded inputs (time-major chunk)
    # len_ref: [B_TILE, 1]          i32   valid lengths
    # wih_ref: [H, 3H]              bf16  input weights  (gate cols r|z|n)
    # whh_ref: [H, 3H]              bf16  hidden weights (gate cols r|z|n)
    # bih_ref: [1, 3H]              f32   b_ih
    # bhh_ref: [1, 3H]              f32   b_hh
    if fuse_linear:
        (of_ref, wcf_ref, wcb_ref, bc_ref,
         out_ref, hN_ref, h_scr, gi_scr, ob_scr) = rest
    else:
        out_ref, hN_ref, h_scr, gi_scr = rest
        ob_scr = None

    c = pl.program_id(1)
    n_chunks = pl.num_programs(1)
    T_TILE, B_TILE, H = x_ref.shape
    H3 = 3 * H

    @pl.when(c == 0)
    def _():
        h_scr[...] = jnp.zeros_like(h_scr)          # hidden=None -> zeros

    # ---- hoisted input projection: one [T*B, H] x [H, 3H] matmul per chunk -
    x2 = x_ref[...].reshape(T_TILE * B_TILE, H)
    gi = jnp.dot(x2, wih_ref[...], preferred_element_type=jnp.float32)
    gi_scr[...] = (gi + bih_ref[...]).reshape(T_TILE, B_TILE, H3)

    lengths = len_ref[...]                          # [B_TILE, 1] int32
    bhh = bhh_ref[...]                              # [1, 3H]     f32
    if reverse:
        chunk_base = (n_chunks - 1 - c) * T_TILE
    else:
        chunk_base = c * T_TILE

    # ---- serial recurrence: ONE fused [B,H] x [H,3H] matmul per step -------
    def step(i, carry):
        tt = (T_TILE - 1 - i) if reverse else i
        t = chunk_base + tt
        h = h_scr[...]                                            # [B, H] f32
        gh = jnp.dot(h.astype(jnp.bfloat16), whh_ref[...],
                     preferred_element_type=jnp.float32) + bhh    # [B, 3H]
        gi_t = gi_scr[tt]                                         # [B, 3H]
        r = jax.nn.sigmoid(gi_t[:, 0:H] + gh[:, 0:H])
        z = jax.nn.sigmoid(gi_t[:, H:2 * H] + gh[:, H:2 * H])
        n = jnp.tanh(gi_t[:, 2 * H:H3] + r * gh[:, 2 * H:H3])
        h_new = (1.0 - z) * n + z * h

        valid = lengths > t                                       # [B, 1] bool
        h_scr[...] = jnp.where(valid, h_new, h)                   # freeze past len
        o = jnp.where(valid, h_new, 0.0)                          # zero past len
        if fuse_linear:
            ob_scr[tt] = o.astype(ob_scr.dtype)
        else:
            out_ref[tt] = o.astype(out_ref.dtype)
        return carry

    unroll = T_TILE if T_TILE <= 16 else 8
    lax.fori_loop(0, T_TILE, step, 0, unroll=unroll)

    # running final hidden; value after the last time chunk lands in HBM
    hN_ref[...] = h_scr[...]

    # ---- fused concat Linear epilogue (reverse direction only) -------------
    if fuse_linear:
        of2 = of_ref[...].reshape(T_TILE * B_TILE, H)
        ob2 = ob_scr[...].reshape(T_TILE * B_TILE, H)
        y = (jnp.dot(of2, wcf_ref[...], preferred_element_type=jnp.float32)
             + jnp.dot(ob2, wcb_ref[...], preferred_element_type=jnp.float32)
             + bc_ref[...])
        out_ref[...] = y.reshape(T_TILE, B_TILE, H).astype(out_ref.dtype)


def _run_gru(x_tm, len2, wih, whh, bih, bhh, *, t_tile, b_tile, reverse,
             fused_linear=None):
    T_pad, B_pad, H = x_tm.shape
    n_chunks = T_pad // t_tile
    n_b = B_pad // b_tile

    if reverse:
        def tmap(b, c):
            return (n_chunks - 1 - c, b, 0)
    else:
        def tmap(b, c):
            return (c, b, 0)

    w_spec = pl.BlockSpec((H, 3 * H), lambda b, c: (0, 0))
    bias_spec = pl.BlockSpec((1, 3 * H), lambda b, c: (0, 0))
    in_specs = [
        pl.BlockSpec((t_tile, b_tile, H), tmap),          # x chunk
        pl.BlockSpec((b_tile, 1), lambda b, c: (b, 0)),   # lengths
        w_spec, w_spec, bias_spec, bias_spec,
    ]
    operands = [x_tm, len2, wih, whh, bih, bhh]
    scratch = [
        pltpu.VMEM((b_tile, H), jnp.float32),             # hidden carry
        pltpu.VMEM((t_tile, b_tile, 3 * H), jnp.float32),  # hoisted gi chunk
    ]

    fuse = fused_linear is not None
    if fuse:
        out_f, wcf, wcb, bc = fused_linear
        in_specs += [
            pl.BlockSpec((t_tile, b_tile, H), tmap),       # out_f chunk
            pl.BlockSpec((H, H), lambda b, c: (0, 0)),     # wc_f
            pl.BlockSpec((H, H), lambda b, c: (0, 0)),     # wc_b
            pl.BlockSpec((1, H), lambda b, c: (0, 0)),     # bc
        ]
        operands += [out_f, wcf, wcb, bc]
        scratch += [pltpu.VMEM((t_tile, b_tile, H), jnp.bfloat16)]  # out_b chunk
        out_dtype = jnp.float32       # final encoder output
    else:
        out_dtype = jnp.bfloat16      # intermediate forward outputs

    kernel = functools.partial(_gru_kernel, reverse=reverse, fuse_linear=fuse)
    out_tm, h_n = pl.pallas_call(
        kernel,
        out_shape=(jax.ShapeDtypeStruct((T_pad, B_pad, H), out_dtype),
                   jax.ShapeDtypeStruct((B_pad, H), jnp.float32)),
        grid=(n_b, n_chunks),
        in_specs=in_specs,
        out_specs=(pl.BlockSpec((t_tile, b_tile, H), tmap),
                   pl.BlockSpec((b_tile, H), lambda b, c: (b, 0))),
        scratch_shapes=scratch,
        compiler_params=pltpu.CompilerParams(
            dimension_semantics=("parallel", "arbitrary"),
            # explicit budget (v7x has 64 MiB physical / 32 MiB scoped default;
            # for large H reduce t_tile so gi/out blocks fit with headroom)
            vmem_limit_bytes=64 * 1024 * 1024),
    )(*operands)
    return out_tm, h_n


# ----------------------------------------------------------------------------
# Encoder forward (glue in JAX, hot loops in Pallas)
# ----------------------------------------------------------------------------
def encoder_forward(params, seq_in, lengths, *, t_tile=32):
    """seq_in: [B, T] int32 token ids; lengths: [B] int32 (sorted descending)."""
    B, T = seq_in.shape
    H = params["embedding"].shape[1]

    tt = max(1, min(t_tile, T))
    T_pad = _round_up(T, tt)
    b_tile = min(128, _round_up(B, 8))
    B_pad = _round_up(B, b_tile)

    seq_p = jnp.pad(seq_in.astype(jnp.int32), ((0, B_pad - B), (0, T_pad - T)))
    len_p = jnp.pad(lengths.astype(jnp.int32), (0, B_pad - B)).reshape(B_pad, 1)

    # TODO(synk): the nn.Embedding vocab gather stays in XLA (data-dependent
    # gather over the table); fusing it via scalar-prefetched ids + per-row DMA
    # would save one HBM pass of x.
    x_tm = jnp.take(params["embedding"], seq_p.T, axis=0).astype(jnp.bfloat16)

    # forward direction: produces bf16 out_f and final hidden h_f
    out_f_tm, h_f = _run_gru(
        x_tm, len_p, params["wih_f"], params["whh_f"],
        params["bih_f"], params["bhh_f"],
        t_tile=tt, b_tile=b_tile, reverse=False)

    # backward direction with the concat Linear fused into its epilogue:
    # y = out_f @ Wf + out_b @ Wb + b  (out_b never hits HBM)
    y_tm, h_b = _run_gru(
        x_tm, len_p, params["wih_b"], params["whh_b"],
        params["bih_b"], params["bhh_b"],
        t_tile=tt, b_tile=b_tile, reverse=True,
        fused_linear=(out_f_tm, params["wc_f"], params["wc_b"], params["bc"]))

    # TODO(synk): final [T,B,H]->[B,T,H] transpose left to XLA; an in-kernel
    # batch-major y write would save one more HBM round trip.
    outputs = jnp.transpose(y_tm, (1, 0, 2))[:B, :T, :]          # [B, T, H]
    hidden = jnp.stack([h_f[:B], h_b[:B]], axis=0)               # [2, B, H]
    return outputs, hidden


# ----------------------------------------------------------------------------
# Deterministic parameter init (PyTorch-style uniform(-1/sqrt(H), 1/sqrt(H)))
# converted to kernel-friendly concatenated-gate [H, 3H] bf16 layout.
# ----------------------------------------------------------------------------
def init_params(key, vocab_size, hidden_size):
    H = hidden_size
    k = 1.0 / jnp.sqrt(jnp.float32(H))
    keys = jax.random.split(key, 11)

    def unif(kk, shape, bound):
        return jax.random.uniform(kk, shape, jnp.float32, -bound, bound)

    params = {"embedding": jax.random.normal(keys[0], (vocab_size, H), jnp.float32)}

    def gru_dir(k_wih, k_whh, k_bih, k_bhh):
        w_ih = unif(k_wih, (3 * H, H), k)     # PyTorch layout, rows (r, z, n)
        w_hh = unif(k_whh, (3 * H, H), k)
        b_ih = unif(k_bih, (3 * H,), k)
        b_hh = unif(k_bhh, (3 * H,), k)
        wih_cat = w_ih.T.astype(jnp.bfloat16)           # [H, 3H]
        whh_cat = w_hh.T.astype(jnp.bfloat16)           # [H, 3H]
        return (wih_cat, whh_cat,
                b_ih.reshape(1, 3 * H), b_hh.reshape(1, 3 * H))

    (params["wih_f"], params["whh_f"],
     params["bih_f"], params["bhh_f"]) = gru_dir(keys[1], keys[2], keys[3], keys[4])
    (params["wih_b"], params["whh_b"],
     params["bih_b"], params["bhh_b"]) = gru_dir(keys[5], keys[6], keys[7], keys[8])

    # concat Linear: PyTorch weight [H, 2H]; split into forward/backward halves.
    kc = 1.0 / jnp.sqrt(jnp.float32(2 * H))
    wc = unif(keys[9], (H, 2 * H), kc)
    params["wc_f"] = wc[:, :H].T.astype(jnp.bfloat16)   # [H, H]
    params["wc_b"] = wc[:, H:].T.astype(jnp.bfloat16)   # [H, H]
    params["bc"] = unif(keys[10], (H,), kc).reshape(1, H)
    return params


if __name__ == "__main__":
    B, T, H, V = 2, 8, 32, 20

    key = jax.random.PRNGKey(0)
    pkey, skey = jax.random.split(key)
    params = init_params(pkey, V, H)

    seq_in = jax.random.randint(skey, (B, T), 0, V, dtype=jnp.int32)
    # pack_padded_sequence requires lengths sorted in decreasing order.
    lengths = jnp.array([T, 5], dtype=jnp.int32)
    # zero out tokens past each sequence's length (padding), like real data
    pad_mask = jnp.arange(T)[None, :] < lengths[:, None]
    seq_in = jnp.where(pad_mask, seq_in, 0)

    fwd = jax.jit(functools.partial(encoder_forward, params))
    outputs, hidden = fwd(seq_in, lengths)
    jax.block_until_ready((outputs, hidden))

    assert outputs.shape == (B, T, H)
    assert hidden.shape == (2, B, H)
    assert bool(jnp.all(jnp.isfinite(outputs))) and bool(jnp.all(jnp.isfinite(hidden)))
    print("KERNEL_OK")
</pallas_src>

<mosaic_0001>
module attributes {stable_mosaic.version = 11 : i64} {
  func.func @_gru_kernel(%arg0: i32, %arg1: i32, %arg2: memref<8x8x32xbf16, #tpu.memory_space<vmem>>, %arg3: memref<8x1xi32, #tpu.memory_space<vmem>>, %arg4: memref<32x96xbf16, #tpu.memory_space<vmem>>, %arg5: memref<32x96xbf16, #tpu.memory_space<vmem>>, %arg6: memref<1x96xf32, #tpu.memory_space<vmem>>, %arg7: memref<1x96xf32, #tpu.memory_space<vmem>>, %arg8: memref<8x8x32xbf16, #tpu.memory_space<vmem>>, %arg9: memref<8x32xf32, #tpu.memory_space<vmem>>, %arg10: memref<8x32xf32, #tpu.memory_space<vmem>>, %arg11: memref<8x8x96xf32, #tpu.memory_space<vmem>>) attributes {dimension_semantics = [#tpu.dimension_semantics<parallel>, #tpu.dimension_semantics<arbitrary>], iteration_bounds = array<i64: 1, 1>, scalar_prefetch = 0 : i64, scratch_operands = 2 : i64, tpu.core_type = #tpu.core_type<tc>, window_params = [{transform_indices = @transform_0, window_bounds = array<i64: 8, 8, 32>}, {transform_indices = @transform_1, window_bounds = array<i64: 8, 1>}, {pipeline_mode = #tpu.pipeline_mode<synchronous>, transform_indices = @transform_2, window_bounds = array<i64: 32, 96>}, {pipeline_mode = #tpu.pipeline_mode<synchronous>, transform_indices = @transform_3, window_bounds = array<i64: 32, 96>}, {pipeline_mode = #tpu.pipeline_mode<synchronous>, transform_indices = @transform_4, window_bounds = array<i64: 1, 96>}, {pipeline_mode = #tpu.pipeline_mode<synchronous>, transform_indices = @transform_5, window_bounds = array<i64: 1, 96>}, {transform_indices = @transform_6, window_bounds = array<i64: 8, 8, 32>}, {transform_indices = @transform_7, window_bounds = array<i64: 8, 32>}]} {
    %c0_i32 = arith.constant 0 : i32
    %0 = arith.cmpi eq, %arg1, %c0_i32 : i32
    %1 = arith.extui %0 : i1 to i32
    %c0_i32_0 = arith.constant 0 : i32
    %2 = arith.cmpi ne, %1, %c0_i32_0 : i32
    scf.if %2 {
      %cst_140 = arith.constant 0.000000e+00 : f32
      %425 = vector.broadcast %cst_140 : f32 to vector<8x32xf32>
      %c0_141 = arith.constant 0 : index
      %c0_142 = arith.constant 0 : index
      %426 = vector.load %arg10[%c0_141, %c0_142] : memref<8x32xf32, #tpu.memory_space<vmem>>, vector<8x32xf32>
      tpu.vector_store %arg10[%c0_141, %c0_142], %425 {strides = array<i32>} : memref<8x32xf32, #tpu.memory_space<vmem>>, vector<8x32xf32>,
    } else {
    }
    %c0 = arith.constant 0 : index
    %c0_1 = arith.constant 0 : index
    %c0_2 = arith.constant 0 : index
    %3 = vector.load %arg2[%c0, %c0_1, %c0_2] : memref<8x8x32xbf16, #tpu.memory_space<vmem>>, vector<8x8x32xbf16>
    %4 = vector.shape_cast %3 : vector<8x8x32xbf16> to vector<64x32xbf16>
    %c0_3 = arith.constant 0 : index
    %c0_4 = arith.constant 0 : index
    %5 = vector.load %arg4[%c0_3, %c0_4] : memref<32x96xbf16, #tpu.memory_space<vmem>>, vector<32x96xbf16>
    %cst = arith.constant dense<0.000000e+00> : vector<64x96xf32>
    %6 = tpu.matmul %4, %5, %cst {dimension_numbers = #tpu.dot_dimension_numbers<[1], [0], [0], [1], [0, 0, 1, 1], [], []>} : vector<64x32xbf16>, vector<32x96xbf16>, vector<64x96xf32> -> vector<64x96xf32>
    %c0_5 = arith.constant 0 : index
    %c0_6 = arith.constant 0 : index
    %7 = vector.load %arg6[%c0_5, %c0_6] : memref<1x96xf32, #tpu.memory_space<vmem>>, vector<1x96xf32>
    %8 = vector.broadcast %7 : vector<1x96xf32> to vector<64x96xf32>
    %9 = arith.addf %6, %8 : vector<64x96xf32>
    %10 = vector.shape_cast %9 : vector<64x96xf32> to vector<8x8x96xf32>
    %c0_7 = arith.constant 0 : index
    %c0_8 = arith.constant 0 : index
    %c0_9 = arith.constant 0 : index
    %11 = vector.load %arg11[%c0_7, %c0_8, %c0_9] : memref<8x8x96xf32, #tpu.memory_space<vmem>>, vector<8x8x96xf32>
    tpu.vector_store %arg11[%c0_7, %c0_8, %c0_9], %10 {strides = array<i32>} : memref<8x8x96xf32, #tpu.memory_space<vmem>>, vector<8x8x96xf32>,
    %c0_10 = arith.constant 0 : index
    %c0_11 = arith.constant 0 : index
    %12 = vector.load %arg3[%c0_10, %c0_11] : memref<8x1xi32, #tpu.memory_space<vmem>>, vector<8x1xi32>
    %c0_12 = arith.constant 0 : index
    %c0_13 = arith.constant 0 : index
    %13 = vector.load %arg7[%c0_12, %c0_13] : memref<1x96xf32, #tpu.memory_space<vmem>>, vector<1x96xf32>
    %c8_i32 = arith.constant 8 : i32
    %14 = arith.muli %arg1, %c8_i32 : i32
    %c0_i32_14 = arith.constant 0 : i32
    %15 = arith.addi %14, %c0_i32_14 : i32
    %c0_15 = arith.constant 0 : index
    %c0_16 = arith.constant 0 : index
    %16 = vector.load %arg10[%c0_15, %c0_16] : memref<8x32xf32, #tpu.memory_space<vmem>>, vector<8x32xf32>
    %17 = arith.truncf %16 : vector<8x32xf32> to vector<8x32xbf16>
    %c0_17 = arith.constant 0 : index
    %c0_18 = arith.constant 0 : index
    %18 = vector.load %arg5[%c0_17, %c0_18] : memref<32x96xbf16, #tpu.memory_space<vmem>>, vector<32x96xbf16>
    %cst_19 = arith.constant dense<0.000000e+00> : vector<8x96xf32>
    %19 = tpu.matmul %17, %18, %cst_19 {dimension_numbers = #tpu.dot_dimension_numbers<[1], [0], [0], [1], [0, 0, 1, 1], [], []>} : vector<8x32xbf16>, vector<32x96xbf16>, vector<8x96xf32> -> vector<8x96xf32>
    %20 = vector.broadcast %13 : vector<1x96xf32> to vector<8x96xf32>
    %21 = arith.addf %19, %20 : vector<8x96xf32>
    %22 = arith.index_cast %c0_i32_14 : i32 to index
    %c0_20 = arith.constant 0 : index
    %c0_21 = arith.constant 0 : index
    %23 = vector.load %arg11[%22, %c0_20, %c0_21] : memref<8x8x96xf32, #tpu.memory_space<vmem>>, vector<1x8x96xf32>
    %24 = vector.shape_cast %23 : vector<1x8x96xf32> to vector<8x96xf32>
    %25 = vector.extract_strided_slice %24 {offsets = [0, 0], sizes = [8, 32], strides = [1, 1]} : vector<8x96xf32> to vector<8x32xf32>
    %26 = vector.extract_strided_slice %21 {offsets = [0, 0], sizes = [8, 32], strides = [1, 1]} : vector<8x96xf32> to vector<8x32xf32>
    %27 = arith.addf %25, %26 : vector<8x32xf32>
    %28 = arith.negf %27 : vector<8x32xf32>
    %29 = math.exp %28 : vector<8x32xf32>
    %cst_22 = arith.constant 1.000000e+00 : f32
    %30 = vector.broadcast %cst_22 : f32 to vector<8x32xf32>
    %31 = arith.addf %30, %29 : vector<8x32xf32>
    %32 = arith.divf %30, %31 : vector<8x32xf32>
    %33 = vector.extract_strided_slice %24 {offsets = [0, 32], sizes = [8, 32], strides = [1, 1]} : vector<8x96xf32> to vector<8x32xf32>
    %34 = vector.extract_strided_slice %21 {offsets = [0, 32], sizes = [8, 32], strides = [1, 1]} : vector<8x96xf32> to vector<8x32xf32>
    %35 = arith.addf %33, %34 : vector<8x32xf32>
    %36 = arith.negf %35 : vector<8x32xf32>
    %37 = math.exp %36 : vector<8x32xf32>
    %cst_23 = arith.constant 1.000000e+00 : f32
    %38 = vector.broadcast %cst_23 : f32 to vector<8x32xf32>
    %39 = arith.addf %38, %37 : vector<8x32xf32>
    %40 = arith.divf %38, %39 : vector<8x32xf32>
    %41 = vector.extract_strided_slice %24 {offsets = [0, 64], sizes = [8, 32], strides = [1, 1]} : vector<8x96xf32> to vector<8x32xf32>
    %42 = vector.extract_strided_slice %21 {offsets = [0, 64], sizes = [8, 32], strides = [1, 1]} : vector<8x96xf32> to vector<8x32xf32>
    %43 = arith.mulf %32, %42 : vector<8x32xf32>
    %44 = arith.addf %41, %43 : vector<8x32xf32>
    %45 = math.tanh %44 : vector<8x32xf32>
    %cst_24 = arith.constant 1.000000e+00 : f32
    %46 = vector.broadcast %cst_24 : f32 to vector<8x32xf32>
    %47 = arith.subf %46, %40 : vector<8x32xf32>
    %48 = arith.mulf %47, %45 : vector<8x32xf32>
    %49 = arith.mulf %40, %16 : vector<8x32xf32>
    %50 = arith.addf %48, %49 : vector<8x32xf32>
    %51 = vector.broadcast %15 : i32 to vector<8x1xi32>
    %52 = arith.cmpi sgt, %12, %51 : vector<8x1xi32>
    %53 = vector.shape_cast %52 : vector<8x1xi1> to vector<8x1xi1>
    %54 = vector.broadcast %53 : vector<8x1xi1> to vector<8x32xi1>
    %55 = arith.select %54, %50, %16 : vector<8x32xi1>, vector<8x32xf32>
    %c0_25 = arith.constant 0 : index
    %c0_26 = arith.constant 0 : index
    %56 = vector.load %arg10[%c0_25, %c0_26] : memref<8x32xf32, #tpu.memory_space<vmem>>, vector<8x32xf32>
    tpu.vector_store %arg10[%c0_25, %c0_26], %55 {strides = array<i32>} : memref<8x32xf32, #tpu.memory_space<vmem>>, vector<8x32xf32>,
    %cst_27 = arith.constant 0.000000e+00 : f32
    %57 = vector.shape_cast %52 : vector<8x1xi1> to vector<8x1xi1>
    %58 = vector.broadcast %57 : vector<8x1xi1> to vector<8x32xi1>
    %59 = vector.broadcast %cst_27 : f32 to vector<8x32xf32>
    %60 = arith.select %58, %50, %59 : vector<8x32xi1>, vector<8x32xf32>
    %61 = arith.truncf %60 : vector<8x32xf32> to vector<8x32xbf16>
    %62 = arith.index_cast %c0_i32_14 : i32 to index
    %c0_28 = arith.constant 0 : index
    %c0_29 = arith.constant 0 : index
    %63 = vector.load %arg8[%62, %c0_28, %c0_29] : memref<8x8x32xbf16, #tpu.memory_space<vmem>>, vector<1x8x32xbf16>
    %64 = vector.shape_cast %63 : vector<1x8x32xbf16> to vector<8x32xbf16>
    %65 = vector.shape_cast %61 : vector<8x32xbf16> to vector<1x8x32xbf16>
    tpu.vector_store %arg8[%62, %c0_28, %c0_29], %65 {strides = array<i32>} : memref<8x8x32xbf16, #tpu.memory_space<vmem>>, vector<1x8x32xbf16>,
    %c1_i32 = arith.constant 1 : i32
    %66 = arith.addi %14, %c1_i32 : i32
    %c0_30 = arith.constant 0 : index
    %c0_31 = arith.constant 0 : index
    %67 = vector.load %arg10[%c0_30, %c0_31] : memref<8x32xf32, #tpu.memory_space<vmem>>, vector<8x32xf32>
    %68 = arith.truncf %67 : vector<8x32xf32> to vector<8x32xbf16>
    %c0_32 = arith.constant 0 : index
    %c0_33 = arith.constant 0 : index
    %69 = vector.load %arg5[%c0_32, %c0_33] : memref<32x96xbf16, #tpu.memory_space<vmem>>, vector<32x96xbf16>
    %cst_34 = arith.constant dense<0.000000e+00> : vector<8x96xf32>
    %70 = tpu.matmul %68, %69, %cst_34 {dimension_numbers = #tpu.dot_dimension_numbers<[1], [0], [0], [1], [0, 0, 1, 1], [], []>} : vector<8x32xbf16>, vector<32x96xbf16>, vector<8x96xf32> -> vector<8x96xf32>
    %71 = vector.broadcast %13 : vector<1x96xf32> to vector<8x96xf32>
    %72 = arith.addf %70, %71 : vector<8x96xf32>
    %73 = arith.index_cast %c1_i32 : i32 to index
    %c0_35 = arith.constant 0 : index
    %c0_36 = arith.constant 0 : index
    %74 = vector.load %arg11[%73, %c0_35, %c0_36] : memref<8x8x96xf32, #tpu.memory_space<vmem>>, vector<1x8x96xf32>
    %75 = vector.shape_cast %74 : vector<1x8x96xf32> to vector<8x96xf32>
    %76 = vector.extract_strided_slice %75 {offsets = [0, 0], sizes = [8, 32], strides = [1, 1]} : vector<8x96xf32> to vector<8x32xf32>
    %77 = vector.extract_strided_slice %72 {offsets = [0, 0], sizes = [8, 32], strides = [1, 1]} : vector<8x96xf32> to vector<8x32xf32>
    %78 = arith.addf %76, %77 : vector<8x32xf32>
    %79 = arith.negf %78 : vector<8x32xf32>
    %80 = math.exp %79 : vector<8x32xf32>
    %cst_37 = arith.constant 1.000000e+00 : f32
    %81 = vector.broadcast %cst_37 : f32 to vector<8x32xf32>
    %82 = arith.addf %81, %80 : vector<8x32xf32>
    %83 = arith.divf %81, %82 : vector<8x32xf32>
    %84 = vector.extract_strided_slice %75 {offsets = [0, 32], sizes = [8, 32], strides = [1, 1]} : vector<8x96xf32> to vector<8x32xf32>
    %85 = vector.extract_strided_slice %72 {offsets = [0, 32], sizes = [8, 32], strides = [1, 1]} : vector<8x96xf32> to vector<8x32xf32>
    %86 = arith.addf %84, %85 : vector<8x32xf32>
    %87 = arith.negf %86 : vector<8x32xf32>
    %88 = math.exp %87 : vector<8x32xf32>
    %cst_38 = arith.constant 1.000000e+00 : f32
    %89 = vector.broadcast %cst_38 : f32 to vector<8x32xf32>
    %90 = arith.addf %89, %88 : vector<8x32xf32>
    %91 = arith.divf %89, %90 : vector<8x32xf32>
    %92 = vector.extract_strided_slice %75 {offsets = [0, 64], sizes = [8, 32], strides = [1, 1]} : vector<8x96xf32> to vector<8x32xf32>
    %93 = vector.extract_strided_slice %72 {offsets = [0, 64], sizes = [8, 32], strides = [1, 1]} : vector<8x96xf32> to vector<8x32xf32>
    %94 = arith.mulf %83, %93 : vector<8x32xf32>
    %95 = arith.addf %92, %94 : vector<8x32xf32>
    %96 = math.tanh %95 : vector<8x32xf32>
    %cst_39 = arith.constant 1.000000e+00 : f32
    %97 = vector.broadcast %cst_39 : f32 to vector<8x32xf32>
    %98 = arith.subf %97, %91 : vector<8x32xf32>
    %99 = arith.mulf %98, %96 : vector<8x32xf32>
    %100 = arith.mulf %91, %67 : vector<8x32xf32>
    %101 = arith.addf %99, %100 : vector<8x32xf32>
    %102 = vector.broadcast %66 : i32 to vector<8x1xi32>
    %103 = arith.cmpi sgt, %12, %102 : vector<8x1xi32>
    %104 = vector.shape_cast %103 : vector<8x1xi1> to vector<8x1xi1>
    %105 = vector.broadcast %104 : vector<8x1xi1> to vector<8x32xi1>
    %106 = arith.select %105, %101, %67 : vector<8x32xi1>, vector<8x32xf32>
    %c0_40 = arith.constant 0 : index
    %c0_41 = arith.constant 0 : index
    %107 = vector.load %arg10[%c0_40, %c0_41] : memref<8x32xf32, #tpu.memory_space<vmem>>, vector<8x32xf32>
    tpu.vector_store %arg10[%c0_40, %c0_41], %106 {strides = array<i32>} : memref<8x32xf32, #tpu.memory_space<vmem>>, vector<8x32xf32>,
    %cst_42 = arith.constant 0.000000e+00 : f32
    %108 = vector.shape_cast %103 : vector<8x1xi1> to vector<8x1xi1>
    %109 = vector.broadcast %108 : vector<8x1xi1> to vector<8x32xi1>
    %110 = vector.broadcast %cst_42 : f32 to vector<8x32xf32>
    %111 = arith.select %109, %101, %110 : vector<8x32xi1>, vector<8x32xf32>
    %112 = arith.truncf %111 : vector<8x32xf32> to vector<8x32xbf16>
    %113 = arith.index_cast %c1_i32 : i32 to index
    %c0_43 = arith.constant 0 : index
    %c0_44 = arith.constant 0 : index
    %114 = vector.load %arg8[%113, %c0_43, %c0_44] : memref<8x8x32xbf16, #tpu.memory_space<vmem>>, vector<1x8x32xbf16>
    %115 = vector.shape_cast %114 : vector<1x8x32xbf16> to vector<8x32xbf16>
    %116 = vector.shape_cast %112 : vector<8x32xbf16> to vector<1x8x32xbf16>
    tpu.vector_store %arg8[%113, %c0_43, %c0_44], %116 {strides = array<i32>} : memref<8x8x32xbf16, #tpu.memory_space<vmem>>, vector<1x8x32xbf16>,
    %c2_i32 = arith.constant 2 : i32
    %117 = arith.addi %14, %c2_i32 : i32
    %c0_45 = arith.constant 0 : index
    %c0_46 = arith.constant 0 : index
    %118 = vector.load %arg10[%c0_45, %c0_46] : memref<8x32xf32, #tpu.memory_space<vmem>>, vector<8x32xf32>
    %119 = arith.truncf %118 : vector<8x32xf32> to vector<8x32xbf16>
    %c0_47 = arith.constant 0 : index
    %c0_48 = arith.constant 0 : index
    %120 = vector.load %arg5[%c0_47, %c0_48] : memref<32x96xbf16, #tpu.memory_space<vmem>>, vector<32x96xbf16>
    %cst_49 = arith.constant dense<0.000000e+00> : vector<8x96xf32>
    %121 = tpu.matmul %119, %120, %cst_49 {dimension_numbers = #tpu.dot_dimension_numbers<[1], [0], [0], [1], [0, 0, 1, 1], [], []>} : vector<8x32xbf16>, vector<32x96xbf16>, vector<8x96xf32> -> vector<8x96xf32>
    %122 = vector.broadcast %13 : vector<1x96xf32> to vector<8x96xf32>
    %123 = arith.addf %121, %122 : vector<8x96xf32>
    %124 = arith.index_cast %c2_i32 : i32 to index
    %c0_50 = arith.constant 0 : index
    %c0_51 = arith.constant 0 : index
    %125 = vector.load %arg11[%124, %c0_50, %c0_51] : memref<8x8x96xf32, #tpu.memory_space<vmem>>, vector<1x8x96xf32>
    %126 = vector.shape_cast %125 : vector<1x8x96xf32> to vector<8x96xf32>
    %127 = vector.extract_strided_slice %126 {offsets = [0, 0], sizes = [8, 32], strides = [1, 1]} : vector<8x96xf32> to vector<8x32xf32>
    %128 = vector.extract_strided_slice %123 {offsets = [0, 0], sizes = [8, 32], strides = [1, 1]} : vector<8x96xf32> to vector<8x32xf32>
    %129 = arith.addf %127, %128 : vector<8x32xf32>
    %130 = arith.negf %129 : vector<8x32xf32>
    %131 = math.exp %130 : vector<8x32xf32>
    %cst_52 = arith.constant 1.000000e+00 : f32
    %132 = vector.broadcast %cst_52 : f32 to vector<8x32xf32>
    %133 = arith.addf %132, %131 : vector<8x32xf32>
    %134 = arith.divf %132, %133 : vector<8x32xf32>
    %135 = vector.extract_strided_slice %126 {offsets = [0, 32], sizes = [8, 32], strides = [1, 1]} : vector<8x96xf32> to vector<8x32xf32>
    %136 = vector.extract_strided_slice %123 {offsets = [0, 32], sizes = [8, 32], strides = [1, 1]} : vector<8x96xf32> to vector<8x32xf32>
    %137 = arith.addf %135, %136 : vector<8x32xf32>
    %138 = arith.negf %137 : vector<8x32xf32>
    %139 = math.exp %138 : vector<8x32xf32>
    %cst_53 = arith.constant 1.000000e+00 : f32
    %140 = vector.broadcast %cst_53 : f32 to vector<8x32xf32>
    %141 = arith.addf %140, %139 : vector<8x32xf32>
    %142 = arith.divf %140, %141 : vector<8x32xf32>
    %143 = vector.extract_strided_slice %126 {offsets = [0, 64], sizes = [8, 32], strides = [1, 1]} : vector<8x96xf32> to vector<8x32xf32>
    %144 = vector.extract_strided_slice %123 {offsets = [0, 64], sizes = [8, 32], strides = [1, 1]} : vector<8x96xf32> to vector<8x32xf32>
    %145 = arith.mulf %134, %144 : vector<8x32xf32>
    %146 = arith.addf %143, %145 : vector<8x32xf32>
    %147 = math.tanh %146 : vector<8x32xf32>
    %cst_54 = arith.constant 1.000000e+00 : f32
    %148 = vector.broadcast %cst_54 : f32 to vector<8x32xf32>
    %149 = arith.subf %148, %142 : vector<8x32xf32>
    %150 = arith.mulf %149, %147 : vector<8x32xf32>
    %151 = arith.mulf %142, %118 : vector<8x32xf32>
    %152 = arith.addf %150, %151 : vector<8x32xf32>
    %153 = vector.broadcast %117 : i32 to vector<8x1xi32>
    %154 = arith.cmpi sgt, %12, %153 : vector<8x1xi32>
    %155 = vector.shape_cast %154 : vector<8x1xi1> to vector<8x1xi1>
    %156 = vector.broadcast %155 : vector<8x1xi1> to vector<8x32xi1>
    %157 = arith.select %156, %152, %118 : vector<8x32xi1>, vector<8x32xf32>
    %c0_55 = arith.constant 0 : index
    %c0_56 = arith.constant 0 : index
    %158 = vector.load %arg10[%c0_55, %c0_56] : memref<8x32xf32, #tpu.memory_space<vmem>>, vector<8x32xf32>
    tpu.vector_store %arg10[%c0_55, %c0_56], %157 {strides = array<i32>} : memref<8x32xf32, #tpu.memory_space<vmem>>, vector<8x32xf32>,
    %cst_57 = arith.constant 0.000000e+00 : f32
    %159 = vector.shape_cast %154 : vector<8x1xi1> to vector<8x1xi1>
    %160 = vector.broadcast %159 : vector<8x1xi1> to vector<8x32xi1>
    %161 = vector.broadcast %cst_57 : f32 to vector<8x32xf32>
    %162 = arith.select %160, %152, %161 : vector<8x32xi1>, vector<8x32xf32>
    %163 = arith.truncf %162 : vector<8x32xf32> to vector<8x32xbf16>
    %164 = arith.index_cast %c2_i32 : i32 to index
    %c0_58 = arith.constant 0 : index
    %c0_59 = arith.constant 0 : index
    %165 = vector.load %arg8[%164, %c0_58, %c0_59] : memref<8x8x32xbf16, #tpu.memory_space<vmem>>, vector<1x8x32xbf16>
    %166 = vector.shape_cast %165 : vector<1x8x32xbf16> to vector<8x32xbf16>
    %167 = vector.shape_cast %163 : vector<8x32xbf16> to vector<1x8x32xbf16>
    tpu.vector_store %arg8[%164, %c0_58, %c0_59], %167 {strides = array<i32>} : memref<8x8x32xbf16, #tpu.memory_space<vmem>>, vector<1x8x32xbf16>,
    %c3_i32 = arith.constant 3 : i32
    %168 = arith.addi %14, %c3_i32 : i32
    %c0_60 = arith.constant 0 : index
    %c0_61 = arith.constant 0 : index
    %169 = vector.load %arg10[%c0_60, %c0_61] : memref<8x32xf32, #tpu.memory_space<vmem>>, vector<8x32xf32>
    %170 = arith.truncf %169 : vector<8x32xf32> to vector<8x32xbf16>
    %c0_62 = arith.constant 0 : index
    %c0_63 = arith.constant 0 : index
    %171 = vector.load %arg5[%c0_62, %c0_63] : memref<32x96xbf16, #tpu.memory_space<vmem>>, vector<32x96xbf16>
    %cst_64 = arith.constant dense<0.000000e+00> : vector<8x96xf32>
    %172 = tpu.matmul %170, %171, %cst_64 {dimension_numbers = #tpu.dot_dimension_numbers<[1], [0], [0], [1], [0, 0, 1, 1], [], []>} : vector<8x32xbf16>, vector<32x96xbf16>, vector<8x96xf32> -> vector<8x96xf32>
    %173 = vector.broadcast %13 : vector<1x96xf32> to vector<8x96xf32>
    %174 = arith.addf %172, %173 : vector<8x96xf32>
    %175 = arith.index_cast %c3_i32 : i32 to index
    %c0_65 = arith.constant 0 : index
    %c0_66 = arith.constant 0 : index
    %176 = vector.load %arg11[%175, %c0_65, %c0_66] : memref<8x8x96xf32, #tpu.memory_space<vmem>>, vector<1x8x96xf32>
    %177 = vector.shape_cast %176 : vector<1x8x96xf32> to vector<8x96xf32>
    %178 = vector.extract_strided_slice %177 {offsets = [0, 0], sizes = [8, 32], strides = [1, 1]} : vector<8x96xf32> to vector<8x32xf32>
    %179 = vector.extract_strided_slice %174 {offsets = [0, 0], sizes = [8, 32], strides = [1, 1]} : vector<8x96xf32> to vector<8x32xf32>
    %180 = arith.addf %178, %179 : vector<8x32xf32>
    %181 = arith.negf %180 : vector<8x32xf32>
    %182 = math.exp %181 : vector<8x32xf32>
    %cst_67 = arith.constant 1.000000e+00 : f32
    %183 = vector.broadcast %cst_67 : f32 to vector<8x32xf32>
    %184 = arith.addf %183, %182 : vector<8x32xf32>
    %185 = arith.divf %183, %184 : vector<8x32xf32>
    %186 = vector.extract_strided_slice %177 {offsets = [0, 32], sizes = [8, 32], strides = [1, 1]} : vector<8x96xf32> to vector<8x32xf32>
    %187 = vector.extract_strided_slice %174 {offsets = [0, 32], sizes = [8, 32], strides = [1, 1]} : vector<8x96xf32> to vector<8x32xf32>
    %188 = arith.addf %186, %187 : vector<8x32xf32>
    %189 = arith.negf %188 : vector<8x32xf32>
    %190 = math.exp %189 : vector<8x32xf32>
    %cst_68 = arith.constant 1.000000e+00 : f32
    %191 = vector.broadcast %cst_68 : f32 to vector<8x32xf32>
    %192 = arith.addf %191, %190 : vector<8x32xf32>
    %193 = arith.divf %191, %192 : vector<8x32xf32>
    %194 = vector.extract_strided_slice %177 {offsets = [0, 64], sizes = [8, 32], strides = [1, 1]} : vector<8x96xf32> to vector<8x32xf32>
    %195 = vector.extract_strided_slice %174 {offsets = [0, 64], sizes = [8, 32], strides = [1, 1]} : vector<8x96xf32> to vector<8x32xf32>
    %196 = arith.mulf %185, %195 : vector<8x32xf32>
    %197 = arith.addf %194, %196 : vector<8x32xf32>
    %198 = math.tanh %197 : vector<8x32xf32>
    %cst_69 = arith.constant 1.000000e+00 : f32
    %199 = vector.broadcast %cst_69 : f32 to vector<8x32xf32>
    %200 = arith.subf %199, %193 : vector<8x32xf32>
    %201 = arith.mulf %200, %198 : vector<8x32xf32>
    %202 = arith.mulf %193, %169 : vector<8x32xf32>
    %203 = arith.addf %201, %202 : vector<8x32xf32>
    %204 = vector.broadcast %168 : i32 to vector<8x1xi32>
    %205 = arith.cmpi sgt, %12, %204 : vector<8x1xi32>
    %206 = vector.shape_cast %205 : vector<8x1xi1> to vector<8x1xi1>
    %207 = vector.broadcast %206 : vector<8x1xi1> to vector<8x32xi1>
    %208 = arith.select %207, %203, %169 : vector<8x32xi1>, vector<8x32xf32>
    %c0_70 = arith.constant 0 : index
    %c0_71 = arith.constant 0 : index
    %209 = vector.load %arg10[%c0_70, %c0_71] : memref<8x32xf32, #tpu.memory_space<vmem>>, vector<8x32xf32>
    tpu.vector_store %arg10[%c0_70, %c0_71], %208 {strides = array<i32>} : memref<8x32xf32, #tpu.memory_space<vmem>>, vector<8x32xf32>,
    %cst_72 = arith.constant 0.000000e+00 : f32
    %210 = vector.shape_cast %205 : vector<8x1xi1> to vector<8x1xi1>
    %211 = vector.broadcast %210 : vector<8x1xi1> to vector<8x32xi1>
    %212 = vector.broadcast %cst_72 : f32 to vector<8x32xf32>
    %213 = arith.select %211, %203, %212 : vector<8x32xi1>, vector<8x32xf32>
    %214 = arith.truncf %213 : vector<8x32xf32> to vector<8x32xbf16>
    %215 = arith.index_cast %c3_i32 : i32 to index
    %c0_73 = arith.constant 0 : index
    %c0_74 = arith.constant 0 : index
    %216 = vector.load %arg8[%215, %c0_73, %c0_74] : memref<8x8x32xbf16, #tpu.memory_space<vmem>>, vector<1x8x32xbf16>
    %217 = vector.shape_cast %216 : vector<1x8x32xbf16> to vector<8x32xbf16>
    %218 = vector.shape_cast %214 : vector<8x32xbf16> to vector<1x8x32xbf16>
    tpu.vector_store %arg8[%215, %c0_73, %c0_74], %218 {strides = array<i32>} : memref<8x8x32xbf16, #tpu.memory_space<vmem>>, vector<1x8x32xbf16>,
    %c4_i32 = arith.constant 4 : i32
    %219 = arith.addi %14, %c4_i32 : i32
    %c0_75 = arith.constant 0 : index
    %c0_76 = arith.constant 0 : index
    %220 = vector.load %arg10[%c0_75, %c0_76] : memref<8x32xf32, #tpu.memory_space<vmem>>, vector<8x32xf32>
    %221 = arith.truncf %220 : vector<8x32xf32> to vector<8x32xbf16>
    %c0_77 = arith.constant 0 : index
    %c0_78 = arith.constant 0 : index
    %222 = vector.load %arg5[%c0_77, %c0_78] : memref<32x96xbf16, #tpu.memory_space<vmem>>, vector<32x96xbf16>
    %cst_79 = arith.constant dense<0.000000e+00> : vector<8x96xf32>
    %223 = tpu.matmul %221, %222, %cst_79 {dimension_numbers = #tpu.dot_dimension_numbers<[1], [0], [0], [1], [0, 0, 1, 1], [], []>} : vector<8x32xbf16>, vector<32x96xbf16>, vector<8x96xf32> -> vector<8x96xf32>
    %224 = vector.broadcast %13 : vector<1x96xf32> to vector<8x96xf32>
    %225 = arith.addf %223, %224 : vector<8x96xf32>
    %226 = arith.index_cast %c4_i32 : i32 to index
    %c0_80 = arith.constant 0 : index
    %c0_81 = arith.constant 0 : index
    %227 = vector.load %arg11[%226, %c0_80, %c0_81] : memref<8x8x96xf32, #tpu.memory_space<vmem>>, vector<1x8x96xf32>
    %228 = vector.shape_cast %227 : vector<1x8x96xf32> to vector<8x96xf32>
    %229 = vector.extract_strided_slice %228 {offsets = [0, 0], sizes = [8, 32], strides = [1, 1]} : vector<8x96xf32> to vector<8x32xf32>
    %230 = vector.extract_strided_slice %225 {offsets = [0, 0], sizes = [8, 32], strides = [1, 1]} : vector<8x96xf32> to vector<8x32xf32>
    %231 = arith.addf %229, %230 : vector<8x32xf32>
    %232 = arith.negf %231 : vector<8x32xf32>
    %233 = math.exp %232 : vector<8x32xf32>
    %cst_82 = arith.constant 1.000000e+00 : f32
    %234 = vector.broadcast %cst_82 : f32 to vector<8x32xf32>
    %235 = arith.addf %234, %233 : vector<8x32xf32>
    %236 = arith.divf %234, %235 : vector<8x32xf32>
    %237 = vector.extract_strided_slice %228 {offsets = [0, 32], sizes = [8, 32], strides = [1, 1]} : vector<8x96xf32> to vector<8x32xf32>
    %238 = vector.extract_strided_slice %225 {offsets = [0, 32], sizes = [8, 32], strides = [1, 1]} : vector<8x96xf32> to vector<8x32xf32>
    %239 = arith.addf %237, %238 : vector<8x32xf32>
    %240 = arith.negf %239 : vector<8x32xf32>
    %241 = math.exp %240 : vector<8x32xf32>
    %cst_83 = arith.constant 1.000000e+00 : f32
    %242 = vector.broadcast %cst_83 : f32 to vector<8x32xf32>
    %243 = arith.addf %242, %241 : vector<8x32xf32>
    %244 = arith.divf %242, %243 : vector<8x32xf32>
    %245 = vector.extract_strided_slice %228 {offsets = [0, 64], sizes = [8, 32], strides = [1, 1]} : vector<8x96xf32> to vector<8x32xf32>
    %246 = vector.extract_strided_slice %225 {offsets = [0, 64], sizes = [8, 32], strides = [1, 1]} : vector<8x96xf32> to vector<8x32xf32>
    %247 = arith.mulf %236, %246 : vector<8x32xf32>
    %248 = arith.addf %245, %247 : vector<8x32xf32>
    %249 = math.tanh %248 : vector<8x32xf32>
    %cst_84 = arith.constant 1.000000e+00 : f32
    %250 = vector.broadcast %cst_84 : f32 to vector<8x32xf32>
    %251 = arith.subf %250, %244 : vector<8x32xf32>
    %252 = arith.mulf %251, %249 : vector<8x32xf32>
    %253 = arith.mulf %244, %220 : vector<8x32xf32>
    %254 = arith.addf %252, %253 : vector<8x32xf32>
    %255 = vector.broadcast %219 : i32 to vector<8x1xi32>
    %256 = arith.cmpi sgt, %12, %255 : vector<8x1xi32>
    %257 = vector.shape_cast %256 : vector<8x1xi1> to vector<8x1xi1>
    %258 = vector.broadcast %257 : vector<8x1xi1> to vector<8x32xi1>
    %259 = arith.select %258, %254, %220 : vector<8x32xi1>, vector<8x32xf32>
    %c0_85 = arith.constant 0 : index
    %c0_86 = arith.constant 0 : index
    %260 = vector.load %arg10[%c0_85, %c0_86] : memref<8x32xf32, #tpu.memory_space<vmem>>, vector<8x32xf32>
    tpu.vector_store %arg10[%c0_85, %c0_86], %259 {strides = array<i32>} : memref<8x32xf32, #tpu.memory_space<vmem>>, vector<8x32xf32>,
    %cst_87 = arith.constant 0.000000e+00 : f32
    %261 = vector.shape_cast %256 : vector<8x1xi1> to vector<8x1xi1>
    %262 = vector.broadcast %261 : vector<8x1xi1> to vector<8x32xi1>
    %263 = vector.broadcast %cst_87 : f32 to vector<8x32xf32>
    %264 = arith.select %262, %254, %263 : vector<8x32xi1>, vector<8x32xf32>
    %265 = arith.truncf %264 : vector<8x32xf32> to vector<8x32xbf16>
    %266 = arith.index_cast %c4_i32 : i32 to index
    %c0_88 = arith.constant 0 : index
    %c0_89 = arith.constant 0 : index
    %267 = vector.load %arg8[%266, %c0_88, %c0_89] : memref<8x8x32xbf16, #tpu.memory_space<vmem>>, vector<1x8x32xbf16>
    %268 = vector.shape_cast %267 : vector<1x8x32xbf16> to vector<8x32xbf16>
    %269 = vector.shape_cast %265 : vector<8x32xbf16> to vector<1x8x32xbf16>
    tpu.vector_store %arg8[%266, %c0_88, %c0_89], %269 {strides = array<i32>} : memref<8x8x32xbf16, #tpu.memory_space<vmem>>, vector<1x8x32xbf16>,
    %c5_i32 = arith.constant 5 : i32
    %270 = arith.addi %14, %c5_i32 : i32
    %c0_90 = arith.constant 0 : index
    %c0_91 = arith.constant 0 : index
    %271 = vector.load %arg10[%c0_90, %c0_91] : memref<8x32xf32, #tpu.memory_space<vmem>>, vector<8x32xf32>
    %272 = arith.truncf %271 : vector<8x32xf32> to vector<8x32xbf16>
    %c0_92 = arith.constant 0 : index
    %c0_93 = arith.constant 0 : index
    %273 = vector.load %arg5[%c0_92, %c0_93] : memref<32x96xbf16, #tpu.memory_space<vmem>>, vector<32x96xbf16>
    %cst_94 = arith.constant dense<0.000000e+00> : vector<8x96xf32>
    %274 = tpu.matmul %272, %273, %cst_94 {dimension_numbers = #tpu.dot_dimension_numbers<[1], [0], [0], [1], [0, 0, 1, 1], [], []>} : vector<8x32xbf16>, vector<32x96xbf16>, vector<8x96xf32> -> vector<8x96xf32>
    %275 = vector.broadcast %13 : vector<1x96xf32> to vector<8x96xf32>
    %276 = arith.addf %274, %275 : vector<8x96xf32>
    %277 = arith.index_cast %c5_i32 : i32 to index
    %c0_95 = arith.constant 0 : index
    %c0_96 = arith.constant 0 : index
    %278 = vector.load %arg11[%277, %c0_95, %c0_96] : memref<8x8x96xf32, #tpu.memory_space<vmem>>, vector<1x8x96xf32>
    %279 = vector.shape_cast %278 : vector<1x8x96xf32> to vector<8x96xf32>
    %280 = vector.extract_strided_slice %279 {offsets = [0, 0], sizes = [8, 32], strides = [1, 1]} : vector<8x96xf32> to vector<8x32xf32>
    %281 = vector.extract_strided_slice %276 {offsets = [0, 0], sizes = [8, 32], strides = [1, 1]} : vector<8x96xf32> to vector<8x32xf32>
    %282 = arith.addf %280, %281 : vector<8x32xf32>
    %283 = arith.negf %282 : vector<8x32xf32>
    %284 = math.exp %283 : vector<8x32xf32>
    %cst_97 = arith.constant 1.000000e+00 : f32
    %285 = vector.broadcast %cst_97 : f32 to vector<8x32xf32>
    %286 = arith.addf %285, %284 : vector<8x32xf32>
    %287 = arith.divf %285, %286 : vector<8x32xf32>
    %288 = vector.extract_strided_slice %279 {offsets = [0, 32], sizes = [8, 32], strides = [1, 1]} : vector<8x96xf32> to vector<8x32xf32>
    %289 = vector.extract_strided_slice %276 {offsets = [0, 32], sizes = [8, 32], strides = [1, 1]} : vector<8x96xf32> to vector<8x32xf32>
    %290 = arith.addf %288, %289 : vector<8x32xf32>
    %291 = arith.negf %290 : vector<8x32xf32>
    %292 = math.exp %291 : vector<8x32xf32>
    %cst_98 = arith.constant 1.000000e+00 : f32
    %293 = vector.broadcast %cst_98 : f32 to vector<8x32xf32>
    %294 = arith.addf %293, %292 : vector<8x32xf32>
    %295 = arith.divf %293, %294 : vector<8x32xf32>
    %296 = vector.extract_strided_slice %279 {offsets = [0, 64], sizes = [8, 32], strides = [1, 1]} : vector<8x96xf32> to vector<8x32xf32>
    %297 = vector.extract_strided_slice %276 {offsets = [0, 64], sizes = [8, 32], strides = [1, 1]} : vector<8x96xf32> to vector<8x32xf32>
    %298 = arith.mulf %287, %297 : vector<8x32xf32>
    %299 = arith.addf %296, %298 : vector<8x32xf32>
    %300 = math.tanh %299 : vector<8x32xf32>
    %cst_99 = arith.constant 1.000000e+00 : f32
    %301 = vector.broadcast %cst_99 : f32 to vector<8x32xf32>
    %302 = arith.subf %301, %295 : vector<8x32xf32>
    %303 = arith.mulf %302, %300 : vector<8x32xf32>
    %304 = arith.mulf %295, %271 : vector<8x32xf32>
    %305 = arith.addf %303, %304 : vector<8x32xf32>
    %306 = vector.broadcast %270 : i32 to vector<8x1xi32>
    %307 = arith.cmpi sgt, %12, %306 : vector<8x1xi32>
    %308 = vector.shape_cast %307 : vector<8x1xi1> to vector<8x1xi1>
    %309 = vector.broadcast %308 : vector<8x1xi1> to vector<8x32xi1>
    %310 = arith.select %309, %305, %271 : vector<8x32xi1>, vector<8x32xf32>
    %c0_100 = arith.constant 0 : index
    %c0_101 = arith.constant 0 : index
    %311 = vector.load %arg10[%c0_100, %c0_101] : memref<8x32xf32, #tpu.memory_space<vmem>>, vector<8x32xf32>
    tpu.vector_store %arg10[%c0_100, %c0_101], %310 {strides = array<i32>} : memref<8x32xf32, #tpu.memory_space<vmem>>, vector<8x32xf32>,
    %cst_102 = arith.constant 0.000000e+00 : f32
    %312 = vector.shape_cast %307 : vector<8x1xi1> to vector<8x1xi1>
    %313 = vector.broadcast %312 : vector<8x1xi1> to vector<8x32xi1>
    %314 = vector.broadcast %cst_102 : f32 to vector<8x32xf32>
    %315 = arith.select %313, %305, %314 : vector<8x32xi1>, vector<8x32xf32>
    %316 = arith.truncf %315 : vector<8x32xf32> to vector<8x32xbf16>
    %317 = arith.index_cast %c5_i32 : i32 to index
    %c0_103 = arith.constant 0 : index
    %c0_104 = arith.constant 0 : index
    %318 = vector.load %arg8[%317, %c0_103, %c0_104] : memref<8x8x32xbf16, #tpu.memory_space<vmem>>, vector<1x8x32xbf16>
    %319 = vector.shape_cast %318 : vector<1x8x32xbf16> to vector<8x32xbf16>
    %320 = vector.shape_cast %316 : vector<8x32xbf16> to vector<1x8x32xbf16>
    tpu.vector_store %arg8[%317, %c0_103, %c0_104], %320 {strides = array<i32>} : memref<8x8x32xbf16, #tpu.memory_space<vmem>>, vector<1x8x32xbf16>,
    %c6_i32 = arith.constant 6 : i32
    %321 = arith.addi %14, %c6_i32 : i32
    %c0_105 = arith.constant 0 : index
    %c0_106 = arith.constant 0 : index
    %322 = vector.load %arg10[%c0_105, %c0_106] : memref<8x32xf32, #tpu.memory_space<vmem>>, vector<8x32xf32>
    %323 = arith.truncf %322 : vector<8x32xf32> to vector<8x32xbf16>
    %c0_107 = arith.constant 0 : index
    %c0_108 = arith.constant 0 : index
    %324 = vector.load %arg5[%c0_107, %c0_108] : memref<32x96xbf16, #tpu.memory_space<vmem>>, vector<32x96xbf16>
    %cst_109 = arith.constant dense<0.000000e+00> : vector<8x96xf32>
    %325 = tpu.matmul %323, %324, %cst_109 {dimension_numbers = #tpu.dot_dimension_numbers<[1], [0], [0], [1], [0, 0, 1, 1], [], []>} : vector<8x32xbf16>, vector<32x96xbf16>, vector<8x96xf32> -> vector<8x96xf32>
    %326 = vector.broadcast %13 : vector<1x96xf32> to vector<8x96xf32>
    %327 = arith.addf %325, %326 : vector<8x96xf32>
    %328 = arith.index_cast %c6_i32 : i32 to index
    %c0_110 = arith.constant 0 : index
    %c0_111 = arith.constant 0 : index
    %329 = vector.load %arg11[%328, %c0_110, %c0_111] : memref<8x8x96xf32, #tpu.memory_space<vmem>>, vector<1x8x96xf32>
    %330 = vector.shape_cast %329 : vector<1x8x96xf32> to vector<8x96xf32>
    %331 = vector.extract_strided_slice %330 {offsets = [0, 0], sizes = [8, 32], strides = [1, 1]} : vector<8x96xf32> to vector<8x32xf32>
    %332 = vector.extract_strided_slice %327 {offsets = [0, 0], sizes = [8, 32], strides = [1, 1]} : vector<8x96xf32> to vector<8x32xf32>
    %333 = arith.addf %331, %332 : vector<8x32xf32>
    %334 = arith.negf %333 : vector<8x32xf32>
    %335 = math.exp %334 : vector<8x32xf32>
    %cst_112 = arith.constant 1.000000e+00 : f32
    %336 = vector.broadcast %cst_112 : f32 to vector<8x32xf32>
    %337 = arith.addf %336, %335 : vector<8x32xf32>
    %338 = arith.divf %336, %337 : vector<8x32xf32>
    %339 = vector.extract_strided_slice %330 {offsets = [0, 32], sizes = [8, 32], strides = [1, 1]} : vector<8x96xf32> to vector<8x32xf32>
    %340 = vector.extract_strided_slice %327 {offsets = [0, 32], sizes = [8, 32], strides = [1, 1]} : vector<8x96xf32> to vector<8x32xf32>
    %341 = arith.addf %339, %340 : vector<8x32xf32>
    %342 = arith.negf %341 : vector<8x32xf32>
    %343 = math.exp %342 : vector<8x32xf32>
    %cst_113 = arith.constant 1.000000e+00 : f32
    %344 = vector.broadcast %cst_113 : f32 to vector<8x32xf32>
    %345 = arith.addf %344, %343 : vector<8x32xf32>
    %346 = arith.divf %344, %345 : vector<8x32xf32>
    %347 = vector.extract_strided_slice %330 {offsets = [0, 64], sizes = [8, 32], strides = [1, 1]} : vector<8x96xf32> to vector<8x32xf32>
    %348 = vector.extract_strided_slice %327 {offsets = [0, 64], sizes = [8, 32], strides = [1, 1]} : vector<8x96xf32> to vector<8x32xf32>
    %349 = arith.mulf %338, %348 : vector<8x32xf32>
    %350 = arith.addf %347, %349 : vector<8x32xf32>
    %351 = math.tanh %350 : vector<8x32xf32>
    %cst_114 = arith.constant 1.000000e+00 : f32
    %352 = vector.broadcast %cst_114 : f32 to vector<8x32xf32>
    %353 = arith.subf %352, %346 : vector<8x32xf32>
    %354 = arith.mulf %353, %351 : vector<8x32xf32>
    %355 = arith.mulf %346, %322 : vector<8x32xf32>
    %356 = arith.addf %354, %355 : vector<8x32xf32>
    %357 = vector.broadcast %321 : i32 to vector<8x1xi32>
    %358 = arith.cmpi sgt, %12, %357 : vector<8x1xi32>
    %359 = vector.shape_cast %358 : vector<8x1xi1> to vector<8x1xi1>
    %360 = vector.broadcast %359 : vector<8x1xi1> to vector<8x32xi1>
    %361 = arith.select %360, %356, %322 : vector<8x32xi1>, vector<8x32xf32>
    %c0_115 = arith.constant 0 : index
    %c0_116 = arith.constant 0 : index
    %362 = vector.load %arg10[%c0_115, %c0_116] : memref<8x32xf32, #tpu.memory_space<vmem>>, vector<8x32xf32>
    tpu.vector_store %arg10[%c0_115, %c0_116], %361 {strides = array<i32>} : memref<8x32xf32, #tpu.memory_space<vmem>>, vector<8x32xf32>,
    %cst_117 = arith.constant 0.000000e+00 : f32
    %363 = vector.shape_cast %358 : vector<8x1xi1> to vector<8x1xi1>
    %364 = vector.broadcast %363 : vector<8x1xi1> to vector<8x32xi1>
    %365 = vector.broadcast %cst_117 : f32 to vector<8x32xf32>
    %366 = arith.select %364, %356, %365 : vector<8x32xi1>, vector<8x32xf32>
    %367 = arith.truncf %366 : vector<8x32xf32> to vector<8x32xbf16>
    %368 = arith.index_cast %c6_i32 : i32 to index
    %c0_118 = arith.constant 0 : index
    %c0_119 = arith.constant 0 : index
    %369 = vector.load %arg8[%368, %c0_118, %c0_119] : memref<8x8x32xbf16, #tpu.memory_space<vmem>>, vector<1x8x32xbf16>
    %370 = vector.shape_cast %369 : vector<1x8x32xbf16> to vector<8x32xbf16>
    %371 = vector.shape_cast %367 : vector<8x32xbf16> to vector<1x8x32xbf16>
    tpu.vector_store %arg8[%368, %c0_118, %c0_119], %371 {strides = array<i32>} : memref<8x8x32xbf16, #tpu.memory_space<vmem>>, vector<1x8x32xbf16>,
    %c7_i32 = arith.constant 7 : i32
    %372 = arith.addi %14, %c7_i32 : i32
    %c0_120 = arith.constant 0 : index
    %c0_121 = arith.constant 0 : index
    %373 = vector.load %arg10[%c0_120, %c0_121] : memref<8x32xf32, #tpu.memory_space<vmem>>, vector<8x32xf32>
    %374 = arith.truncf %373 : vector<8x32xf32> to vector<8x32xbf16>
    %c0_122 = arith.constant 0 : index
    %c0_123 = arith.constant 0 : index
    %375 = vector.load %arg5[%c0_122, %c0_123] : memref<32x96xbf16, #tpu.memory_space<vmem>>, vector<32x96xbf16>
    %cst_124 = arith.constant dense<0.000000e+00> : vector<8x96xf32>
    %376 = tpu.matmul %374, %375, %cst_124 {dimension_numbers = #tpu.dot_dimension_numbers<[1], [0], [0], [1], [0, 0, 1, 1], [], []>} : vector<8x32xbf16>, vector<32x96xbf16>, vector<8x96xf32> -> vector<8x96xf32>
    %377 = vector.broadcast %13 : vector<1x96xf32> to vector<8x96xf32>
    %378 = arith.addf %376, %377 : vector<8x96xf32>
    %379 = arith.index_cast %c7_i32 : i32 to index
    %c0_125 = arith.constant 0 : index
    %c0_126 = arith.constant 0 : index
    %380 = vector.load %arg11[%379, %c0_125, %c0_126] : memref<8x8x96xf32, #tpu.memory_space<vmem>>, vector<1x8x96xf32>
    %381 = vector.shape_cast %380 : vector<1x8x96xf32> to vector<8x96xf32>
    %382 = vector.extract_strided_slice %381 {offsets = [0, 0], sizes = [8, 32], strides = [1, 1]} : vector<8x96xf32> to vector<8x32xf32>
    %383 = vector.extract_strided_slice %378 {offsets = [0, 0], sizes = [8, 32], strides = [1, 1]} : vector<8x96xf32> to vector<8x32xf32>
    %384 = arith.addf %382, %383 : vector<8x32xf32>
    %385 = arith.negf %384 : vector<8x32xf32>
    %386 = math.exp %385 : vector<8x32xf32>
    %cst_127 = arith.constant 1.000000e+00 : f32
    %387 = vector.broadcast %cst_127 : f32 to vector<8x32xf32>
    %388 = arith.addf %387, %386 : vector<8x32xf32>
    %389 = arith.divf %387, %388 : vector<8x32xf32>
    %390 = vector.extract_strided_slice %381 {offsets = [0, 32], sizes = [8, 32], strides = [1, 1]} : vector<8x96xf32> to vector<8x32xf32>
    %391 = vector.extract_strided_slice %378 {offsets = [0, 32], sizes = [8, 32], strides = [1, 1]} : vector<8x96xf32> to vector<8x32xf32>
    %392 = arith.addf %390, %391 : vector<8x32xf32>
    %393 = arith.negf %392 : vector<8x32xf32>
    %394 = math.exp %393 : vector<8x32xf32>
    %cst_128 = arith.constant 1.000000e+00 : f32
    %395 = vector.broadcast %cst_128 : f32 to vector<8x32xf32>
    %396 = arith.addf %395, %394 : vector<8x32xf32>
    %397 = arith.divf %395, %396 : vector<8x32xf32>
    %398 = vector.extract_strided_slice %381 {offsets = [0, 64], sizes = [8, 32], strides = [1, 1]} : vector<8x96xf32> to vector<8x32xf32>
    %399 = vector.extract_strided_slice %378 {offsets = [0, 64], sizes = [8, 32], strides = [1, 1]} : vector<8x96xf32> to vector<8x32xf32>
    %400 = arith.mulf %389, %399 : vector<8x32xf32>
    %401 = arith.addf %398, %400 : vector<8x32xf32>
    %402 = math.tanh %401 : vector<8x32xf32>
    %cst_129 = arith.constant 1.000000e+00 : f32
    %403 = vector.broadcast %cst_129 : f32 to vector<8x32xf32>
    %404 = arith.subf %403, %397 : vector<8x32xf32>
    %405 = arith.mulf %404, %402 : vector<8x32xf32>
    %406 = arith.mulf %397, %373 : vector<8x32xf32>
    %407 = arith.addf %405, %406 : vector<8x32xf32>
    %408 = vector.broadcast %372 : i32 to vector<8x1xi32>
    %409 = arith.cmpi sgt, %12, %408 : vector<8x1xi32>
    %410 = vector.shape_cast %409 : vector<8x1xi1> to vector<8x1xi1>
    %411 = vector.broadcast %410 : vector<8x1xi1> to vector<8x32xi1>
    %412 = arith.select %411, %407, %373 : vector<8x32xi1>, vector<8x32xf32>
    %c0_130 = arith.constant 0 : index
    %c0_131 = arith.constant 0 : index
    %413 = vector.load %arg10[%c0_130, %c0_131] : memref<8x32xf32, #tpu.memory_space<vmem>>, vector<8x32xf32>
    tpu.vector_store %arg10[%c0_130, %c0_131], %412 {strides = array<i32>} : memref<8x32xf32, #tpu.memory_space<vmem>>, vector<8x32xf32>,
    %cst_132 = arith.constant 0.000000e+00 : f32
    %414 = vector.shape_cast %409 : vector<8x1xi1> to vector<8x1xi1>
    %415 = vector.broadcast %414 : vector<8x1xi1> to vector<8x32xi1>
    %416 = vector.broadcast %cst_132 : f32 to vector<8x32xf32>
    %417 = arith.select %415, %407, %416 : vector<8x32xi1>, vector<8x32xf32>
    %418 = arith.truncf %417 : vector<8x32xf32> to vector<8x32xbf16>
    %419 = arith.index_cast %c7_i32 : i32 to index
    %c0_133 = arith.constant 0 : index
    %c0_134 = arith.constant 0 : index
    %420 = vector.load %arg8[%419, %c0_133, %c0_134] : memref<8x8x32xbf16, #tpu.memory_space<vmem>>, vector<1x8x32xbf16>
    %421 = vector.shape_cast %420 : vector<1x8x32xbf16> to vector<8x32xbf16>
    %422 = vector.shape_cast %418 : vector<8x32xbf16> to vector<1x8x32xbf16>
    tpu.vector_store %arg8[%419, %c0_133, %c0_134], %422 {strides = array<i32>} : memref<8x8x32xbf16, #tpu.memory_space<vmem>>, vector<1x8x32xbf16>,
    %c8_i32_135 = arith.constant 8 : i32
    %c0_136 = arith.constant 0 : index
    %c0_137 = arith.constant 0 : index
    %423 = vector.load %arg10[%c0_136, %c0_137] : memref<8x32xf32, #tpu.memory_space<vmem>>, vector<8x32xf32>
    %c0_138 = arith.constant 0 : index
    %c0_139 = arith.constant 0 : index
    %424 = vector.load %arg9[%c0_138, %c0_139] : memref<8x32xf32, #tpu.memory_space<vmem>>, vector<8x32xf32>
    tpu.vector_store %arg9[%c0_138, %c0_139], %423 {strides = array<i32>} : memref<8x32xf32, #tpu.memory_space<vmem>>, vector<8x32xf32>,
    return
  }
  func.func @transform_0(%arg0: i32, %arg1: i32) -> (i32, i32, i32) {
    %c0_i32 = arith.constant 0 : i32
    %c0_i32_0 = arith.constant 0 : i32
    return %arg1, %arg0, %c0_i32 : i32, i32, i32
  }
  func.func @transform_1(%arg0: i32, %arg1: i32) -> (i32, i32) {
    %c0_i32 = arith.constant 0 : i32
    %c0_i32_0 = arith.constant 0 : i32
    return %arg0, %c0_i32 : i32, i32
  }
  func.func @transform_2(%arg0: i32, %arg1: i32) -> (i32, i32) {
    %c0_i32 = arith.constant 0 : i32
    %c0_i32_0 = arith.constant 0 : i32
    %c0_i32_1 = arith.constant 0 : i32
    return %c0_i32, %c0_i32_0 : i32, i32
  }
  func.func @transform_3(%arg0: i32, %arg1: i32) -> (i32, i32) {
    %c0_i32 = arith.constant 0 : i32
    %c0_i32_0 = arith.constant 0 : i32
    %c0_i32_1 = arith.constant 0 : i32
    return %c0_i32, %c0_i32_0 : i32, i32
  }
  func.func @transform_4(%arg0: i32, %arg1: i32) -> (i32, i32) {
    %c0_i32 = arith.constant 0 : i32
    %c0_i32_0 = arith.constant 0 : i32
    %c0_i32_1 = arith.constant 0 : i32
    return %c0_i32, %c0_i32_0 : i32, i32
  }
  func.func @transform_5(%arg0: i32, %arg1: i32) -> (i32, i32) {
    %c0_i32 = arith.constant 0 : i32
    %c0_i32_0 = arith.constant 0 : i32
    %c0_i32_1 = arith.constant 0 : i32
    return %c0_i32, %c0_i32_0 : i32, i32
  }
  func.func @transform_6(%arg0: i32, %arg1: i32) -> (i32, i32, i32) {
    %c0_i32 = arith.constant 0 : i32
    %c0_i32_0 = arith.constant 0 : i32
    return %arg1, %arg0, %c0_i32 : i32, i32, i32
  }
  func.func @transform_7(%arg0: i32, %arg1: i32) -> (i32, i32) {
    %c0_i32 = arith.constant 0 : i32
    %c0_i32_0 = arith.constant 0 : i32
    return %arg0, %c0_i32 : i32, i32
  }
}

module attributes {stable_mosaic.version = 11 : i64} {
  func.func @_gru_kernel(%arg0: i32, %arg1: i32, %arg2: memref<8x8x32xbf16, #tpu.memory_space<vmem>>, %arg3: memref<8x1xi32, #tpu.memory_space<vmem>>, %arg4: memref<32x96xbf16, #tpu.memory_space<vmem>>, %arg5: memref<32x96xbf16, #tpu.memory_space<vmem>>, %arg6: memref<1x96xf32, #tpu.memory_space<vmem>>, %arg7: memref<1x96xf32, #tpu.memory_space<vmem>>, %arg8: memref<8x8x32xbf16, #tpu.memory_space<vmem>>, %arg9: memref<32x32xbf16, #tpu.memory_space<vmem>>, %arg10: memref<32x32xbf16, #tpu.memory_space<vmem>>, %arg11: memref<1x32xf32, #tpu.memory_space<vmem>>, %arg12: memref<8x8x32xf32, #tpu.memory_space<vmem>>, %arg13: memref<8x32xf32, #tpu.memory_space<vmem>>, %arg14: memref<8x32xf32, #tpu.memory_space<vmem>>, %arg15: memref<8x8x96xf32, #tpu.memory_space<vmem>>, %arg16: memref<8x8x32xbf16, #tpu.memory_space<vmem>>) attributes {dimension_semantics = [#tpu.dimension_semantics<parallel>, #tpu.dimension_semantics<arbitrary>], iteration_bounds = array<i64: 1, 1>, scalar_prefetch = 0 : i64, scratch_operands = 3 : i64, tpu.core_type = #tpu.core_type<tc>, window_params = [{transform_indices = @transform_0, window_bounds = array<i64: 8, 8, 32>}, {transform_indices = @transform_1, window_bounds = array<i64: 8, 1>}, {pipeline_mode = #tpu.pipeline_mode<synchronous>, transform_indices = @transform_2, window_bounds = array<i64: 32, 96>}, {pipeline_mode = #tpu.pipeline_mode<synchronous>, transform_indices = @transform_3, window_bounds = array<i64: 32, 96>}, {pipeline_mode = #tpu.pipeline_mode<synchronous>, transform_indices = @transform_4, window_bounds = array<i64: 1, 96>}, {pipeline_mode = #tpu.pipeline_mode<synchronous>, transform_indices = @transform_5, window_bounds = array<i64: 1, 96>}, {transform_indices = @transform_6, window_bounds = array<i64: 8, 8, 32>}, {pipeline_mode = #tpu.pipeline_mode<synchronous>, transform_indices = @transform_7, window_bounds = array<i64: 32, 32>}, {pipeline_mode = #tpu.pipeline_mode<synchronous>, transform_indices = @transform_8, window_bounds = array<i64: 32, 32>}, {pipeline_mode = #tpu.pipeline_mode<synchronous>, transform_indices = @transform_9, window_bounds = array<i64: 1, 32>}, {transform_indices = @transform_10, window_bounds = array<i64: 8, 8, 32>}, {transform_indices = @transform_11, window_bounds = array<i64: 8, 32>}]} {
    %c0_i32 = arith.constant 0 : i32
    %0 = arith.cmpi eq, %arg1, %c0_i32 : i32
    %1 = arith.extui %0 : i1 to i32
    %c0_i32_0 = arith.constant 0 : i32
    %2 = arith.cmpi ne, %1, %c0_i32_0 : i32
    scf.if %2 {
      %cst_166 = arith.constant 0.000000e+00 : f32
      %448 = vector.broadcast %cst_166 : f32 to vector<8x32xf32>
      %c0_167 = arith.constant 0 : index
      %c0_168 = arith.constant 0 : index
      %449 = vector.load %arg14[%c0_167, %c0_168] : memref<8x32xf32, #tpu.memory_space<vmem>>, vector<8x32xf32>
      tpu.vector_store %arg14[%c0_167, %c0_168], %448 {strides = array<i32>} : memref<8x32xf32, #tpu.memory_space<vmem>>, vector<8x32xf32>,
    } else {
    }
    %c0 = arith.constant 0 : index
    %c0_1 = arith.constant 0 : index
    %c0_2 = arith.constant 0 : index
    %3 = vector.load %arg2[%c0, %c0_1, %c0_2] : memref<8x8x32xbf16, #tpu.memory_space<vmem>>, vector<8x8x32xbf16>
    %4 = vector.shape_cast %3 : vector<8x8x32xbf16> to vector<64x32xbf16>
    %c0_3 = arith.constant 0 : index
    %c0_4 = arith.constant 0 : index
    %5 = vector.load %arg4[%c0_3, %c0_4] : memref<32x96xbf16, #tpu.memory_space<vmem>>, vector<32x96xbf16>
    %cst = arith.constant dense<0.000000e+00> : vector<64x96xf32>
    %6 = tpu.matmul %4, %5, %cst {dimension_numbers = #tpu.dot_dimension_numbers<[1], [0], [0], [1], [0, 0, 1, 1], [], []>} : vector<64x32xbf16>, vector<32x96xbf16>, vector<64x96xf32> -> vector<64x96xf32>
    %c0_5 = arith.constant 0 : index
    %c0_6 = arith.constant 0 : index
    %7 = vector.load %arg6[%c0_5, %c0_6] : memref<1x96xf32, #tpu.memory_space<vmem>>, vector<1x96xf32>
    %8 = vector.broadcast %7 : vector<1x96xf32> to vector<64x96xf32>
    %9 = arith.addf %6, %8 : vector<64x96xf32>
    %10 = vector.shape_cast %9 : vector<64x96xf32> to vector<8x8x96xf32>
    %c0_7 = arith.constant 0 : index
    %c0_8 = arith.constant 0 : index
    %c0_9 = arith.constant 0 : index
    %11 = vector.load %arg15[%c0_7, %c0_8, %c0_9] : memref<8x8x96xf32, #tpu.memory_space<vmem>>, vector<8x8x96xf32>
    tpu.vector_store %arg15[%c0_7, %c0_8, %c0_9], %10 {strides = array<i32>} : memref<8x8x96xf32, #tpu.memory_space<vmem>>, vector<8x8x96xf32>,
    %c0_10 = arith.constant 0 : index
    %c0_11 = arith.constant 0 : index
    %12 = vector.load %arg3[%c0_10, %c0_11] : memref<8x1xi32, #tpu.memory_space<vmem>>, vector<8x1xi32>
    %c0_12 = arith.constant 0 : index
    %c0_13 = arith.constant 0 : index
    %13 = vector.load %arg7[%c0_12, %c0_13] : memref<1x96xf32, #tpu.memory_space<vmem>>, vector<1x96xf32>
    %c0_i32_14 = arith.constant 0 : i32
    %14 = arith.subi %c0_i32_14, %arg1 : i32
    %c8_i32 = arith.constant 8 : i32
    %15 = arith.muli %14, %c8_i32 : i32
    %c0_i32_15 = arith.constant 0 : i32
    %c7_i32 = arith.constant 7 : i32
    %16 = arith.subi %c7_i32, %c0_i32_15 : i32
    %17 = arith.addi %15, %16 : i32
    %c0_16 = arith.constant 0 : index
    %c0_17 = arith.constant 0 : index
    %18 = vector.load %arg14[%c0_16, %c0_17] : memref<8x32xf32, #tpu.memory_space<vmem>>, vector<8x32xf32>
    %19 = arith.truncf %18 : vector<8x32xf32> to vector<8x32xbf16>
    %c0_18 = arith.constant 0 : index
    %c0_19 = arith.constant 0 : index
    %20 = vector.load %arg5[%c0_18, %c0_19] : memref<32x96xbf16, #tpu.memory_space<vmem>>, vector<32x96xbf16>
    %cst_20 = arith.constant dense<0.000000e+00> : vector<8x96xf32>
    %21 = tpu.matmul %19, %20, %cst_20 {dimension_numbers = #tpu.dot_dimension_numbers<[1], [0], [0], [1], [0, 0, 1, 1], [], []>} : vector<8x32xbf16>, vector<32x96xbf16>, vector<8x96xf32> -> vector<8x96xf32>
    %22 = vector.broadcast %13 : vector<1x96xf32> to vector<8x96xf32>
    %23 = arith.addf %21, %22 : vector<8x96xf32>
    %24 = arith.index_cast %16 : i32 to index
    %c0_21 = arith.constant 0 : index
    %c0_22 = arith.constant 0 : index
    %25 = vector.load %arg15[%24, %c0_21, %c0_22] : memref<8x8x96xf32, #tpu.memory_space<vmem>>, vector<1x8x96xf32>
    %26 = vector.shape_cast %25 : vector<1x8x96xf32> to vector<8x96xf32>
    %27 = vector.extract_strided_slice %26 {offsets = [0, 0], sizes = [8, 32], strides = [1, 1]} : vector<8x96xf32> to vector<8x32xf32>
    %28 = vector.extract_strided_slice %23 {offsets = [0, 0], sizes = [8, 32], strides = [1, 1]} : vector<8x96xf32> to vector<8x32xf32>
    %29 = arith.addf %27, %28 : vector<8x32xf32>
    %30 = arith.negf %29 : vector<8x32xf32>
    %31 = math.exp %30 : vector<8x32xf32>
    %cst_23 = arith.constant 1.000000e+00 : f32
    %32 = vector.broadcast %cst_23 : f32 to vector<8x32xf32>
    %33 = arith.addf %32, %31 : vector<8x32xf32>
    %34 = arith.divf %32, %33 : vector<8x32xf32>
    %35 = vector.extract_strided_slice %26 {offsets = [0, 32], sizes = [8, 32], strides = [1, 1]} : vector<8x96xf32> to vector<8x32xf32>
    %36 = vector.extract_strided_slice %23 {offsets = [0, 32], sizes = [8, 32], strides = [1, 1]} : vector<8x96xf32> to vector<8x32xf32>
    %37 = arith.addf %35, %36 : vector<8x32xf32>
    %38 = arith.negf %37 : vector<8x32xf32>
    %39 = math.exp %38 : vector<8x32xf32>
    %cst_24 = arith.constant 1.000000e+00 : f32
    %40 = vector.broadcast %cst_24 : f32 to vector<8x32xf32>
    %41 = arith.addf %40, %39 : vector<8x32xf32>
    %42 = arith.divf %40, %41 : vector<8x32xf32>
    %43 = vector.extract_strided_slice %26 {offsets = [0, 64], sizes = [8, 32], strides = [1, 1]} : vector<8x96xf32> to vector<8x32xf32>
    %44 = vector.extract_strided_slice %23 {offsets = [0, 64], sizes = [8, 32], strides = [1, 1]} : vector<8x96xf32> to vector<8x32xf32>
    %45 = arith.mulf %34, %44 : vector<8x32xf32>
    %46 = arith.addf %43, %45 : vector<8x32xf32>
    %47 = math.tanh %46 : vector<8x32xf32>
    %cst_25 = arith.constant 1.000000e+00 : f32
    %48 = vector.broadcast %cst_25 : f32 to vector<8x32xf32>
    %49 = arith.subf %48, %42 : vector<8x32xf32>
    %50 = arith.mulf %49, %47 : vector<8x32xf32>
    %51 = arith.mulf %42, %18 : vector<8x32xf32>
    %52 = arith.addf %50, %51 : vector<8x32xf32>
    %53 = vector.broadcast %17 : i32 to vector<8x1xi32>
    %54 = arith.cmpi sgt, %12, %53 : vector<8x1xi32>
    %55 = vector.shape_cast %54 : vector<8x1xi1> to vector<8x1xi1>
    %56 = vector.broadcast %55 : vector<8x1xi1> to vector<8x32xi1>
    %57 = arith.select %56, %52, %18 : vector<8x32xi1>, vector<8x32xf32>
    %c0_26 = arith.constant 0 : index
    %c0_27 = arith.constant 0 : index
    %58 = vector.load %arg14[%c0_26, %c0_27] : memref<8x32xf32, #tpu.memory_space<vmem>>, vector<8x32xf32>
    tpu.vector_store %arg14[%c0_26, %c0_27], %57 {strides = array<i32>} : memref<8x32xf32, #tpu.memory_space<vmem>>, vector<8x32xf32>,
    %cst_28 = arith.constant 0.000000e+00 : f32
    %59 = vector.shape_cast %54 : vector<8x1xi1> to vector<8x1xi1>
    %60 = vector.broadcast %59 : vector<8x1xi1> to vector<8x32xi1>
    %61 = vector.broadcast %cst_28 : f32 to vector<8x32xf32>
    %62 = arith.select %60, %52, %61 : vector<8x32xi1>, vector<8x32xf32>
    %63 = arith.truncf %62 : vector<8x32xf32> to vector<8x32xbf16>
    %64 = arith.index_cast %16 : i32 to index
    %c0_29 = arith.constant 0 : index
    %c0_30 = arith.constant 0 : index
    %65 = vector.load %arg16[%64, %c0_29, %c0_30] : memref<8x8x32xbf16, #tpu.memory_space<vmem>>, vector<1x8x32xbf16>
    %66 = vector.shape_cast %65 : vector<1x8x32xbf16> to vector<8x32xbf16>
    %67 = vector.shape_cast %63 : vector<8x32xbf16> to vector<1x8x32xbf16>
    tpu.vector_store %arg16[%64, %c0_29, %c0_30], %67 {strides = array<i32>} : memref<8x8x32xbf16, #tpu.memory_space<vmem>>, vector<1x8x32xbf16>,
    %c1_i32 = arith.constant 1 : i32
    %c7_i32_31 = arith.constant 7 : i32
    %68 = arith.subi %c7_i32_31, %c1_i32 : i32
    %69 = arith.addi %15, %68 : i32
    %c0_32 = arith.constant 0 : index
    %c0_33 = arith.constant 0 : index
    %70 = vector.load %arg14[%c0_32, %c0_33] : memref<8x32xf32, #tpu.memory_space<vmem>>, vector<8x32xf32>
    %71 = arith.truncf %70 : vector<8x32xf32> to vector<8x32xbf16>
    %c0_34 = arith.constant 0 : index
    %c0_35 = arith.constant 0 : index
    %72 = vector.load %arg5[%c0_34, %c0_35] : memref<32x96xbf16, #tpu.memory_space<vmem>>, vector<32x96xbf16>
    %cst_36 = arith.constant dense<0.000000e+00> : vector<8x96xf32>
    %73 = tpu.matmul %71, %72, %cst_36 {dimension_numbers = #tpu.dot_dimension_numbers<[1], [0], [0], [1], [0, 0, 1, 1], [], []>} : vector<8x32xbf16>, vector<32x96xbf16>, vector<8x96xf32> -> vector<8x96xf32>
    %74 = vector.broadcast %13 : vector<1x96xf32> to vector<8x96xf32>
    %75 = arith.addf %73, %74 : vector<8x96xf32>
    %76 = arith.index_cast %68 : i32 to index
    %c0_37 = arith.constant 0 : index
    %c0_38 = arith.constant 0 : index
    %77 = vector.load %arg15[%76, %c0_37, %c0_38] : memref<8x8x96xf32, #tpu.memory_space<vmem>>, vector<1x8x96xf32>
    %78 = vector.shape_cast %77 : vector<1x8x96xf32> to vector<8x96xf32>
    %79 = vector.extract_strided_slice %78 {offsets = [0, 0], sizes = [8, 32], strides = [1, 1]} : vector<8x96xf32> to vector<8x32xf32>
    %80 = vector.extract_strided_slice %75 {offsets = [0, 0], sizes = [8, 32], strides = [1, 1]} : vector<8x96xf32> to vector<8x32xf32>
    %81 = arith.addf %79, %80 : vector<8x32xf32>
    %82 = arith.negf %81 : vector<8x32xf32>
    %83 = math.exp %82 : vector<8x32xf32>
    %cst_39 = arith.constant 1.000000e+00 : f32
    %84 = vector.broadcast %cst_39 : f32 to vector<8x32xf32>
    %85 = arith.addf %84, %83 : vector<8x32xf32>
    %86 = arith.divf %84, %85 : vector<8x32xf32>
    %87 = vector.extract_strided_slice %78 {offsets = [0, 32], sizes = [8, 32], strides = [1, 1]} : vector<8x96xf32> to vector<8x32xf32>
    %88 = vector.extract_strided_slice %75 {offsets = [0, 32], sizes = [8, 32], strides = [1, 1]} : vector<8x96xf32> to vector<8x32xf32>
    %89 = arith.addf %87, %88 : vector<8x32xf32>
    %90 = arith.negf %89 : vector<8x32xf32>
    %91 = math.exp %90 : vector<8x32xf32>
    %cst_40 = arith.constant 1.000000e+00 : f32
    %92 = vector.broadcast %cst_40 : f32 to vector<8x32xf32>
    %93 = arith.addf %92, %91 : vector<8x32xf32>
    %94 = arith.divf %92, %93 : vector<8x32xf32>
    %95 = vector.extract_strided_slice %78 {offsets = [0, 64], sizes = [8, 32], strides = [1, 1]} : vector<8x96xf32> to vector<8x32xf32>
    %96 = vector.extract_strided_slice %75 {offsets = [0, 64], sizes = [8, 32], strides = [1, 1]} : vector<8x96xf32> to vector<8x32xf32>
    %97 = arith.mulf %86, %96 : vector<8x32xf32>
    %98 = arith.addf %95, %97 : vector<8x32xf32>
    %99 = math.tanh %98 : vector<8x32xf32>
    %cst_41 = arith.constant 1.000000e+00 : f32
    %100 = vector.broadcast %cst_41 : f32 to vector<8x32xf32>
    %101 = arith.subf %100, %94 : vector<8x32xf32>
    %102 = arith.mulf %101, %99 : vector<8x32xf32>
    %103 = arith.mulf %94, %70 : vector<8x32xf32>
    %104 = arith.addf %102, %103 : vector<8x32xf32>
    %105 = vector.broadcast %69 : i32 to vector<8x1xi32>
    %106 = arith.cmpi sgt, %12, %105 : vector<8x1xi32>
    %107 = vector.shape_cast %106 : vector<8x1xi1> to vector<8x1xi1>
    %108 = vector.broadcast %107 : vector<8x1xi1> to vector<8x32xi1>
    %109 = arith.select %108, %104, %70 : vector<8x32xi1>, vector<8x32xf32>
    %c0_42 = arith.constant 0 : index
    %c0_43 = arith.constant 0 : index
    %110 = vector.load %arg14[%c0_42, %c0_43] : memref<8x32xf32, #tpu.memory_space<vmem>>, vector<8x32xf32>
    tpu.vector_store %arg14[%c0_42, %c0_43], %109 {strides = array<i32>} : memref<8x32xf32, #tpu.memory_space<vmem>>, vector<8x32xf32>,
    %cst_44 = arith.constant 0.000000e+00 : f32
    %111 = vector.shape_cast %106 : vector<8x1xi1> to vector<8x1xi1>
    %112 = vector.broadcast %111 : vector<8x1xi1> to vector<8x32xi1>
    %113 = vector.broadcast %cst_44 : f32 to vector<8x32xf32>
    %114 = arith.select %112, %104, %113 : vector<8x32xi1>, vector<8x32xf32>
    %115 = arith.truncf %114 : vector<8x32xf32> to vector<8x32xbf16>
    %116 = arith.index_cast %68 : i32 to index
    %c0_45 = arith.constant 0 : index
    %c0_46 = arith.constant 0 : index
    %117 = vector.load %arg16[%116, %c0_45, %c0_46] : memref<8x8x32xbf16, #tpu.memory_space<vmem>>, vector<1x8x32xbf16>
    %118 = vector.shape_cast %117 : vector<1x8x32xbf16> to vector<8x32xbf16>
    %119 = vector.shape_cast %115 : vector<8x32xbf16> to vector<1x8x32xbf16>
    tpu.vector_store %arg16[%116, %c0_45, %c0_46], %119 {strides = array<i32>} : memref<8x8x32xbf16, #tpu.memory_space<vmem>>, vector<1x8x32xbf16>,
    %c2_i32 = arith.constant 2 : i32
    %c7_i32_47 = arith.constant 7 : i32
    %120 = arith.subi %c7_i32_47, %c2_i32 : i32
    %121 = arith.addi %15, %120 : i32
    %c0_48 = arith.constant 0 : index
    %c0_49 = arith.constant 0 : index
    %122 = vector.load %arg14[%c0_48, %c0_49] : memref<8x32xf32, #tpu.memory_space<vmem>>, vector<8x32xf32>
    %123 = arith.truncf %122 : vector<8x32xf32> to vector<8x32xbf16>
    %c0_50 = arith.constant 0 : index
    %c0_51 = arith.constant 0 : index
    %124 = vector.load %arg5[%c0_50, %c0_51] : memref<32x96xbf16, #tpu.memory_space<vmem>>, vector<32x96xbf16>
    %cst_52 = arith.constant dense<0.000000e+00> : vector<8x96xf32>
    %125 = tpu.matmul %123, %124, %cst_52 {dimension_numbers = #tpu.dot_dimension_numbers<[1], [0], [0], [1], [0, 0, 1, 1], [], []>} : vector<8x32xbf16>, vector<32x96xbf16>, vector<8x96xf32> -> vector<8x96xf32>
    %126 = vector.broadcast %13 : vector<1x96xf32> to vector<8x96xf32>
    %127 = arith.addf %125, %126 : vector<8x96xf32>
    %128 = arith.index_cast %120 : i32 to index
    %c0_53 = arith.constant 0 : index
    %c0_54 = arith.constant 0 : index
    %129 = vector.load %arg15[%128, %c0_53, %c0_54] : memref<8x8x96xf32, #tpu.memory_space<vmem>>, vector<1x8x96xf32>
    %130 = vector.shape_cast %129 : vector<1x8x96xf32> to vector<8x96xf32>
    %131 = vector.extract_strided_slice %130 {offsets = [0, 0], sizes = [8, 32], strides = [1, 1]} : vector<8x96xf32> to vector<8x32xf32>
    %132 = vector.extract_strided_slice %127 {offsets = [0, 0], sizes = [8, 32], strides = [1, 1]} : vector<8x96xf32> to vector<8x32xf32>
    %133 = arith.addf %131, %132 : vector<8x32xf32>
    %134 = arith.negf %133 : vector<8x32xf32>
    %135 = math.exp %134 : vector<8x32xf32>
    %cst_55 = arith.constant 1.000000e+00 : f32
    %136 = vector.broadcast %cst_55 : f32 to vector<8x32xf32>
    %137 = arith.addf %136, %135 : vector<8x32xf32>
    %138 = arith.divf %136, %137 : vector<8x32xf32>
    %139 = vector.extract_strided_slice %130 {offsets = [0, 32], sizes = [8, 32], strides = [1, 1]} : vector<8x96xf32> to vector<8x32xf32>
    %140 = vector.extract_strided_slice %127 {offsets = [0, 32], sizes = [8, 32], strides = [1, 1]} : vector<8x96xf32> to vector<8x32xf32>
    %141 = arith.addf %139, %140 : vector<8x32xf32>
    %142 = arith.negf %141 : vector<8x32xf32>
    %143 = math.exp %142 : vector<8x32xf32>
    %cst_56 = arith.constant 1.000000e+00 : f32
    %144 = vector.broadcast %cst_56 : f32 to vector<8x32xf32>
    %145 = arith.addf %144, %143 : vector<8x32xf32>
    %146 = arith.divf %144, %145 : vector<8x32xf32>
    %147 = vector.extract_strided_slice %130 {offsets = [0, 64], sizes = [8, 32], strides = [1, 1]} : vector<8x96xf32> to vector<8x32xf32>
    %148 = vector.extract_strided_slice %127 {offsets = [0, 64], sizes = [8, 32], strides = [1, 1]} : vector<8x96xf32> to vector<8x32xf32>
    %149 = arith.mulf %138, %148 : vector<8x32xf32>
    %150 = arith.addf %147, %149 : vector<8x32xf32>
    %151 = math.tanh %150 : vector<8x32xf32>
    %cst_57 = arith.constant 1.000000e+00 : f32
    %152 = vector.broadcast %cst_57 : f32 to vector<8x32xf32>
    %153 = arith.subf %152, %146 : vector<8x32xf32>
    %154 = arith.mulf %153, %151 : vector<8x32xf32>
    %155 = arith.mulf %146, %122 : vector<8x32xf32>
    %156 = arith.addf %154, %155 : vector<8x32xf32>
    %157 = vector.broadcast %121 : i32 to vector<8x1xi32>
    %158 = arith.cmpi sgt, %12, %157 : vector<8x1xi32>
    %159 = vector.shape_cast %158 : vector<8x1xi1> to vector<8x1xi1>
    %160 = vector.broadcast %159 : vector<8x1xi1> to vector<8x32xi1>
    %161 = arith.select %160, %156, %122 : vector<8x32xi1>, vector<8x32xf32>
    %c0_58 = arith.constant 0 : index
    %c0_59 = arith.constant 0 : index
    %162 = vector.load %arg14[%c0_58, %c0_59] : memref<8x32xf32, #tpu.memory_space<vmem>>, vector<8x32xf32>
    tpu.vector_store %arg14[%c0_58, %c0_59], %161 {strides = array<i32>} : memref<8x32xf32, #tpu.memory_space<vmem>>, vector<8x32xf32>,
    %cst_60 = arith.constant 0.000000e+00 : f32
    %163 = vector.shape_cast %158 : vector<8x1xi1> to vector<8x1xi1>
    %164 = vector.broadcast %163 : vector<8x1xi1> to vector<8x32xi1>
    %165 = vector.broadcast %cst_60 : f32 to vector<8x32xf32>
    %166 = arith.select %164, %156, %165 : vector<8x32xi1>, vector<8x32xf32>
    %167 = arith.truncf %166 : vector<8x32xf32> to vector<8x32xbf16>
    %168 = arith.index_cast %120 : i32 to index
    %c0_61 = arith.constant 0 : index
    %c0_62 = arith.constant 0 : index
    %169 = vector.load %arg16[%168, %c0_61, %c0_62] : memref<8x8x32xbf16, #tpu.memory_space<vmem>>, vector<1x8x32xbf16>
    %170 = vector.shape_cast %169 : vector<1x8x32xbf16> to vector<8x32xbf16>
    %171 = vector.shape_cast %167 : vector<8x32xbf16> to vector<1x8x32xbf16>
    tpu.vector_store %arg16[%168, %c0_61, %c0_62], %171 {strides = array<i32>} : memref<8x8x32xbf16, #tpu.memory_space<vmem>>, vector<1x8x32xbf16>,
    %c3_i32 = arith.constant 3 : i32
    %c7_i32_63 = arith.constant 7 : i32
    %172 = arith.subi %c7_i32_63, %c3_i32 : i32
    %173 = arith.addi %15, %172 : i32
    %c0_64 = arith.constant 0 : index
    %c0_65 = arith.constant 0 : index
    %174 = vector.load %arg14[%c0_64, %c0_65] : memref<8x32xf32, #tpu.memory_space<vmem>>, vector<8x32xf32>
    %175 = arith.truncf %174 : vector<8x32xf32> to vector<8x32xbf16>
    %c0_66 = arith.constant 0 : index
    %c0_67 = arith.constant 0 : index
    %176 = vector.load %arg5[%c0_66, %c0_67] : memref<32x96xbf16, #tpu.memory_space<vmem>>, vector<32x96xbf16>
    %cst_68 = arith.constant dense<0.000000e+00> : vector<8x96xf32>
    %177 = tpu.matmul %175, %176, %cst_68 {dimension_numbers = #tpu.dot_dimension_numbers<[1], [0], [0], [1], [0, 0, 1, 1], [], []>} : vector<8x32xbf16>, vector<32x96xbf16>, vector<8x96xf32> -> vector<8x96xf32>
    %178 = vector.broadcast %13 : vector<1x96xf32> to vector<8x96xf32>
    %179 = arith.addf %177, %178 : vector<8x96xf32>
    %180 = arith.index_cast %172 : i32 to index
    %c0_69 = arith.constant 0 : index
    %c0_70 = arith.constant 0 : index
    %181 = vector.load %arg15[%180, %c0_69, %c0_70] : memref<8x8x96xf32, #tpu.memory_space<vmem>>, vector<1x8x96xf32>
    %182 = vector.shape_cast %181 : vector<1x8x96xf32> to vector<8x96xf32>
    %183 = vector.extract_strided_slice %182 {offsets = [0, 0], sizes = [8, 32], strides = [1, 1]} : vector<8x96xf32> to vector<8x32xf32>
    %184 = vector.extract_strided_slice %179 {offsets = [0, 0], sizes = [8, 32], strides = [1, 1]} : vector<8x96xf32> to vector<8x32xf32>
    %185 = arith.addf %183, %184 : vector<8x32xf32>
    %186 = arith.negf %185 : vector<8x32xf32>
    %187 = math.exp %186 : vector<8x32xf32>
    %cst_71 = arith.constant 1.000000e+00 : f32
    %188 = vector.broadcast %cst_71 : f32 to vector<8x32xf32>
    %189 = arith.addf %188, %187 : vector<8x32xf32>
    %190 = arith.divf %188, %189 : vector<8x32xf32>
    %191 = vector.extract_strided_slice %182 {offsets = [0, 32], sizes = [8, 32], strides = [1, 1]} : vector<8x96xf32> to vector<8x32xf32>
    %192 = vector.extract_strided_slice %179 {offsets = [0, 32], sizes = [8, 32], strides = [1, 1]} : vector<8x96xf32> to vector<8x32xf32>
    %193 = arith.addf %191, %192 : vector<8x32xf32>
    %194 = arith.negf %193 : vector<8x32xf32>
    %195 = math.exp %194 : vector<8x32xf32>
    %cst_72 = arith.constant 1.000000e+00 : f32
    %196 = vector.broadcast %cst_72 : f32 to vector<8x32xf32>
    %197 = arith.addf %196, %195 : vector<8x32xf32>
    %198 = arith.divf %196, %197 : vector<8x32xf32>
    %199 = vector.extract_strided_slice %182 {offsets = [0, 64], sizes = [8, 32], strides = [1, 1]} : vector<8x96xf32> to vector<8x32xf32>
    %200 = vector.extract_strided_slice %179 {offsets = [0, 64], sizes = [8, 32], strides = [1, 1]} : vector<8x96xf32> to vector<8x32xf32>
    %201 = arith.mulf %190, %200 : vector<8x32xf32>
    %202 = arith.addf %199, %201 : vector<8x32xf32>
    %203 = math.tanh %202 : vector<8x32xf32>
    %cst_73 = arith.constant 1.000000e+00 : f32
    %204 = vector.broadcast %cst_73 : f32 to vector<8x32xf32>
    %205 = arith.subf %204, %198 : vector<8x32xf32>
    %206 = arith.mulf %205, %203 : vector<8x32xf32>
    %207 = arith.mulf %198, %174 : vector<8x32xf32>
    %208 = arith.addf %206, %207 : vector<8x32xf32>
    %209 = vector.broadcast %173 : i32 to vector<8x1xi32>
    %210 = arith.cmpi sgt, %12, %209 : vector<8x1xi32>
    %211 = vector.shape_cast %210 : vector<8x1xi1> to vector<8x1xi1>
    %212 = vector.broadcast %211 : vector<8x1xi1> to vector<8x32xi1>
    %213 = arith.select %212, %208, %174 : vector<8x32xi1>, vector<8x32xf32>
    %c0_74 = arith.constant 0 : index
    %c0_75 = arith.constant 0 : index
    %214 = vector.load %arg14[%c0_74, %c0_75] : memref<8x32xf32, #tpu.memory_space<vmem>>, vector<8x32xf32>
    tpu.vector_store %arg14[%c0_74, %c0_75], %213 {strides = array<i32>} : memref<8x32xf32, #tpu.memory_space<vmem>>, vector<8x32xf32>,
    %cst_76 = arith.constant 0.000000e+00 : f32
    %215 = vector.shape_cast %210 : vector<8x1xi1> to vector<8x1xi1>
    %216 = vector.broadcast %215 : vector<8x1xi1> to vector<8x32xi1>
    %217 = vector.broadcast %cst_76 : f32 to vector<8x32xf32>
    %218 = arith.select %216, %208, %217 : vector<8x32xi1>, vector<8x32xf32>
    %219 = arith.truncf %218 : vector<8x32xf32> to vector<8x32xbf16>
    %220 = arith.index_cast %172 : i32 to index
    %c0_77 = arith.constant 0 : index
    %c0_78 = arith.constant 0 : index
    %221 = vector.load %arg16[%220, %c0_77, %c0_78] : memref<8x8x32xbf16, #tpu.memory_space<vmem>>, vector<1x8x32xbf16>
    %222 = vector.shape_cast %221 : vector<1x8x32xbf16> to vector<8x32xbf16>
    %223 = vector.shape_cast %219 : vector<8x32xbf16> to vector<1x8x32xbf16>
    tpu.vector_store %arg16[%220, %c0_77, %c0_78], %223 {strides = array<i32>} : memref<8x8x32xbf16, #tpu.memory_space<vmem>>, vector<1x8x32xbf16>,
    %c4_i32 = arith.constant 4 : i32
    %c7_i32_79 = arith.constant 7 : i32
    %224 = arith.subi %c7_i32_79, %c4_i32 : i32
    %225 = arith.addi %15, %224 : i32
    %c0_80 = arith.constant 0 : index
    %c0_81 = arith.constant 0 : index
    %226 = vector.load %arg14[%c0_80, %c0_81] : memref<8x32xf32, #tpu.memory_space<vmem>>, vector<8x32xf32>
    %227 = arith.truncf %226 : vector<8x32xf32> to vector<8x32xbf16>
    %c0_82 = arith.constant 0 : index
    %c0_83 = arith.constant 0 : index
    %228 = vector.load %arg5[%c0_82, %c0_83] : memref<32x96xbf16, #tpu.memory_space<vmem>>, vector<32x96xbf16>
    %cst_84 = arith.constant dense<0.000000e+00> : vector<8x96xf32>
    %229 = tpu.matmul %227, %228, %cst_84 {dimension_numbers = #tpu.dot_dimension_numbers<[1], [0], [0], [1], [0, 0, 1, 1], [], []>} : vector<8x32xbf16>, vector<32x96xbf16>, vector<8x96xf32> -> vector<8x96xf32>
    %230 = vector.broadcast %13 : vector<1x96xf32> to vector<8x96xf32>
    %231 = arith.addf %229, %230 : vector<8x96xf32>
    %232 = arith.index_cast %224 : i32 to index
    %c0_85 = arith.constant 0 : index
    %c0_86 = arith.constant 0 : index
    %233 = vector.load %arg15[%232, %c0_85, %c0_86] : memref<8x8x96xf32, #tpu.memory_space<vmem>>, vector<1x8x96xf32>
    %234 = vector.shape_cast %233 : vector<1x8x96xf32> to vector<8x96xf32>
    %235 = vector.extract_strided_slice %234 {offsets = [0, 0], sizes = [8, 32], strides = [1, 1]} : vector<8x96xf32> to vector<8x32xf32>
    %236 = vector.extract_strided_slice %231 {offsets = [0, 0], sizes = [8, 32], strides = [1, 1]} : vector<8x96xf32> to vector<8x32xf32>
    %237 = arith.addf %235, %236 : vector<8x32xf32>
    %238 = arith.negf %237 : vector<8x32xf32>
    %239 = math.exp %238 : vector<8x32xf32>
    %cst_87 = arith.constant 1.000000e+00 : f32
    %240 = vector.broadcast %cst_87 : f32 to vector<8x32xf32>
    %241 = arith.addf %240, %239 : vector<8x32xf32>
    %242 = arith.divf %240, %241 : vector<8x32xf32>
    %243 = vector.extract_strided_slice %234 {offsets = [0, 32], sizes = [8, 32], strides = [1, 1]} : vector<8x96xf32> to vector<8x32xf32>
    %244 = vector.extract_strided_slice %231 {offsets = [0, 32], sizes = [8, 32], strides = [1, 1]} : vector<8x96xf32> to vector<8x32xf32>
    %245 = arith.addf %243, %244 : vector<8x32xf32>
    %246 = arith.negf %245 : vector<8x32xf32>
    %247 = math.exp %246 : vector<8x32xf32>
    %cst_88 = arith.constant 1.000000e+00 : f32
    %248 = vector.broadcast %cst_88 : f32 to vector<8x32xf32>
    %249 = arith.addf %248, %247 : vector<8x32xf32>
    %250 = arith.divf %248, %249 : vector<8x32xf32>
    %251 = vector.extract_strided_slice %234 {offsets = [0, 64], sizes = [8, 32], strides = [1, 1]} : vector<8x96xf32> to vector<8x32xf32>
    %252 = vector.extract_strided_slice %231 {offsets = [0, 64], sizes = [8, 32], strides = [1, 1]} : vector<8x96xf32> to vector<8x32xf32>
    %253 = arith.mulf %242, %252 : vector<8x32xf32>
    %254 = arith.addf %251, %253 : vector<8x32xf32>
    %255 = math.tanh %254 : vector<8x32xf32>
    %cst_89 = arith.constant 1.000000e+00 : f32
    %256 = vector.broadcast %cst_89 : f32 to vector<8x32xf32>
    %257 = arith.subf %256, %250 : vector<8x32xf32>
    %258 = arith.mulf %257, %255 : vector<8x32xf32>
    %259 = arith.mulf %250, %226 : vector<8x32xf32>
    %260 = arith.addf %258, %259 : vector<8x32xf32>
    %261 = vector.broadcast %225 : i32 to vector<8x1xi32>
    %262 = arith.cmpi sgt, %12, %261 : vector<8x1xi32>
    %263 = vector.shape_cast %262 : vector<8x1xi1> to vector<8x1xi1>
    %264 = vector.broadcast %263 : vector<8x1xi1> to vector<8x32xi1>
    %265 = arith.select %264, %260, %226 : vector<8x32xi1>, vector<8x32xf32>
    %c0_90 = arith.constant 0 : index
    %c0_91 = arith.constant 0 : index
    %266 = vector.load %arg14[%c0_90, %c0_91] : memref<8x32xf32, #tpu.memory_space<vmem>>, vector<8x32xf32>
    tpu.vector_store %arg14[%c0_90, %c0_91], %265 {strides = array<i32>} : memref<8x32xf32, #tpu.memory_space<vmem>>, vector<8x32xf32>,
    %cst_92 = arith.constant 0.000000e+00 : f32
    %267 = vector.shape_cast %262 : vector<8x1xi1> to vector<8x1xi1>
    %268 = vector.broadcast %267 : vector<8x1xi1> to vector<8x32xi1>
    %269 = vector.broadcast %cst_92 : f32 to vector<8x32xf32>
    %270 = arith.select %268, %260, %269 : vector<8x32xi1>, vector<8x32xf32>
    %271 = arith.truncf %270 : vector<8x32xf32> to vector<8x32xbf16>
    %272 = arith.index_cast %224 : i32 to index
    %c0_93 = arith.constant 0 : index
    %c0_94 = arith.constant 0 : index
    %273 = vector.load %arg16[%272, %c0_93, %c0_94] : memref<8x8x32xbf16, #tpu.memory_space<vmem>>, vector<1x8x32xbf16>
    %274 = vector.shape_cast %273 : vector<1x8x32xbf16> to vector<8x32xbf16>
    %275 = vector.shape_cast %271 : vector<8x32xbf16> to vector<1x8x32xbf16>
    tpu.vector_store %arg16[%272, %c0_93, %c0_94], %275 {strides = array<i32>} : memref<8x8x32xbf16, #tpu.memory_space<vmem>>, vector<1x8x32xbf16>,
    %c5_i32 = arith.constant 5 : i32
    %c7_i32_95 = arith.constant 7 : i32
    %276 = arith.subi %c7_i32_95, %c5_i32 : i32
    %277 = arith.addi %15, %276 : i32
    %c0_96 = arith.constant 0 : index
    %c0_97 = arith.constant 0 : index
    %278 = vector.load %arg14[%c0_96, %c0_97] : memref<8x32xf32, #tpu.memory_space<vmem>>, vector<8x32xf32>
    %279 = arith.truncf %278 : vector<8x32xf32> to vector<8x32xbf16>
    %c0_98 = arith.constant 0 : index
    %c0_99 = arith.constant 0 : index
    %280 = vector.load %arg5[%c0_98, %c0_99] : memref<32x96xbf16, #tpu.memory_space<vmem>>, vector<32x96xbf16>
    %cst_100 = arith.constant dense<0.000000e+00> : vector<8x96xf32>
    %281 = tpu.matmul %279, %280, %cst_100 {dimension_numbers = #tpu.dot_dimension_numbers<[1], [0], [0], [1], [0, 0, 1, 1], [], []>} : vector<8x32xbf16>, vector<32x96xbf16>, vector<8x96xf32> -> vector<8x96xf32>
    %282 = vector.broadcast %13 : vector<1x96xf32> to vector<8x96xf32>
    %283 = arith.addf %281, %282 : vector<8x96xf32>
    %284 = arith.index_cast %276 : i32 to index
    %c0_101 = arith.constant 0 : index
    %c0_102 = arith.constant 0 : index
    %285 = vector.load %arg15[%284, %c0_101, %c0_102] : memref<8x8x96xf32, #tpu.memory_space<vmem>>, vector<1x8x96xf32>
    %286 = vector.shape_cast %285 : vector<1x8x96xf32> to vector<8x96xf32>
    %287 = vector.extract_strided_slice %286 {offsets = [0, 0], sizes = [8, 32], strides = [1, 1]} : vector<8x96xf32> to vector<8x32xf32>
    %288 = vector.extract_strided_slice %283 {offsets = [0, 0], sizes = [8, 32], strides = [1, 1]} : vector<8x96xf32> to vector<8x32xf32>
    %289 = arith.addf %287, %288 : vector<8x32xf32>
    %290 = arith.negf %289 : vector<8x32xf32>
    %291 = math.exp %290 : vector<8x32xf32>
    %cst_103 = arith.constant 1.000000e+00 : f32
    %292 = vector.broadcast %cst_103 : f32 to vector<8x32xf32>
    %293 = arith.addf %292, %291 : vector<8x32xf32>
    %294 = arith.divf %292, %293 : vector<8x32xf32>
    %295 = vector.extract_strided_slice %286 {offsets = [0, 32], sizes = [8, 32], strides = [1, 1]} : vector<8x96xf32> to vector<8x32xf32>
    %296 = vector.extract_strided_slice %283 {offsets = [0, 32], sizes = [8, 32], strides = [1, 1]} : vector<8x96xf32> to vector<8x32xf32>
    %297 = arith.addf %295, %296 : vector<8x32xf32>
    %298 = arith.negf %297 : vector<8x32xf32>
    %299 = math.exp %298 : vector<8x32xf32>
    %cst_104 = arith.constant 1.000000e+00 : f32
    %300 = vector.broadcast %cst_104 : f32 to vector<8x32xf32>
    %301 = arith.addf %300, %299 : vector<8x32xf32>
    %302 = arith.divf %300, %301 : vector<8x32xf32>
    %303 = vector.extract_strided_slice %286 {offsets = [0, 64], sizes = [8, 32], strides = [1, 1]} : vector<8x96xf32> to vector<8x32xf32>
    %304 = vector.extract_strided_slice %283 {offsets = [0, 64], sizes = [8, 32], strides = [1, 1]} : vector<8x96xf32> to vector<8x32xf32>
    %305 = arith.mulf %294, %304 : vector<8x32xf32>
    %306 = arith.addf %303, %305 : vector<8x32xf32>
    %307 = math.tanh %306 : vector<8x32xf32>
    %cst_105 = arith.constant 1.000000e+00 : f32
    %308 = vector.broadcast %cst_105 : f32 to vector<8x32xf32>
    %309 = arith.subf %308, %302 : vector<8x32xf32>
    %310 = arith.mulf %309, %307 : vector<8x32xf32>
    %311 = arith.mulf %302, %278 : vector<8x32xf32>
    %312 = arith.addf %310, %311 : vector<8x32xf32>
    %313 = vector.broadcast %277 : i32 to vector<8x1xi32>
    %314 = arith.cmpi sgt, %12, %313 : vector<8x1xi32>
    %315 = vector.shape_cast %314 : vector<8x1xi1> to vector<8x1xi1>
    %316 = vector.broadcast %315 : vector<8x1xi1> to vector<8x32xi1>
    %317 = arith.select %316, %312, %278 : vector<8x32xi1>, vector<8x32xf32>
    %c0_106 = arith.constant 0 : index
    %c0_107 = arith.constant 0 : index
    %318 = vector.load %arg14[%c0_106, %c0_107] : memref<8x32xf32, #tpu.memory_space<vmem>>, vector<8x32xf32>
    tpu.vector_store %arg14[%c0_106, %c0_107], %317 {strides = array<i32>} : memref<8x32xf32, #tpu.memory_space<vmem>>, vector<8x32xf32>,
    %cst_108 = arith.constant 0.000000e+00 : f32
    %319 = vector.shape_cast %314 : vector<8x1xi1> to vector<8x1xi1>
    %320 = vector.broadcast %319 : vector<8x1xi1> to vector<8x32xi1>
    %321 = vector.broadcast %cst_108 : f32 to vector<8x32xf32>
    %322 = arith.select %320, %312, %321 : vector<8x32xi1>, vector<8x32xf32>
    %323 = arith.truncf %322 : vector<8x32xf32> to vector<8x32xbf16>
    %324 = arith.index_cast %276 : i32 to index
    %c0_109 = arith.constant 0 : index
    %c0_110 = arith.constant 0 : index
    %325 = vector.load %arg16[%324, %c0_109, %c0_110] : memref<8x8x32xbf16, #tpu.memory_space<vmem>>, vector<1x8x32xbf16>
    %326 = vector.shape_cast %325 : vector<1x8x32xbf16> to vector<8x32xbf16>
    %327 = vector.shape_cast %323 : vector<8x32xbf16> to vector<1x8x32xbf16>
    tpu.vector_store %arg16[%324, %c0_109, %c0_110], %327 {strides = array<i32>} : memref<8x8x32xbf16, #tpu.memory_space<vmem>>, vector<1x8x32xbf16>,
    %c6_i32 = arith.constant 6 : i32
    %c7_i32_111 = arith.constant 7 : i32
    %328 = arith.subi %c7_i32_111, %c6_i32 : i32
    %329 = arith.addi %15, %328 : i32
    %c0_112 = arith.constant 0 : index
    %c0_113 = arith.constant 0 : index
    %330 = vector.load %arg14[%c0_112, %c0_113] : memref<8x32xf32, #tpu.memory_space<vmem>>, vector<8x32xf32>
    %331 = arith.truncf %330 : vector<8x32xf32> to vector<8x32xbf16>
    %c0_114 = arith.constant 0 : index
    %c0_115 = arith.constant 0 : index
    %332 = vector.load %arg5[%c0_114, %c0_115] : memref<32x96xbf16, #tpu.memory_space<vmem>>, vector<32x96xbf16>
    %cst_116 = arith.constant dense<0.000000e+00> : vector<8x96xf32>
    %333 = tpu.matmul %331, %332, %cst_116 {dimension_numbers = #tpu.dot_dimension_numbers<[1], [0], [0], [1], [0, 0, 1, 1], [], []>} : vector<8x32xbf16>, vector<32x96xbf16>, vector<8x96xf32> -> vector<8x96xf32>
    %334 = vector.broadcast %13 : vector<1x96xf32> to vector<8x96xf32>
    %335 = arith.addf %333, %334 : vector<8x96xf32>
    %336 = arith.index_cast %328 : i32 to index
    %c0_117 = arith.constant 0 : index
    %c0_118 = arith.constant 0 : index
    %337 = vector.load %arg15[%336, %c0_117, %c0_118] : memref<8x8x96xf32, #tpu.memory_space<vmem>>, vector<1x8x96xf32>
    %338 = vector.shape_cast %337 : vector<1x8x96xf32> to vector<8x96xf32>
    %339 = vector.extract_strided_slice %338 {offsets = [0, 0], sizes = [8, 32], strides = [1, 1]} : vector<8x96xf32> to vector<8x32xf32>
    %340 = vector.extract_strided_slice %335 {offsets = [0, 0], sizes = [8, 32], strides = [1, 1]} : vector<8x96xf32> to vector<8x32xf32>
    %341 = arith.addf %339, %340 : vector<8x32xf32>
    %342 = arith.negf %341 : vector<8x32xf32>
    %343 = math.exp %342 : vector<8x32xf32>
    %cst_119 = arith.constant 1.000000e+00 : f32
    %344 = vector.broadcast %cst_119 : f32 to vector<8x32xf32>
    %345 = arith.addf %344, %343 : vector<8x32xf32>
    %346 = arith.divf %344, %345 : vector<8x32xf32>
    %347 = vector.extract_strided_slice %338 {offsets = [0, 32], sizes = [8, 32], strides = [1, 1]} : vector<8x96xf32> to vector<8x32xf32>
    %348 = vector.extract_strided_slice %335 {offsets = [0, 32], sizes = [8, 32], strides = [1, 1]} : vector<8x96xf32> to vector<8x32xf32>
    %349 = arith.addf %347, %348 : vector<8x32xf32>
    %350 = arith.negf %349 : vector<8x32xf32>
    %351 = math.exp %350 : vector<8x32xf32>
    %cst_120 = arith.constant 1.000000e+00 : f32
    %352 = vector.broadcast %cst_120 : f32 to vector<8x32xf32>
    %353 = arith.addf %352, %351 : vector<8x32xf32>
    %354 = arith.divf %352, %353 : vector<8x32xf32>
    %355 = vector.extract_strided_slice %338 {offsets = [0, 64], sizes = [8, 32], strides = [1, 1]} : vector<8x96xf32> to vector<8x32xf32>
    %356 = vector.extract_strided_slice %335 {offsets = [0, 64], sizes = [8, 32], strides = [1, 1]} : vector<8x96xf32> to vector<8x32xf32>
    %357 = arith.mulf %346, %356 : vector<8x32xf32>
    %358 = arith.addf %355, %357 : vector<8x32xf32>
    %359 = math.tanh %358 : vector<8x32xf32>
    %cst_121 = arith.constant 1.000000e+00 : f32
    %360 = vector.broadcast %cst_121 : f32 to vector<8x32xf32>
    %361 = arith.subf %360, %354 : vector<8x32xf32>
    %362 = arith.mulf %361, %359 : vector<8x32xf32>
    %363 = arith.mulf %354, %330 : vector<8x32xf32>
    %364 = arith.addf %362, %363 : vector<8x32xf32>
    %365 = vector.broadcast %329 : i32 to vector<8x1xi32>
    %366 = arith.cmpi sgt, %12, %365 : vector<8x1xi32>
    %367 = vector.shape_cast %366 : vector<8x1xi1> to vector<8x1xi1>
    %368 = vector.broadcast %367 : vector<8x1xi1> to vector<8x32xi1>
    %369 = arith.select %368, %364, %330 : vector<8x32xi1>, vector<8x32xf32>
    %c0_122 = arith.constant 0 : index
    %c0_123 = arith.constant 0 : index
    %370 = vector.load %arg14[%c0_122, %c0_123] : memref<8x32xf32, #tpu.memory_space<vmem>>, vector<8x32xf32>
    tpu.vector_store %arg14[%c0_122, %c0_123], %369 {strides = array<i32>} : memref<8x32xf32, #tpu.memory_space<vmem>>, vector<8x32xf32>,
    %cst_124 = arith.constant 0.000000e+00 : f32
    %371 = vector.shape_cast %366 : vector<8x1xi1> to vector<8x1xi1>
    %372 = vector.broadcast %371 : vector<8x1xi1> to vector<8x32xi1>
    %373 = vector.broadcast %cst_124 : f32 to vector<8x32xf32>
    %374 = arith.select %372, %364, %373 : vector<8x32xi1>, vector<8x32xf32>
    %375 = arith.truncf %374 : vector<8x32xf32> to vector<8x32xbf16>
    %376 = arith.index_cast %328 : i32 to index
    %c0_125 = arith.constant 0 : index
    %c0_126 = arith.constant 0 : index
    %377 = vector.load %arg16[%376, %c0_125, %c0_126] : memref<8x8x32xbf16, #tpu.memory_space<vmem>>, vector<1x8x32xbf16>
    %378 = vector.shape_cast %377 : vector<1x8x32xbf16> to vector<8x32xbf16>
    %379 = vector.shape_cast %375 : vector<8x32xbf16> to vector<1x8x32xbf16>
    tpu.vector_store %arg16[%376, %c0_125, %c0_126], %379 {strides = array<i32>} : memref<8x8x32xbf16, #tpu.memory_space<vmem>>, vector<1x8x32xbf16>,
    %c7_i32_127 = arith.constant 7 : i32
    %c7_i32_128 = arith.constant 7 : i32
    %380 = arith.subi %c7_i32_128, %c7_i32_127 : i32
    %381 = arith.addi %15, %380 : i32
    %c0_129 = arith.constant 0 : index
    %c0_130 = arith.constant 0 : index
    %382 = vector.load %arg14[%c0_129, %c0_130] : memref<8x32xf32, #tpu.memory_space<vmem>>, vector<8x32xf32>
    %383 = arith.truncf %382 : vector<8x32xf32> to vector<8x32xbf16>
    %c0_131 = arith.constant 0 : index
    %c0_132 = arith.constant 0 : index
    %384 = vector.load %arg5[%c0_131, %c0_132] : memref<32x96xbf16, #tpu.memory_space<vmem>>, vector<32x96xbf16>
    %cst_133 = arith.constant dense<0.000000e+00> : vector<8x96xf32>
    %385 = tpu.matmul %383, %384, %cst_133 {dimension_numbers = #tpu.dot_dimension_numbers<[1], [0], [0], [1], [0, 0, 1, 1], [], []>} : vector<8x32xbf16>, vector<32x96xbf16>, vector<8x96xf32> -> vector<8x96xf32>
    %386 = vector.broadcast %13 : vector<1x96xf32> to vector<8x96xf32>
    %387 = arith.addf %385, %386 : vector<8x96xf32>
    %388 = arith.index_cast %380 : i32 to index
    %c0_134 = arith.constant 0 : index
    %c0_135 = arith.constant 0 : index
    %389 = vector.load %arg15[%388, %c0_134, %c0_135] : memref<8x8x96xf32, #tpu.memory_space<vmem>>, vector<1x8x96xf32>
    %390 = vector.shape_cast %389 : vector<1x8x96xf32> to vector<8x96xf32>
    %391 = vector.extract_strided_slice %390 {offsets = [0, 0], sizes = [8, 32], strides = [1, 1]} : vector<8x96xf32> to vector<8x32xf32>
    %392 = vector.extract_strided_slice %387 {offsets = [0, 0], sizes = [8, 32], strides = [1, 1]} : vector<8x96xf32> to vector<8x32xf32>
    %393 = arith.addf %391, %392 : vector<8x32xf32>
    %394 = arith.negf %393 : vector<8x32xf32>
    %395 = math.exp %394 : vector<8x32xf32>
    %cst_136 = arith.constant 1.000000e+00 : f32
    %396 = vector.broadcast %cst_136 : f32 to vector<8x32xf32>
    %397 = arith.addf %396, %395 : vector<8x32xf32>
    %398 = arith.divf %396, %397 : vector<8x32xf32>
    %399 = vector.extract_strided_slice %390 {offsets = [0, 32], sizes = [8, 32], strides = [1, 1]} : vector<8x96xf32> to vector<8x32xf32>
    %400 = vector.extract_strided_slice %387 {offsets = [0, 32], sizes = [8, 32], strides = [1, 1]} : vector<8x96xf32> to vector<8x32xf32>
    %401 = arith.addf %399, %400 : vector<8x32xf32>
    %402 = arith.negf %401 : vector<8x32xf32>
    %403 = math.exp %402 : vector<8x32xf32>
    %cst_137 = arith.constant 1.000000e+00 : f32
    %404 = vector.broadcast %cst_137 : f32 to vector<8x32xf32>
    %405 = arith.addf %404, %403 : vector<8x32xf32>
    %406 = arith.divf %404, %405 : vector<8x32xf32>
    %407 = vector.extract_strided_slice %390 {offsets = [0, 64], sizes = [8, 32], strides = [1, 1]} : vector<8x96xf32> to vector<8x32xf32>
    %408 = vector.extract_strided_slice %387 {offsets = [0, 64], sizes = [8, 32], strides = [1, 1]} : vector<8x96xf32> to vector<8x32xf32>
    %409 = arith.mulf %398, %408 : vector<8x32xf32>
    %410 = arith.addf %407, %409 : vector<8x32xf32>
    %411 = math.tanh %410 : vector<8x32xf32>
    %cst_138 = arith.constant 1.000000e+00 : f32
    %412 = vector.broadcast %cst_138 : f32 to vector<8x32xf32>
    %413 = arith.subf %412, %406 : vector<8x32xf32>
    %414 = arith.mulf %413, %411 : vector<8x32xf32>
    %415 = arith.mulf %406, %382 : vector<8x32xf32>
    %416 = arith.addf %414, %415 : vector<8x32xf32>
    %417 = vector.broadcast %381 : i32 to vector<8x1xi32>
    %418 = arith.cmpi sgt, %12, %417 : vector<8x1xi32>
    %419 = vector.shape_cast %418 : vector<8x1xi1> to vector<8x1xi1>
    %420 = vector.broadcast %419 : vector<8x1xi1> to vector<8x32xi1>
    %421 = arith.select %420, %416, %382 : vector<8x32xi1>, vector<8x32xf32>
    %c0_139 = arith.constant 0 : index
    %c0_140 = arith.constant 0 : index
    %422 = vector.load %arg14[%c0_139, %c0_140] : memref<8x32xf32, #tpu.memory_space<vmem>>, vector<8x32xf32>
    tpu.vector_store %arg14[%c0_139, %c0_140], %421 {strides = array<i32>} : memref<8x32xf32, #tpu.memory_space<vmem>>, vector<8x32xf32>,
    %cst_141 = arith.constant 0.000000e+00 : f32
    %423 = vector.shape_cast %418 : vector<8x1xi1> to vector<8x1xi1>
    %424 = vector.broadcast %423 : vector<8x1xi1> to vector<8x32xi1>
    %425 = vector.broadcast %cst_141 : f32 to vector<8x32xf32>
    %426 = arith.select %424, %416, %425 : vector<8x32xi1>, vector<8x32xf32>
    %427 = arith.truncf %426 : vector<8x32xf32> to vector<8x32xbf16>
    %428 = arith.index_cast %380 : i32 to index
    %c0_142 = arith.constant 0 : index
    %c0_143 = arith.constant 0 : index
    %429 = vector.load %arg16[%428, %c0_142, %c0_143] : memref<8x8x32xbf16, #tpu.memory_space<vmem>>, vector<1x8x32xbf16>
    %430 = vector.shape_cast %429 : vector<1x8x32xbf16> to vector<8x32xbf16>
    %431 = vector.shape_cast %427 : vector<8x32xbf16> to vector<1x8x32xbf16>
    tpu.vector_store %arg16[%428, %c0_142, %c0_143], %431 {strides = array<i32>} : memref<8x8x32xbf16, #tpu.memory_space<vmem>>, vector<1x8x32xbf16>,
    %c8_i32_144 = arith.constant 8 : i32
    %c0_145 = arith.constant 0 : index
    %c0_146 = arith.constant 0 : index
    %432 = vector.load %arg14[%c0_145, %c0_146] : memref<8x32xf32, #tpu.memory_space<vmem>>, vector<8x32xf32>
    %c0_147 = arith.constant 0 : index
    %c0_148 = arith.constant 0 : index
    %433 = vector.load %arg13[%c0_147, %c0_148] : memref<8x32xf32, #tpu.memory_space<vmem>>, vector<8x32xf32>
    tpu.vector_store %arg13[%c0_147, %c0_148], %432 {strides = array<i32>} : memref<8x32xf32, #tpu.memory_space<vmem>>, vector<8x32xf32>,
    %c0_149 = arith.constant 0 : index
    %c0_150 = arith.constant 0 : index
    %c0_151 = arith.constant 0 : index
    %434 = vector.load %arg8[%c0_149, %c0_150, %c0_151] : memref<8x8x32xbf16, #tpu.memory_space<vmem>>, vector<8x8x32xbf16>
    %435 = vector.shape_cast %434 : vector<8x8x32xbf16> to vector<64x32xbf16>
    %c0_152 = arith.constant 0 : index
    %c0_153 = arith.constant 0 : index
    %c0_154 = arith.constant 0 : index
    %436 = vector.load %arg16[%c0_152, %c0_153, %c0_154] : memref<8x8x32xbf16, #tpu.memory_space<vmem>>, vector<8x8x32xbf16>
    %437 = vector.shape_cast %436 : vector<8x8x32xbf16> to vector<64x32xbf16>
    %c0_155 = arith.constant 0 : index
    %c0_156 = arith.constant 0 : index
    %438 = vector.load %arg9[%c0_155, %c0_156] : memref<32x32xbf16, #tpu.memory_space<vmem>>, vector<32x32xbf16>
    %cst_157 = arith.constant dense<0.000000e+00> : vector<64x32xf32>
    %439 = tpu.matmul %435, %438, %cst_157 {dimension_numbers = #tpu.dot_dimension_numbers<[1], [0], [0], [1], [0, 0, 1, 1], [], []>} : vector<64x32xbf16>, vector<32x32xbf16>, vector<64x32xf32> -> vector<64x32xf32>
    %c0_158 = arith.constant 0 : index
    %c0_159 = arith.constant 0 : index
    %440 = vector.load %arg10[%c0_158, %c0_159] : memref<32x32xbf16, #tpu.memory_space<vmem>>, vector<32x32xbf16>
    %cst_160 = arith.constant dense<0.000000e+00> : vector<64x32xf32>
    %441 = tpu.matmul %437, %440, %cst_160 {dimension_numbers = #tpu.dot_dimension_numbers<[1], [0], [0], [1], [0, 0, 1, 1], [], []>} : vector<64x32xbf16>, vector<32x32xbf16>, vector<64x32xf32> -> vector<64x32xf32>
    %442 = arith.addf %439, %441 : vector<64x32xf32>
    %c0_161 = arith.constant 0 : index
    %c0_162 = arith.constant 0 : index
    %443 = vector.load %arg11[%c0_161, %c0_162] : memref<1x32xf32, #tpu.memory_space<vmem>>, vector<1x32xf32>
    %444 = vector.broadcast %443 : vector<1x32xf32> to vector<64x32xf32>
    %445 = arith.addf %442, %444 : vector<64x32xf32>
    %446 = vector.shape_cast %445 : vector<64x32xf32> to vector<8x8x32xf32>
    %c0_163 = arith.constant 0 : index
    %c0_164 = arith.constant 0 : index
    %c0_165 = arith.constant 0 : index
    %447 = vector.load %arg12[%c0_163, %c0_164, %c0_165] : memref<8x8x32xf32, #tpu.memory_space<vmem>>, vector<8x8x32xf32>
    tpu.vector_store %arg12[%c0_163, %c0_164, %c0_165], %446 {strides = array<i32>} : memref<8x8x32xf32, #tpu.memory_space<vmem>>, vector<8x8x32xf32>,
    return
  }
  func.func @transform_0(%arg0: i32, %arg1: i32) -> (i32, i32, i32) {
    %c0_i32 = arith.constant 0 : i32
    %0 = arith.subi %c0_i32, %arg1 : i32
    %c0_i32_0 = arith.constant 0 : i32
    %c0_i32_1 = arith.constant 0 : i32
    return %0, %arg0, %c0_i32_0 : i32, i32, i32
  }
  func.func @transform_1(%arg0: i32, %arg1: i32) -> (i32, i32) {
    %c0_i32 = arith.constant 0 : i32
    %c0_i32_0 = arith.constant 0 : i32
    return %arg0, %c0_i32 : i32, i32
  }
  func.func @transform_2(%arg0: i32, %arg1: i32) -> (i32, i32) {
    %c0_i32 = arith.constant 0 : i32
    %c0_i32_0 = arith.constant 0 : i32
    %c0_i32_1 = arith.constant 0 : i32
    return %c0_i32, %c0_i32_0 : i32, i32
  }
  func.func @transform_3(%arg0: i32, %arg1: i32) -> (i32, i32) {
    %c0_i32 = arith.constant 0 : i32
    %c0_i32_0 = arith.constant 0 : i32
    %c0_i32_1 = arith.constant 0 : i32
    return %c0_i32, %c0_i32_0 : i32, i32
  }
  func.func @transform_4(%arg0: i32, %arg1: i32) -> (i32, i32) {
    %c0_i32 = arith.constant 0 : i32
    %c0_i32_0 = arith.constant 0 : i32
    %c0_i32_1 = arith.constant 0 : i32
    return %c0_i32, %c0_i32_0 : i32, i32
  }
  func.func @transform_5(%arg0: i32, %arg1: i32) -> (i32, i32) {
    %c0_i32 = arith.constant 0 : i32
    %c0_i32_0 = arith.constant 0 : i32
    %c0_i32_1 = arith.constant 0 : i32
    return %c0_i32, %c0_i32_0 : i32, i32
  }
  func.func @transform_6(%arg0: i32, %arg1: i32) -> (i32, i32, i32) {
    %c0_i32 = arith.constant 0 : i32
    %0 = arith.subi %c0_i32, %arg1 : i32
    %c0_i32_0 = arith.constant 0 : i32
    %c0_i32_1 = arith.constant 0 : i32
    return %0, %arg0, %c0_i32_0 : i32, i32, i32
  }
  func.func @transform_7(%arg0: i32, %arg1: i32) -> (i32, i32) {
    %c0_i32 = arith.constant 0 : i32
    %c0_i32_0 = arith.constant 0 : i32
    %c0_i32_1 = arith.constant 0 : i32
    return %c0_i32, %c0_i32_0 : i32, i32
  }
  func.func @transform_8(%arg0: i32, %arg1: i32) -> (i32, i32) {
    %c0_i32 = arith.constant 0 : i32
    %c0_i32_0 = arith.constant 0 : i32
    %c0_i32_1 = arith.constant 0 : i32
    return %c0_i32, %c0_i32_0 : i32, i32
  }
  func.func @transform_9(%arg0: i32, %arg1: i32) -> (i32, i32) {
    %c0_i32 = arith.constant 0 : i32
    %c0_i32_0 = arith.constant 0 : i32
    %c0_i32_1 = arith.constant 0 : i32
    return %c0_i32, %c0_i32_0 : i32, i32
  }
  func.func @transform_10(%arg0: i32, %arg1: i32) -> (i32, i32, i32) {
    %c0_i32 = arith.constant 0 : i32
    %0 = arith.subi %c0_i32, %arg1 : i32
    %c0_i32_0 = arith.constant 0 : i32
    %c0_i32_1 = arith.constant 0 : i32
    return %0, %arg0, %c0_i32_0 : i32, i32, i32
  }
  func.func @transform_11(%arg0: i32, %arg1: i32) -> (i32, i32) {
    %c0_i32 = arith.constant 0 : i32
    %c0_i32_0 = arith.constant 0 : i32
    return %arg0, %c0_i32 : i32, i32
  }
}

</mosaic_0001>

<llo_original>
// kernel: encoder_forward.3
$region0: #{encoder_forward.3}
  #allocation0 [shape = 'u32[]', space=smem, size = 0x4, offset = 0x4, fixed_abs, tag = 'smem constant byte address 0x4 - core index']
  #allocation1 [shape = 'u32[144,128]{1,0:T(1,128)}', space=vmem, size = 0x12000, scoped, tag = 'internal scratch']
  #allocation2 [shape = 'f32[8,32]{1,0:T(8,128)}', space=vmem, size = 0x1000, scoped, tag = 'scratch operand']
  #allocation3 [shape = 'f32[8,8,96]{2,1,0:T(8,128)}', space=vmem, size = 0x8000, scoped, tag = 'scratch operand']
  #allocation4 [shape = 'bf16[8,8,32]{2,1,0:T(8,128)(2,1)}', space=vmem, size = 0x4000, scoped, tag = 'scratch operand']
  %s0 = inlined_call_operand.hbm [shape: bf16[8,8,32], index: 0, kind: input, shape index: {}]
  %s1 = inlined_call_operand.hbm [shape: s32[8,1], index: 1, kind: input, shape index: {}]
  %s2 = inlined_call_operand.hbm [shape: bf16[32,96], index: 2, kind: input, shape index: {}]
  %s3 = inlined_call_operand.hbm [shape: bf16[32,96], index: 3, kind: input, shape index: {}]
  %s4 = inlined_call_operand.hbm [shape: f32[1,96], index: 4, kind: input, shape index: {}]
  %s5 = inlined_call_operand.hbm [shape: f32[1,96], index: 5, kind: input, shape index: {}]
  %s6 = inlined_call_operand.hbm [shape: bf16[8,8,32], index: 6, kind: input, shape index: {}]
  %s7 = inlined_call_operand.hbm [shape: bf16[32,32], index: 7, kind: input, shape index: {}]
  %s8 = inlined_call_operand.hbm [shape: bf16[32,32], index: 8, kind: input, shape index: {}]
  %s9 = inlined_call_operand.hbm [shape: f32[1,32], index: 9, kind: input, shape index: {}]
  %s10 = inlined_call_operand.hbm [shape: f32[8,8,32], index: 10, kind: output, shape index: {0}]
  %s11 = inlined_call_operand.hbm [shape: f32[8,32], index: 11, kind: output, shape index: {1}]
  %12 = xla_tuple %s10, %s11
  %s13 = sld [smem:[#allocation0]]
  $region102: #{encoder_forward.3} parent=0
    _
  %s15 = ssub.s32 1, %s13
  %s16 = scalar_select 0, %s15, %s13
  $region1: #{encoder_forward.3} parent=0
    #allocation5 [shape = 'u8[16384]{0}', space=vmem, size = 0x4000, scoped, tag = 'input window, operand 0, single buffered']
    #allocation6 [shape = 's32[1]{0}', space=sflag, size = 0x4, scoped, tag = 'scoped memory for encoder_forward.3']
    #allocation7 [shape = 's32[1]{0}', space=sflag, size = 0x4, scoped, tag = 'scoped memory for encoder_forward.3']
    #allocation8 [shape = 'u8[4096]{0}', space=vmem, size = 0x1000, scoped, tag = 'input window, operand 1, single buffered']
    #allocation9 [shape = 's32[1]{0}', space=sflag, size = 0x4, scoped, tag = 'scoped memory for encoder_forward.3']
    #allocation10 [shape = 'u8[8192]{0}', space=vmem, size = 0x2000, scoped, tag = 'input window, operand 2, single buffered']
    #allocation11 [shape = 'u8[8192]{0}', space=vmem, size = 0x2000, scoped, tag = 'input window, operand 3, single buffered']
    #allocation12 [shape = 's32[1]{0}', space=sflag, size = 0x4, scoped, tag = 'scoped memory for encoder_forward.3']
    #allocation13 [shape = 'u8[512]{0}', space=vmem, size = 0x400, scoped, tag = 'input window, operand 4, single buffered']
    #allocation14 [shape = 'u8[512]{0}', space=vmem, size = 0x400, scoped, tag = 'input window, operand 5, single buffered']
    #allocation15 [shape = 's32[1]{0}', space=sflag, size = 0x4, scoped, tag = 'scoped memory for encoder_forward.3']
    #allocation16 [shape = 'u8[16384]{0}', space=vmem, size = 0x4000, scoped, tag = 'input window, operand 6, single buffered']
    #allocation17 [shape = 'u8[8192]{0}', space=vmem, size = 0x2000, scoped, tag = 'input window, operand 7, single buffered']
    #allocation18 [shape = 's32[1]{0}', space=sflag, size = 0x4, scoped, tag = 'scoped memory for encoder_forward.3']
    #allocation19 [shape = 'u8[8192]{0}', space=vmem, size = 0x2000, scoped, tag = 'input window, operand 8, single buffered']
    #allocation20 [shape = 'u8[512]{0}', space=vmem, size = 0x400, scoped, tag = 'input window, operand 9, single buffered']
    #allocation21 [shape = 's32[1]{0}', space=sflag, size = 0x4, scoped, tag = 'scoped memory for encoder_forward.3']
    #allocation22 [shape = 'u8[32768]{0}', space=vmem, size = 0x8000, scoped, tag = 'output window, operand 0, single buffered']
    #allocation23 [shape = 'u8[4096]{0}', space=vmem, size = 0x1000, scoped, tag = 'output window, operand 1, single buffered']
    #allocation24 [shape = 's32[1]{0}', space=sflag, size = 0x4, scoped, tag = 'scoped memory for encoder_forward.3']
    %17 = vsyncpa [#allocation6], 0
    %18 = vsyncpa [#allocation9], 0
    %19 = vsyncpa [#allocation12], 0
    %20 = vsyncpa [#allocation15], 0
    %21 = vsyncpa [#allocation18], 0
    %22 = vsyncpa [#allocation21], 0
    %23 = vsyncpa [#allocation7], 0
    %24 = vsyncpa [#allocation24], 0
    // Predicated region
    $region2: #{encoder_forward.3} parent=1 // pred_check
      _
    $region3: #{encoder_forward.3} parent=1 // pred_check_branch
      %26 = sbr.rel (0) target = $region5
    $region4: #{encoder_forward.3} parent=1 // pred_region
      %s27 = ssub.s32 0, 0
      %s28 = smul.u32 8, %s27
      %s30 = ssub.s32 512, 512
      %31 = vsyncadd [#allocation6], %s30
      %s32 = smul.addr %s28, 64
      %s33 = scalar_lea.hbm %s0, %s32
      %s34 = sshll.u32 [#allocation5], 4
      %s35 = int_to_ptr.vmem [resolvable:$true] %s34
      %40 = dma.hbm_to_vmem [thread:$0]  %s33, 512, %s35, [#allocation6], 64, 64, 4
    $region5: #{encoder_forward.3} parent=1 // pred_fallthru
      _
    // Predicated region
    $region6: #{encoder_forward.3} parent=1 // pred_check
      _
    $region7: #{encoder_forward.3} parent=1 // pred_check_branch
      %42 = sbr.rel (0) target = $region9
    $region8: #{encoder_forward.3} parent=1 // pred_region
      %s44 = ssub.s32 128, 128
      %45 = vsyncadd [#allocation9], %s44
      %s47 = sshll.u32 [#allocation8], 4
      %s48 = int_to_ptr.vmem [resolvable:$true] %s47
      %50 = dma.hbm_to_vmem [thread:$0]  %s1, 128, %s48, [#allocation9]
    $region9: #{encoder_forward.3} parent=1 // pred_fallthru
      _
    // Predicated region
    $region10: #{encoder_forward.3} parent=1 // pred_check
      _
    $region11: #{encoder_forward.3} parent=1 // pred_check_branch
      %52 = sbr.rel (0) target = $region13
    $region12: #{encoder_forward.3} parent=1 // pred_region
      %s54 = ssub.s32 256, 256
      %55 = vsyncadd [#allocation9], %s54
      %s56 = sshll.u32 [#allocation10], 4
      %s57 = int_to_ptr.vmem [resolvable:$true] %s56
      %62 = dma.hbm_to_vmem [thread:$0]  %s2, 256, %s57, [#allocation9], 64, 64, 4
    $region13: #{encoder_forward.3} parent=1 // pred_fallthru
      _
    // Predicated region
    $region14: #{encoder_forward.3} parent=1 // pred_check
      _
    $region15: #{encoder_forward.3} parent=1 // pred_check_branch
      %64 = sbr.rel (0) target = $region17
    $region16: #{encoder_forward.3} parent=1 // pred_region
      %s66 = ssub.s32 256, 256
      %67 = vsyncadd [#allocation12], %s66
      %s68 = sshll.u32 [#allocation11], 4
      %s69 = int_to_ptr.vmem [resolvable:$true] %s68
      %74 = dma.hbm_to_vmem [thread:$0]  %s3, 256, %s69, [#allocation12], 64, 64, 4
    $region17: #{encoder_forward.3} parent=1 // pred_fallthru
      _
    // Predicated region
    $region18: #{encoder_forward.3} parent=1 // pred_check
      _
    $region19: #{encoder_forward.3} parent=1 // pred_check_branch
      %76 = sbr.rel (0) target = $region21
    $region20: #{encoder_forward.3} parent=1 // pred_region
      %s78 = ssub.s32 16, 16
      %79 = vsyncadd [#allocation12], %s78
      %s81 = sshll.u32 [#allocation13], 4
      %s82 = int_to_ptr.vmem [resolvable:$true] %s81
      %84 = dma.hbm_to_vmem [thread:$0]  %s4, 16, %s82, [#allocation12]
    $region21: #{encoder_forward.3} parent=1 // pred_fallthru
      _
    // Predicated region
    $region22: #{encoder_forward.3} parent=1 // pred_check
      _
    $region23: #{encoder_forward.3} parent=1 // pred_check_branch
      %86 = sbr.rel (0) target = $region25
    $region24: #{encoder_forward.3} parent=1 // pred_region
      %s88 = ssub.s32 16, 16
      %89 = vsyncadd [#allocation15], %s88
      %s91 = sshll.u32 [#allocation14], 4
      %s92 = int_to_ptr.vmem [resolvable:$true] %s91
      %94 = dma.hbm_to_vmem [thread:$0]  %s5, 16, %s92, [#allocation15]
    $region25: #{encoder_forward.3} parent=1 // pred_fallthru
      _
    // Predicated region
    $region26: #{encoder_forward.3} parent=1 // pred_check
      _
    $region27: #{encoder_forward.3} parent=1 // pred_check_branch
      %96 = sbr.rel (0) target = $region29
    $region28: #{encoder_forward.3} parent=1 // pred_region
      %s97 = ssub.s32 0, 0
      %s98 = smul.u32 8, %s97
      %s100 = ssub.s32 512, 512
      %101 = vsyncadd [#allocation15], %s100
      %s102 = smul.addr %s98, 64
      %s103 = scalar_lea.hbm %s6, %s102
      %s104 = sshll.u32 [#allocation16], 4
      %s105 = int_to_ptr.vmem [resolvable:$true] %s104
      %110 = dma.hbm_to_vmem [thread:$0]  %s103, 512, %s105, [#allocation15], 64, 64, 4
    $region29: #{encoder_forward.3} parent=1 // pred_fallthru
      _
    // Predicated region
    $region30: #{encoder_forward.3} parent=1 // pred_check
      _
    $region31: #{encoder_forward.3} parent=1 // pred_check_branch
      %112 = sbr.rel (0) target = $region33
    $region32: #{encoder_forward.3} parent=1 // pred_region
      %s114 = ssub.s32 256, 256
      %115 = vsyncadd [#allocation18], %s114
      %s116 = sshll.u32 [#allocation17], 4
      %s117 = int_to_ptr.vmem [resolvable:$true] %s116
      %122 = dma.hbm_to_vmem [thread:$0]  %s7, 256, %s117, [#allocation18], 64, 64, 4
    $region33: #{encoder_forward.3} parent=1 // pred_fallthru
      _
    // Predicated region
    $region34: #{encoder_forward.3} parent=1 // pred_check
      _
    $region35: #{encoder_forward.3} parent=1 // pred_check_branch
      %124 = sbr.rel (0) target = $region37
    $region36: #{encoder_forward.3} parent=1 // pred_region
      %s126 = ssub.s32 256, 256
      %127 = vsyncadd [#allocation18], %s126
      %s128 = sshll.u32 [#allocation19], 4
      %s129 = int_to_ptr.vmem [resolvable:$true] %s128
      %134 = dma.hbm_to_vmem [thread:$0]  %s8, 256, %s129, [#allocation18], 64, 64, 4
    $region37: #{encoder_forward.3} parent=1 // pred_fallthru
      _
    // Predicated region
    $region38: #{encoder_forward.3} parent=1 // pred_check
      _
    $region39: #{encoder_forward.3} parent=1 // pred_check_branch
      %136 = sbr.rel (0) target = $region41
    $region40: #{encoder_forward.3} parent=1 // pred_region
      %s138 = ssub.s32 16, 16
      %139 = vsyncadd [#allocation21], %s138
      %s141 = sshll.u32 [#allocation20], 4
      %s142 = int_to_ptr.vmem [resolvable:$true] %s141
      %144 = dma.hbm_to_vmem [thread:$0]  %s9, 16, %s142, [#allocation21]
    $region41: #{encoder_forward.3} parent=1 // pred_fallthru
      _
    // Predicated region
    $region42: #{encoder_forward.3} parent=1 // pred_check
      _
    $region43: #{encoder_forward.3} parent=1 // pred_check_branch
      %146 = sbr.rel (0) target = $region45
    $region44: #{encoder_forward.3} parent=1 // pred_region
      %147 = dma.done [#allocation6], 512
    $region45: #{encoder_forward.3} parent=1 // pred_fallthru
      _
    // Predicated region
    $region46: #{encoder_forward.3} parent=1 // pred_check
      _
    $region47: #{encoder_forward.3} parent=1 // pred_check_branch
      %149 = sbr.rel (0) target = $region49
    $region48: #{encoder_forward.3} parent=1 // pred_region
      %150 = dma.done [#allocation9], 128
    $region49: #{encoder_forward.3} parent=1 // pred_fallthru
      _
    // Predicated region
    $region50: #{encoder_forward.3} parent=1 // pred_check
      _
    $region51: #{encoder_forward.3} parent=1 // pred_check_branch
      %152 = sbr.rel (0) target = $region53
    $region52: #{encoder_forward.3} parent=1 // pred_region
      %153 = dma.done [#allocation9], 256
    $region53: #{encoder_forward.3} parent=1 // pred_fallthru
      _
    // Predicated region
    $region54: #{encoder_forward.3} parent=1 // pred_check
      _
    $region55: #{encoder_forward.3} parent=1 // pred_check_branch
      %155 = sbr.rel (0) target = $region57
    $region56: #{encoder_forward.3} parent=1 // pred_region
      %156 = dma.done [#allocation12], 256
    $region57: #{encoder_forward.3} parent=1 // pred_fallthru
      _
    // Predicated region
    $region58: #{encoder_forward.3} parent=1 // pred_check
      _
    $region59: #{encoder_forward.3} parent=1 // pred_check_branch
      %158 = sbr.rel (0) target = $region61
    $region60: #{encoder_forward.3} parent=1 // pred_region
      %159 = dma.done [#allocation12], 16
    $region61: #{encoder_forward.3} parent=1 // pred_fallthru
      _
    // Predicated region
    $region62: #{encoder_forward.3} parent=1 // pred_check
      _
    $region63: #{encoder_forward.3} parent=1 // pred_check_branch
      %161 = sbr.rel (0) target = $region65
    $region64: #{encoder_forward.3} parent=1 // pred_region
      %162 = dma.done [#allocation15], 16
    $region65: #{encoder_forward.3} parent=1 // pred_fallthru
      _
    // Predicated region
    $region66: #{encoder_forward.3} parent=1 // pred_check
      _
    $region67: #{encoder_forward.3} parent=1 // pred_check_branch
      %164 = sbr.rel (0) target = $region69
    $region68: #{encoder_forward.3} parent=1 // pred_region
      %165 = dma.done [#allocation15], 512
    $region69: #{encoder_forward.3} parent=1 // pred_fallthru
      _
    // Predicated region
    $region70: #{encoder_forward.3} parent=1 // pred_check
      _
    $region71: #{encoder_forward.3} parent=1 // pred_check_branch
      %167 = sbr.rel (0) target = $region73
    $region72: #{encoder_forward.3} parent=1 // pred_region
      %168 = dma.done [#allocation18], 256
    $region73: #{encoder_forward.3} parent=1 // pred_fallthru
      _
    // Predicated region
    $region74: #{encoder_forward.3} parent=1 // pred_check
      _
    $region75: #{encoder_forward.3} parent=1 // pred_check_branch
      %170 = sbr.rel (0) target = $region77
    $region76: #{encoder_forward.3} parent=1 // pred_region
      %171 = dma.done [#allocation18], 256
    $region77: #{encoder_forward.3} parent=1 // pred_fallthru
      _
    // Predicated region
    $region78: #{encoder_forward.3} parent=1 // pred_check
      _
    $region79: #{encoder_forward.3} parent=1 // pred_check_branch
      %173 = sbr.rel (0) target = $region81
    $region80: #{encoder_forward.3} parent=1 // pred_region
      %174 = dma.done [#allocation21], 16
    $region81: #{encoder_forward.3} parent=1 // pred_fallthru
      _
    %s175 = ssub.s32 0, 0
    %s176 = smul.u32 8, %s175
    %s177 = ssub.s32 0, 0
    %s178 = smul.u32 8, %s177
    %s179 = ssub.s32 0, 0
    %s180 = smul.u32 8, %s179
    %p182 = scmp.eq.s32.totalorder 0, 0
    // Predicated region
    $region82: #{encoder_forward.3} parent=1 // pred_check
      %p183 = pneg %p182
    $region83: #{encoder_forward.3} parent=1 // pred_check_branch
      %185 = sbr.rel (%p183) target = $region85
    $region84: #{encoder_forward.3} parent=1 // pred_region
      %vm186 = vcmask 261120
      %187 = vst.msk [vmem:[#allocation2] sm:$0xff] %vm186, 0.0
    $region85: #{encoder_forward.3} parent=1 // pred_fallthru
      _
    %v188 = vld [vmem:[#allocation5] sm:$0xf]
    %v189 = vld [vmem:[#allocation5 + $0x4] sm:$0xf]
    %v190 = vld [vmem:[#allocation5 + $0x8] sm:$0xf]
    %v191 = vld [vmem:[#allocation5 + $0xc] sm:$0xf]
    %v192 = vld [vmem:[#allocation5 + $0x10] sm:$0xf]
    %v193 = vld [vmem:[#allocation5 + $0x14] sm:$0xf]
    %v194 = vld [vmem:[#allocation5 + $0x18] sm:$0xf]
    %v195 = vld [vmem:[#allocation5 + $0x1c] sm:$0xf]
    %v196 = vld [vmem:[#allocation10] sm:$0xf]
    %v197 = vld [vmem:[#allocation10 + $0x4] sm:$0xf]
    %v198 = vld [vmem:[#allocation10 + $0x8] sm:$0xf]
    %v199 = vld [vmem:[#allocation10 + $0xc] sm:$0xf]
    %v200 = vld [vmem:[#allocation13] sm:$0x1]
    %v202 = vlaneseq
    %v203 = vshrl.u32 %v202, 7
    %v204 = vsub.s32 0, %v203
    %v205 = vrot.slane %v200, %v204
    %v215 = vunpack.c.l.b16 %v188
    %v216 = vunpack.c.l.b16 %v189
    %v217 = vunpack.c.l.b16 %v190
    %v218 = vunpack.c.l.b16 %v191
    %v219 = vunpack.c.l.b16 %v192
    %v220 = vunpack.c.l.b16 %v193
    %v221 = vunpack.c.l.b16 %v194
    %v222 = vunpack.c.l.b16 %v195
    %v223 = vpack.c.b16 %v216, %v215
    %v224 = vpack.c.b16 %v218, %v217
    %v225 = vpack.c.b16 %v220, %v219
    %v226 = vpack.c.b16 %v222, %v221
    %v231 = vunpack.c.l.b16 %v196
    %v232 = vunpack.c.l.b16 %v197
    %v233 = vunpack.c.l.b16 %v198
    %v234 = vunpack.c.l.b16 %v199
    %v235 = vpack.c.b16 %v232, %v231
    %v236 = vpack.c.b16 %v234, %v233
    %vm239 = vcmask 261120
    %v241 = vsel %vm239, %v223, 0
    %v244 = vsel %vm239, %v224, 0
    %v247 = vsel %vm239, %v225, 0
    %v250 = vsel %vm239, %v226, 0
    %252 = vmatprep.subr.bf16.mxu0 0
    %253 = vmatpush1.bf16.msra.mxu0 %v235
    %254 = vmatprep.subr.bf16.mxu0 0
    %255 = vmatpush1.bf16.msra.mxu0 %v236
    %256 = vmatprep.subr.bf16.mxu0 0
    %257 = vmatpush1.bf16.msra.mxu0 0
    %258 = vmatprep.subr.bf16.mxu0 0
    %259 = vmatpush1.bf16.msra.mxu0 0
    %260 = vmatprep.subr.bf16.mxu0 0
    %261 = vmatpush1.bf16.msra.mxu0 0
    %262 = vmatprep.subr.bf16.mxu0 0
    %263 = vmatpush1.bf16.msra.mxu0 0
    %264 = vmatprep.subr.bf16.mxu0 0
    %265 = vmatpush1.bf16.msra.mxu0 0
    %266 = vmatprep.subr.bf16.mxu0 0
    %267 = vmatpush1.bf16.msra.mxu0 0
    %268 = vmatprep.subr.bf16.mxu0 0
    %269 = vmatpush1.bf16.msra.mxu0 0
    %270 = vmatprep.subr.bf16.mxu0 0
    %271 = vmatpush1.bf16.msra.mxu0 0
    %272 = vmatprep.subr.bf16.mxu0 0
    %273 = vmatpush1.bf16.msra.mxu0 0
    %274 = vmatprep.subr.bf16.mxu0 0
    %275 = vmatpush1.bf16.msra.mxu0 0
    %276 = vmatprep.subr.bf16.mxu0 0
    %277 = vmatpush1.bf16.msra.mxu0 0
    %278 = vmatprep.subr.bf16.mxu0 0
    %279 = vmatpush1.bf16.msra.mxu0 0
    %280 = vmatprep.subr.bf16.mxu0 0
    %281 = vmatpush1.bf16.msra.mxu0 0
    %282 = vmatprep.subr.bf16.mxu0 0
    %283 = vmatpush1.bf16.msra.mxu0 0
    %284 = vmatprep.mubr.bf16.mxu0 0
    %285 = vmatmul.mubr.bf16.gmra.mrb[0].mxu0 %v241
    %v286 = vpop.f32.mrb[0].mxu0
    %v287 = vadd.f32 %v205, %v286
    %v288 = vpop.f32.mrb[0].mxu0
    %v289 = vpop.f32.mrb[0].mxu0
    %v290 = vadd.f32 %v205, %v289
    %v291 = vpop.f32.mrb[0].mxu0
    %292 = vmatprep.mubr.bf16.mxu0 0
    %293 = vmatmul.mubr.bf16.gmra.mrb[0].mxu0 %v244
    %v294 = vpop.f32.mrb[0].mxu0
    %v295 = vadd.f32 %v205, %v294
    %v296 = vpop.f32.mrb[0].mxu0
    %v297 = vpop.f32.mrb[0].mxu0
    %v298 = vadd.f32 %v205, %v297
    %v299 = vpop.f32.mrb[0].mxu0
    %300 = vmatprep.mubr.bf16.mxu0 0
    %301 = vmatmul.mubr.bf16.gmra.mrb[0].mxu0 %v247
    %v302 = vpop.f32.mrb[0].mxu0
    %v303 = vadd.f32 %v205, %v302
    %v304 = vpop.f32.mrb[0].mxu0
    %v305 = vpop.f32.mrb[0].mxu0
    %v306 = vadd.f32 %v205, %v305
    %v307 = vpop.f32.mrb[0].mxu0
    %308 = vmatprep.mubr.bf16.mxu0 0
    %309 = vmatmul.mubr.bf16.gmra.mrb[0].mxu0 %v250
    %v310 = vpop.f32.mrb[0].mxu0
    %v311 = vadd.f32 %v205, %v310
    %v312 = vpop.f32.mrb[0].mxu0
    %v313 = vpop.f32.mrb[0].mxu0
    %v314 = vadd.f32 %v205, %v313
    %v315 = vpop.f32.mrb[0].mxu0
    %316 = vdwg.mxu0
    %vm317 = vcmask 785408
    %318 = vst.msk [vmem:[#allocation3] sm:$0xff] %vm317, %v287
    %319 = vst.msk [vmem:[#allocation3 + $0x8] sm:$0xff] %vm317, %v290
    %320 = vst.msk [vmem:[#allocation3 + $0x10] sm:$0xff] %vm317, %v295
    %321 = vst.msk [vmem:[#allocation3 + $0x18] sm:$0xff] %vm317, %v298
    %322 = vst.msk [vmem:[#allocation3 + $0x20] sm:$0xff] %vm317, %v303
    %323 = vst.msk [vmem:[#allocation3 + $0x28] sm:$0xff] %vm317, %v306
    %324 = vst.msk [vmem:[#allocation3 + $0x30] sm:$0xff] %vm317, %v311
    %325 = vst.msk [vmem:[#allocation3 + $0x38] sm:$0xff] %vm317, %v314
    %v326 = vld [vmem:[#allocation8] sm:$0xff]
    %v327 = vld [vmem:[#allocation14] sm:$0x1]
    %s328 = ssub.s32 0, 0
    %s329 = smul.u32 %s328, 8
    %s330 = sadd.s32 %s329, 7
    %v331 = vld [vmem:[#allocation2] sm:$0xff]
    %v332 = vpack.c.bf16 %v331, %v331
    %v333 = vld [vmem:[#allocation11] sm:$0xf]
    %v334 = vld [vmem:[#allocation11 + $0x4] sm:$0xf]
    %v335 = vld [vmem:[#allocation11 + $0x8] sm:$0xf]
    %v336 = vld [vmem:[#allocation11 + $0xc] sm:$0xf]
    %v338 = vlaneseq
    %v339 = vshrl.u32 %v338, 7
    %v340 = vsub.s32 0, %v339
    %v341 = vrot.slane %v327, %v340
    %v347 = vunpack.c.l.b16 %v333
    %v348 = vunpack.c.l.b16 %v334
    %v349 = vunpack.c.l.b16 %v335
    %v350 = vunpack.c.l.b16 %v336
    %v351 = vpack.c.b16 %v348, %v347
    %v352 = vpack.c.b16 %v350, %v349
    %v356 = vsel %vm239, %v332, 0
    %358 = vmatprep.subr.bf16.mxu0 0
    %359 = vmatpush1.bf16.msra.mxu0 %v351
    %360 = vmatprep.subr.bf16.mxu0 0
    %361 = vmatpush1.bf16.msra.mxu0 %v352
    %362 = vmatprep.subr.bf16.mxu0 0
    %363 = vmatpush1.bf16.msra.mxu0 0
    %364 = vmatprep.subr.bf16.mxu0 0
    %365 = vmatpush1.bf16.msra.mxu0 0
    %366 = vmatprep.subr.bf16.mxu0 0
    %367 = vmatpush1.bf16.msra.mxu0 0
    %368 = vmatprep.subr.bf16.mxu0 0
    %369 = vmatpush1.bf16.msra.mxu0 0
    %370 = vmatprep.subr.bf16.mxu0 0
    %371 = vmatpush1.bf16.msra.mxu0 0
    %372 = vmatprep.subr.bf16.mxu0 0
    %373 = vmatpush1.bf16.msra.mxu0 0
    %374 = vmatprep.subr.bf16.mxu0 0
    %375 = vmatpush1.bf16.msra.mxu0 0
    %376 = vmatprep.subr.bf16.mxu0 0
    %377 = vmatpush1.bf16.msra.mxu0 0
    %378 = vmatprep.subr.bf16.mxu0 0
    %379 = vmatpush1.bf16.msra.mxu0 0
    %380 = vmatprep.subr.bf16.mxu0 0
    %381 = vmatpush1.bf16.msra.mxu0 0
    %382 = vmatprep.subr.bf16.mxu0 0
    %383 = vmatpush1.bf16.msra.mxu0 0
    %384 = vmatprep.subr.bf16.mxu0 0
    %385 = vmatpush1.bf16.msra.mxu0 0
    %386 = vmatprep.subr.bf16.mxu0 0
    %387 = vmatpush1.bf16.msra.mxu0 0
    %388 = vmatprep.subr.bf16.mxu0 0
    %389 = vmatpush1.bf16.msra.mxu0 0
    %390 = vmatprep.mubr.bf16.mxu0 0
    %391 = vmatmul.mubr.bf16.gmra.mrb[0].mxu0 %v356
    %v392 = vpop.f32.mrb[0].mxu0
    %v393 = vadd.f32 %v341, %v392
    %v394 = vpop.f32.mrb[0].mxu0
    %v395 = vpop.f32.mrb[0].mxu0
    %v396 = vpop.f32.mrb[0].mxu0
    %397 = vdwg.mxu0
    %s398 = scalar_lea.vmem [#allocation3], 56
    %v399 = vld [vmem:[%s398] sm:$0xff]
    %v400 = vadd.f32 %v399, %v393
    %v401 = vxor.u32 %v400, 2147483648
    %v402 = vmul.f32 %v401, 1.442695
    %v403 = vpow.pop %v402
    %v404 = vadd.f32 %v403, 1.0
    %v405 = vrcp.pop %v404
    %v406 = vmul.f32 1.0, %v405
    %408 = vrot.lane.b32.xlu0 %v393, 64
    %v409 = vpop.permute.xlu0 %408
    %v411 = vmul.f32 %v406, %v409
    %413 = vrot.lane.b32.xlu0 %v411, 64
    %v414 = vpop.permute.xlu0 %413
    %v416 = vadd.f32 %v399, %v414
    %v417 = vtanh.pop %v416
    %v418 = vsub.f32 1.0, %v406
    %420 = vrot.lane.b32.xlu0 %v417, 96
    %v421 = vpop.permute.xlu0 %420
    %v423 = vmul.f32 %v418, %v421
    %425 = vrot.lane.b32.xlu0 %v331, 32
    %v426 = vpop.permute.xlu0 %425
    %v428 = vmul.f32 %v406, %v426
    %v429 = vadd.f32 %v423, %v428
    %v430 = vstv %s330
    %vm431 = vcmp.gt.s32.totalorder %v326, %v430
    %v432 = vsel %vm431, 1, 0
    %433 = vset.pattern.permute.xlu0 0
    %434 = vperm.xlu0 %433, %v432
    %v435 = vpop.permute.xlu0 %434
    %vm436 = vcmp.eq.s32.totalorder %v435, 1
    %v437 = vsel %vm436, %v429, %v426
    %439 = vrot.lane.b32.xlu0 %v437, 96
    %v440 = vpop.permute.xlu0 %439
    %442 = vst.msk [vmem:[#allocation2] sm:$0xff] %vm239, %v440
    %v443 = vsel %vm436, %v429, 0.0
    %v444 = vpack.c.bf16 %v443, %v443
    %v446 = vunpack.c.l.b16 %v444
    %v447 = vpack.c.b16 %v446, %v446
    %448 = vrot.lane.b32.xlu0 %v447, 96
    %v449 = vpop.permute.xlu0 %448
    %s451 = scalar_lea.vmem [#allocation4], 28
    %vm452 = vcmask 257024
    %453 = vst.msk [vmem:[%s451] sm:$0xf] %vm452, %v449
    %s454 = sadd.s32 %s329, 6
    %v455 = vld [vmem:[#allocation2] sm:$0xff]
    %v456 = vpack.c.bf16 %v455, %v455
    %v457 = vld [vmem:[#allocation11] sm:$0xf]
    %v458 = vld [vmem:[#allocation11 + $0x4] sm:$0xf]
    %v459 = vld [vmem:[#allocation11 + $0x8] sm:$0xf]
    %v460 = vld [vmem:[#allocation11 + $0xc] sm:$0xf]
    %v465 = vunpack.c.l.b16 %v457
    %v466 = vunpack.c.l.b16 %v458
    %v467 = vunpack.c.l.b16 %v459
    %v468 = vunpack.c.l.b16 %v460
    %v469 = vpack.c.b16 %v466, %v465
    %v470 = vpack.c.b16 %v468, %v467
    %v474 = vsel %vm239, %v456, 0
    %476 = vmatprep.subr.bf16.mxu0 0
    %477 = vmatpush1.bf16.msra.mxu0 %v469
    %478 = vmatprep.subr.bf16.mxu0 0
    %479 = vmatpush1.bf16.msra.mxu0 %v470
    %480 = vmatprep.subr.bf16.mxu0 0
    %481 = vmatpush1.bf16.msra.mxu0 0
    %482 = vmatprep.subr.bf16.mxu0 0
    %483 = vmatpush1.bf16.msra.mxu0 0
    %484 = vmatprep.subr.bf16.mxu0 0
    %485 = vmatpush1.bf16.msra.mxu0 0
    %486 = vmatprep.subr.bf16.mxu0 0
    %487 = vmatpush1.bf16.msra.mxu0 0
    %488 = vmatprep.subr.bf16.mxu0 0
    %489 = vmatpush1.bf16.msra.mxu0 0
    %490 = vmatprep.subr.bf16.mxu0 0
    %491 = vmatpush1.bf16.msra.mxu0 0
    %492 = vmatprep.subr.bf16.mxu0 0
    %493 = vmatpush1.bf16.msra.mxu0 0
    %494 = vmatprep.subr.bf16.mxu0 0
    %495 = vmatpush1.bf16.msra.mxu0 0
    %496 = vmatprep.subr.bf16.mxu0 0
    %497 = vmatpush1.bf16.msra.mxu0 0
    %498 = vmatprep.subr.bf16.mxu0 0
    %499 = vmatpush1.bf16.msra.mxu0 0
    %500 = vmatprep.subr.bf16.mxu0 0
    %501 = vmatpush1.bf16.msra.mxu0 0
    %502 = vmatprep.subr.bf16.mxu0 0
    %503 = vmatpush1.bf16.msra.mxu0 0
    %504 = vmatprep.subr.bf16.mxu0 0
    %505 = vmatpush1.bf16.msra.mxu0 0
    %506 = vmatprep.subr.bf16.mxu0 0
    %507 = vmatpush1.bf16.msra.mxu0 0
    %508 = vmatprep.mubr.bf16.mxu0 0
    %509 = vmatmul.mubr.bf16.gmra.mrb[0].mxu0 %v474
    %v510 = vpop.f32.mrb[0].mxu0
    %v511 = vadd.f32 %v341, %v510
    %v512 = vpop.f32.mrb[0].mxu0
    %v513 = vpop.f32.mrb[0].mxu0
    %v514 = vpop.f32.mrb[0].mxu0
    %515 = vdwg.mxu0
    %s516 = scalar_lea.vmem [#allocation3], 48
    %v517 = vld [vmem:[%s516] sm:$0xff]
    %v518 = vadd.f32 %v517, %v511
    %v519 = vxor.u32 %v518, 2147483648
    %v520 = vmul.f32 %v519, 1.442695
    %v521 = vpow.pop %v520
    %v522 = vadd.f32 %v521, 1.0
    %v523 = vrcp.pop %v522
    %v524 = vmul.f32 1.0, %v523
    %526 = vrot.lane.b32.xlu0 %v511, 64
    %v527 = vpop.permute.xlu0 %526
    %v529 = vmul.f32 %v524, %v527
    %531 = vrot.lane.b32.xlu0 %v529, 64
    %v532 = vpop.permute.xlu0 %531
    %v534 = vadd.f32 %v517, %v532
    %v535 = vtanh.pop %v534
    %v536 = vsub.f32 1.0, %v524
    %538 = vrot.lane.b32.xlu0 %v535, 96
    %v539 = vpop.permute.xlu0 %538
    %v541 = vmul.f32 %v536, %v539
    %543 = vrot.lane.b32.xlu0 %v455, 32
    %v544 = vpop.permute.xlu0 %543
    %v546 = vmul.f32 %v524, %v544
    %v547 = vadd.f32 %v541, %v546
    %v548 = vstv %s454
    %vm549 = vcmp.gt.s32.totalorder %v326, %v548
    %v550 = vsel %vm549, 1, 0
    %551 = vset.pattern.permute.xlu0 0
    %552 = vperm.xlu0 %551, %v550
    %v553 = vpop.permute.xlu0 %552
    %vm554 = vcmp.eq.s32.totalorder %v553, 1
    %v555 = vsel %vm554, %v547, %v544
    %557 = vrot.lane.b32.xlu0 %v555, 96
    %v558 = vpop.permute.xlu0 %557
    %560 = vst.msk [vmem:[#allocation2] sm:$0xff] %vm239, %v558
    %v561 = vsel %vm554, %v547, 0.0
    %v562 = vpack.c.bf16 %v561, %v561
    %v564 = vunpack.c.l.b16 %v562
    %v565 = vpack.c.b16 %v564, %v564
    %566 = vrot.lane.b32.xlu0 %v565, 96
    %v567 = vpop.permute.xlu0 %566
    %s569 = scalar_lea.vmem [#allocation4], 24
    %570 = vst.msk [vmem:[%s569] sm:$0xf] %vm452, %v567
    %s571 = sadd.s32 %s329, 5
    %v572 = vld [vmem:[#allocation2] sm:$0xff]
    %v573 = vpack.c.bf16 %v572, %v572
    %v574 = vld [vmem:[#allocation11] sm:$0xf]
    %v575 = vld [vmem:[#allocation11 + $0x4] sm:$0xf]
    %v576 = vld [vmem:[#allocation11 + $0x8] sm:$0xf]
    %v577 = vld [vmem:[#allocation11 + $0xc] sm:$0xf]
    %v582 = vunpack.c.l.b16 %v574
    %v583 = vunpack.c.l.b16 %v575
    %v584 = vunpack.c.l.b16 %v576
    %v585 = vunpack.c.l.b16 %v577
    %v586 = vpack.c.b16 %v583, %v582
    %v587 = vpack.c.b16 %v585, %v584
    %v591 = vsel %vm239, %v573, 0
    %593 = vmatprep.subr.bf16.mxu0 0
    %594 = vmatpush1.bf16.msra.mxu0 %v586
    %595 = vmatprep.subr.bf16.mxu0 0
    %596 = vmatpush1.bf16.msra.mxu0 %v587
    %597 = vmatprep.subr.bf16.mxu0 0
    %598 = vmatpush1.bf16.msra.mxu0 0
    %599 = vmatprep.subr.bf16.mxu0 0
    %600 = vmatpush1.bf16.msra.mxu0 0
    %601 = vmatprep.subr.bf16.mxu0 0
    %602 = vmatpush1.bf16.msra.mxu0 0
    %603 = vmatprep.subr.bf16.mxu0 0
    %604 = vmatpush1.bf16.msra.mxu0 0
    %605 = vmatprep.subr.bf16.mxu0 0
    %606 = vmatpush1.bf16.msra.mxu0 0
    %607 = vmatprep.subr.bf16.mxu0 0
    %608 = vmatpush1.bf16.msra.mxu0 0
    %609 = vmatprep.subr.bf16.mxu0 0
    %610 = vmatpush1.bf16.msra.mxu0 0
    %611 = vmatprep.subr.bf16.mxu0 0
    %612 = vmatpush1.bf16.msra.mxu0 0
    %613 = vmatprep.subr.bf16.mxu0 0
    %614 = vmatpush1.bf16.msra.mxu0 0
    %615 = vmatprep.subr.bf16.mxu0 0
    %616 = vmatpush1.bf16.msra.mxu0 0
    %617 = vmatprep.subr.bf16.mxu0 0
    %618 = vmatpush1.bf16.msra.mxu0 0
    %619 = vmatprep.subr.bf16.mxu0 0
    %620 = vmatpush1.bf16.msra.mxu0 0
    %621 = vmatprep.subr.bf16.mxu0 0
    %622 = vmatpush1.bf16.msra.mxu0 0
    %623 = vmatprep.subr.bf16.mxu0 0
    %624 = vmatpush1.bf16.msra.mxu0 0
    %625 = vmatprep.mubr.bf16.mxu0 0
    %626 = vmatmul.mubr.bf16.gmra.mrb[0].mxu0 %v591
    %v627 = vpop.f32.mrb[0].mxu0
    %v628 = vadd.f32 %v341, %v627
    %v629 = vpop.f32.mrb[0].mxu0
    %v630 = vpop.f32.mrb[0].mxu0
    %v631 = vpop.f32.mrb[0].mxu0
    %632 = vdwg.mxu0
    %s633 = scalar_lea.vmem [#allocation3], 40
    %v634 = vld [vmem:[%s633] sm:$0xff]
    %v635 = vadd.f32 %v634, %v628
    %v636 = vxor.u32 %v635, 2147483648
    %v637 = vmul.f32 %v636, 1.442695
    %v638 = vpow.pop %v637
    %v639 = vadd.f32 %v638, 1.0
    %v640 = vrcp.pop %v639
    %v641 = vmul.f32 1.0, %v640
    %643 = vrot.lane.b32.xlu0 %v628, 64
    %v644 = vpop.permute.xlu0 %643
    %v646 = vmul.f32 %v641, %v644
    %648 = vrot.lane.b32.xlu0 %v646, 64
    %v649 = vpop.permute.xlu0 %648
    %v651 = vadd.f32 %v634, %v649
    %v652 = vtanh.pop %v651
    %v653 = vsub.f32 1.0, %v641
    %655 = vrot.lane.b32.xlu0 %v652, 96
    %v656 = vpop.permute.xlu0 %655
    %v658 = vmul.f32 %v653, %v656
    %660 = vrot.lane.b32.xlu0 %v572, 32
    %v661 = vpop.permute.xlu0 %660
    %v663 = vmul.f32 %v641, %v661
    %v664 = vadd.f32 %v658, %v663
    %v665 = vstv %s571
    %vm666 = vcmp.gt.s32.totalorder %v326, %v665
    %v667 = vsel %vm666, 1, 0
    %668 = vset.pattern.permute.xlu0 0
    %669 = vperm.xlu0 %668, %v667
    %v670 = vpop.permute.xlu0 %669
    %vm671 = vcmp.eq.s32.totalorder %v670, 1
    %v672 = vsel %vm671, %v664, %v661
    %674 = vrot.lane.b32.xlu0 %v672, 96
    %v675 = vpop.permute.xlu0 %674
    %677 = vst.msk [vmem:[#allocation2] sm:$0xff] %vm239, %v675
    %v678 = vsel %vm671, %v664, 0.0
    %v679 = vpack.c.bf16 %v678, %v678
    %v681 = vunpack.c.l.b16 %v679
    %v682 = vpack.c.b16 %v681, %v681
    %683 = vrot.lane.b32.xlu0 %v682, 96
    %v684 = vpop.permute.xlu0 %683
    %s686 = scalar_lea.vmem [#allocation4], 20
    %687 = vst.msk [vmem:[%s686] sm:$0xf] %vm452, %v684
    %s688 = sadd.s32 %s329, 4
    %v689 = vld [vmem:[#allocation2] sm:$0xff]
    %v690 = vpack.c.bf16 %v689, %v689
    %v691 = vld [vmem:[#allocation11] sm:$0xf]
    %v692 = vld [vmem:[#allocation11 + $0x4] sm:$0xf]
    %v693 = vld [vmem:[#allocation11 + $0x8] sm:$0xf]
    %v694 = vld [vmem:[#allocation11 + $0xc] sm:$0xf]
    %v699 = vunpack.c.l.b16 %v691
    %v700 = vunpack.c.l.b16 %v692
    %v701 = vunpack.c.l.b16 %v693
    %v702 = vunpack.c.l.b16 %v694
    %v703 = vpack.c.b16 %v700, %v699
    %v704 = vpack.c.b16 %v702, %v701
    %v708 = vsel %vm239, %v690, 0
    %710 = vmatprep.subr.bf16.mxu0 0
    %711 = vmatpush1.bf16.msra.mxu0 %v703
    %712 = vmatprep.subr.bf16.mxu0 0
    %713 = vmatpush1.bf16.msra.mxu0 %v704
    %714 = vmatprep.subr.bf16.mxu0 0
    %715 = vmatpush1.bf16.msra.mxu0 0
    %716 = vmatprep.subr.bf16.mxu0 0
    %717 = vmatpush1.bf16.msra.mxu0 0
    %718 = vmatprep.subr.bf16.mxu0 0
    %719 = vmatpush1.bf16.msra.mxu0 0
    %720 = vmatprep.subr.bf16.mxu0 0
    %721 = vmatpush1.bf16.msra.mxu0 0
    %722 = vmatprep.subr.bf16.mxu0 0
    %723 = vmatpush1.bf16.msra.mxu0 0
    %724 = vmatprep.subr.bf16.mxu0 0
    %725 = vmatpush1.bf16.msra.mxu0 0
    %726 = vmatprep.subr.bf16.mxu0 0
    %727 = vmatpush1.bf16.msra.mxu0 0
    %728 = vmatprep.subr.bf16.mxu0 0
    %729 = vmatpush1.bf16.msra.mxu0 0
    %730 = vmatprep.subr.bf16.mxu0 0
    %731 = vmatpush1.bf16.msra.mxu0 0
    %732 = vmatprep.subr.bf16.mxu0 0
    %733 = vmatpush1.bf16.msra.mxu0 0
    %734 = vmatprep.subr.bf16.mxu0 0
    %735 = vmatpush1.bf16.msra.mxu0 0
    %736 = vmatprep.subr.bf16.mxu0 0
    %737 = vmatpush1.bf16.msra.mxu0 0
    %738 = vmatprep.subr.bf16.mxu0 0
    %739 = vmatpush1.bf16.msra.mxu0 0
    %740 = vmatprep.subr.bf16.mxu0 0
    %741 = vmatpush1.bf16.msra.mxu0 0
    %742 = vmatprep.mubr.bf16.mxu0 0
    %743 = vmatmul.mubr.bf16.gmra.mrb[0].mxu0 %v708
    %v744 = vpop.f32.mrb[0].mxu0
    %v745 = vadd.f32 %v341, %v744
    %v746 = vpop.f32.mrb[0].mxu0
    %v747 = vpop.f32.mrb[0].mxu0
    %v748 = vpop.f32.mrb[0].mxu0
    %749 = vdwg.mxu0
    %s750 = scalar_lea.vmem [#allocation3], 32
    %v751 = vld [vmem:[%s750] sm:$0xff]
    %v752 = vadd.f32 %v751, %v745
    %v753 = vxor.u32 %v752, 2147483648
    %v754 = vmul.f32 %v753, 1.442695
    %v755 = vpow.pop %v754
    %v756 = vadd.f32 %v755, 1.0
    %v757 = vrcp.pop %v756
    %v758 = vmul.f32 1.0, %v757
    %760 = vrot.lane.b32.xlu0 %v745, 64
    %v761 = vpop.permute.xlu0 %760
    %v763 = vmul.f32 %v758, %v761
    %765 = vrot.lane.b32.xlu0 %v763, 64
    %v766 = vpop.permute.xlu0 %765
    %v768 = vadd.f32 %v751, %v766
    %v769 = vtanh.pop %v768
    %v770 = vsub.f32 1.0, %v758
    %772 = vrot.lane.b32.xlu0 %v769, 96
    %v773 = vpop.permute.xlu0 %772
    %v775 = vmul.f32 %v770, %v773
    %777 = vrot.lane.b32.xlu0 %v689, 32
    %v778 = vpop.permute.xlu0 %777
    %v780 = vmul.f32 %v758, %v778
    %v781 = vadd.f32 %v775, %v780
    %v782 = vstv %s688
    %vm783 = vcmp.gt.s32.totalorder %v326, %v782
    %v784 = vsel %vm783, 1, 0
    %785 = vset.pattern.permute.xlu0 0
    %786 = vperm.xlu0 %785, %v784
    %v787 = vpop.permute.xlu0 %786
    %vm788 = vcmp.eq.s32.totalorder %v787, 1
    %v789 = vsel %vm788, %v781, %v778
    %791 = vrot.lane.b32.xlu0 %v789, 96
    %v792 = vpop.permute.xlu0 %791
    %794 = vst.msk [vmem:[#allocation2] sm:$0xff] %vm239, %v792
    %v795 = vsel %vm788, %v781, 0.0
    %v796 = vpack.c.bf16 %v795, %v795
    %v798 = vunpack.c.l.b16 %v796
    %v799 = vpack.c.b16 %v798, %v798
    %800 = vrot.lane.b32.xlu0 %v799, 96
    %v801 = vpop.permute.xlu0 %800
    %s803 = scalar_lea.vmem [#allocation4], 16
    %804 = vst.msk [vmem:[%s803] sm:$0xf] %vm452, %v801
    %s805 = sadd.s32 %s329, 3
    %v806 = vld [vmem:[#allocation2] sm:$0xff]
    %v807 = vpack.c.bf16 %v806, %v806
    %v808 = vld [vmem:[#allocation11] sm:$0xf]
    %v809 = vld [vmem:[#allocation11 + $0x4] sm:$0xf]
    %v810 = vld [vmem:[#allocation11 + $0x8] sm:$0xf]
    %v811 = vld [vmem:[#allocation11 + $0xc] sm:$0xf]
    %v816 = vunpack.c.l.b16 %v808
    %v817 = vunpack.c.l.b16 %v809
    %v818 = vunpack.c.l.b16 %v810
    %v819 = vunpack.c.l.b16 %v811
    %v820 = vpack.c.b16 %v817, %v816
    %v821 = vpack.c.b16 %v819, %v818
    %v825 = vsel %vm239, %v807, 0
    %827 = vmatprep.subr.bf16.mxu0 0
    %828 = vmatpush1.bf16.msra.mxu0 %v820
    %829 = vmatprep.subr.bf16.mxu0 0
    %830 = vmatpush1.bf16.msra.mxu0 %v821
    %831 = vmatprep.subr.bf16.mxu0 0
    %832 = vmatpush1.bf16.msra.mxu0 0
    %833 = vmatprep.subr.bf16.mxu0 0
    %834 = vmatpush1.bf16.msra.mxu0 0
    %835 = vmatprep.subr.bf16.mxu0 0
    %836 = vmatpush1.bf16.msra.mxu0 0
    %837 = vmatprep.subr.bf16.mxu0 0
    %838 = vmatpush1.bf16.msra.mxu0 0
    %839 = vmatprep.subr.bf16.mxu0 0
    %840 = vmatpush1.bf16.msra.mxu0 0
    %841 = vmatprep.subr.bf16.mxu0 0
    %842 = vmatpush1.bf16.msra.mxu0 0
    %843 = vmatprep.subr.bf16.mxu0 0
    %844 = vmatpush1.bf16.msra.mxu0 0
    %845 = vmatprep.subr.bf16.mxu0 0
    %846 = vmatpush1.bf16.msra.mxu0 0
    %847 = vmatprep.subr.bf16.mxu0 0
    %848 = vmatpush1.bf16.msra.mxu0 0
    %849 = vmatprep.subr.bf16.mxu0 0
    %850 = vmatpush1.bf16.msra.mxu0 0
    %851 = vmatprep.subr.bf16.mxu0 0
    %852 = vmatpush1.bf16.msra.mxu0 0
    %853 = vmatprep.subr.bf16.mxu0 0
    %854 = vmatpush1.bf16.msra.mxu0 0
    %855 = vmatprep.subr.bf16.mxu0 0
    %856 = vmatpush1.bf16.msra.mxu0 0
    %857 = vmatprep.subr.bf16.mxu0 0
    %858 = vmatpush1.bf16.msra.mxu0 0
    %859 = vmatprep.mubr.bf16.mxu0 0
    %860 = vmatmul.mubr.bf16.gmra.mrb[0].mxu0 %v825
    %v861 = vpop.f32.mrb[0].mxu0
    %v862 = vadd.f32 %v341, %v861
    %v863 = vpop.f32.mrb[0].mxu0
    %v864 = vpop.f32.mrb[0].mxu0
    %v865 = vpop.f32.mrb[0].mxu0
    %866 = vdwg.mxu0
    %s867 = scalar_lea.vmem [#allocation3], 24
    %v868 = vld [vmem:[%s867] sm:$0xff]
    %v869 = vadd.f32 %v868, %v862
    %v870 = vxor.u32 %v869, 2147483648
    %v871 = vmul.f32 %v870, 1.442695
    %v872 = vpow.pop %v871
    %v873 = vadd.f32 %v872, 1.0
    %v874 = vrcp.pop %v873
    %v875 = vmul.f32 1.0, %v874
    %877 = vrot.lane.b32.xlu0 %v862, 64
    %v878 = vpop.permute.xlu0 %877
    %v880 = vmul.f32 %v875, %v878
    %882 = vrot.lane.b32.xlu0 %v880, 64
    %v883 = vpop.permute.xlu0 %882
    %v885 = vadd.f32 %v868, %v883
    %v886 = vtanh.pop %v885
    %v887 = vsub.f32 1.0, %v875
    %889 = vrot.lane.b32.xlu0 %v886, 96
    %v890 = vpop.permute.xlu0 %889
    %v892 = vmul.f32 %v887, %v890
    %894 = vrot.lane.b32.xlu0 %v806, 32
    %v895 = vpop.permute.xlu0 %894
    %v897 = vmul.f32 %v875, %v895
    %v898 = vadd.f32 %v892, %v897
    %v899 = vstv %s805
    %vm900 = vcmp.gt.s32.totalorder %v326, %v899
    %v901 = vsel %vm900, 1, 0
    %902 = vset.pattern.permute.xlu0 0
    %903 = vperm.xlu0 %902, %v901
    %v904 = vpop.permute.xlu0 %903
    %vm905 = vcmp.eq.s32.totalorder %v904, 1
    %v906 = vsel %vm905, %v898, %v895
    %908 = vrot.lane.b32.xlu0 %v906, 96
    %v909 = vpop.permute.xlu0 %908
    %911 = vst.msk [vmem:[#allocation2] sm:$0xff] %vm239, %v909
    %v912 = vsel %vm905, %v898, 0.0
    %v913 = vpack.c.bf16 %v912, %v912
    %v915 = vunpack.c.l.b16 %v913
    %v916 = vpack.c.b16 %v915, %v915
    %917 = vrot.lane.b32.xlu0 %v916, 96
    %v918 = vpop.permute.xlu0 %917
    %s920 = scalar_lea.vmem [#allocation4], 12
    %921 = vst.msk [vmem:[%s920] sm:$0xf] %vm452, %v918
    %s922 = sadd.s32 %s329, 2
    %v923 = vld [vmem:[#allocation2] sm:$0xff]
    %v924 = vpack.c.bf16 %v923, %v923
    %v925 = vld [vmem:[#allocation11] sm:$0xf]
    %v926 = vld [vmem:[#allocation11 + $0x4] sm:$0xf]
    %v927 = vld [vmem:[#allocation11 + $0x8] sm:$0xf]
    %v928 = vld [vmem:[#allocation11 + $0xc] sm:$0xf]
    %v933 = vunpack.c.l.b16 %v925
    %v934 = vunpack.c.l.b16 %v926
    %v935 = vunpack.c.l.b16 %v927
    %v936 = vunpack.c.l.b16 %v928
    %v937 = vpack.c.b16 %v934, %v933
    %v938 = vpack.c.b16 %v936, %v935
    %v942 = vsel %vm239, %v924, 0
    %944 = vmatprep.subr.bf16.mxu0 0
    %945 = vmatpush1.bf16.msra.mxu0 %v937
    %946 = vmatprep.subr.bf16.mxu0 0
    %947 = vmatpush1.bf16.msra.mxu0 %v938
    %948 = vmatprep.subr.bf16.mxu0 0
    %949 = vmatpush1.bf16.msra.mxu0 0
    %950 = vmatprep.subr.bf16.mxu0 0
    %951 = vmatpush1.bf16.msra.mxu0 0
    %952 = vmatprep.subr.bf16.mxu0 0
    %953 = vmatpush1.bf16.msra.mxu0 0
    %954 = vmatprep.subr.bf16.mxu0 0
    %955 = vmatpush1.bf16.msra.mxu0 0
    %956 = vmatprep.subr.bf16.mxu0 0
    %957 = vmatpush1.bf16.msra.mxu0 0
    %958 = vmatprep.subr.bf16.mxu0 0
    %959 = vmatpush1.bf16.msra.mxu0 0
    %960 = vmatprep.subr.bf16.mxu0 0
    %961 = vmatpush1.bf16.msra.mxu0 0
    %962 = vmatprep.subr.bf16.mxu0 0
    %963 = vmatpush1.bf16.msra.mxu0 0
    %964 = vmatprep.subr.bf16.mxu0 0
    %965 = vmatpush1.bf16.msra.mxu0 0
    %966 = vmatprep.subr.bf16.mxu0 0
    %967 = vmatpush1.bf16.msra.mxu0 0
    %968 = vmatprep.subr.bf16.mxu0 0
    %969 = vmatpush1.bf16.msra.mxu0 0
    %970 = vmatprep.subr.bf16.mxu0 0
    %971 = vmatpush1.bf16.msra.mxu0 0
    %972 = vmatprep.subr.bf16.mxu0 0
    %973 = vmatpush1.bf16.msra.mxu0 0
    %974 = vmatprep.subr.bf16.mxu0 0
    %975 = vmatpush1.bf16.msra.mxu0 0
    %976 = vmatprep.mubr.bf16.mxu0 0
    %977 = vmatmul.mubr.bf16.gmra.mrb[0].mxu0 %v942
    %v978 = vpop.f32.mrb[0].mxu0
    %v979 = vadd.f32 %v341, %v978
    %v980 = vpop.f32.mrb[0].mxu0
    %v981 = vpop.f32.mrb[0].mxu0
    %v982 = vpop.f32.mrb[0].mxu0
    %983 = vdwg.mxu0
    %s984 = scalar_lea.vmem [#allocation3], 16
    %v985 = vld [vmem:[%s984] sm:$0xff]
    %v986 = vadd.f32 %v985, %v979
    %v987 = vxor.u32 %v986, 2147483648
    %v988 = vmul.f32 %v987, 1.442695
    %v989 = vpow.pop %v988
    %v990 = vadd.f32 %v989, 1.0
    %v991 = vrcp.pop %v990
    %v992 = vmul.f32 1.0, %v991
    %994 = vrot.lane.b32.xlu0 %v979, 64
    %v995 = vpop.permute.xlu0 %994
    %v997 = vmul.f32 %v992, %v995
    %999 = vrot.lane.b32.xlu0 %v997, 64
    %v1000 = vpop.permute.xlu0 %999
    %v1002 = vadd.f32 %v985, %v1000
    %v1003 = vtanh.pop %v1002
    %v1004 = vsub.f32 1.0, %v992
    %1006 = vrot.lane.b32.xlu0 %v1003, 96
    %v1007 = vpop.permute.xlu0 %1006
    %v1009 = vmul.f32 %v1004, %v1007
    %1011 = vrot.lane.b32.xlu0 %v923, 32
    %v1012 = vpop.permute.xlu0 %1011
    %v1014 = vmul.f32 %v992, %v1012
    %v1015 = vadd.f32 %v1009, %v1014
    %v1016 = vstv %s922
    %vm1017 = vcmp.gt.s32.totalorder %v326, %v1016
    %v1018 = vsel %vm1017, 1, 0
    %1019 = vset.pattern.permute.xlu0 0
    %1020 = vperm.xlu0 %1019, %v1018
    %v1021 = vpop.permute.xlu0 %1020
    %vm1022 = vcmp.eq.s32.totalorder %v1021, 1
    %v1023 = vsel %vm1022, %v1015, %v1012
    %1025 = vrot.lane.b32.xlu0 %v1023, 96
    %v1026 = vpop.permute.xlu0 %1025
    %1028 = vst.msk [vmem:[#allocation2] sm:$0xff] %vm239, %v1026
    %v1029 = vsel %vm1022, %v1015, 0.0
    %v1030 = vpack.c.bf16 %v1029, %v1029
    %v1032 = vunpack.c.l.b16 %v1030
    %v1033 = vpack.c.b16 %v1032, %v1032
    %1034 = vrot.lane.b32.xlu0 %v1033, 96
    %v1035 = vpop.permute.xlu0 %1034
    %s1037 = scalar_lea.vmem [#allocation4], 8
    %1038 = vst.msk [vmem:[%s1037] sm:$0xf] %vm452, %v1035
    %s1039 = sadd.s32 %s329, 1
    %v1040 = vld [vmem:[#allocation2] sm:$0xff]
    %v1041 = vpack.c.bf16 %v1040, %v1040
    %v1042 = vld [vmem:[#allocation11] sm:$0xf]
    %v1043 = vld [vmem:[#allocation11 + $0x4] sm:$0xf]
    %v1044 = vld [vmem:[#allocation11 + $0x8] sm:$0xf]
    %v1045 = vld [vmem:[#allocation11 + $0xc] sm:$0xf]
    %v1050 = vunpack.c.l.b16 %v1042
    %v1051 = vunpack.c.l.b16 %v1043
    %v1052 = vunpack.c.l.b16 %v1044
    %v1053 = vunpack.c.l.b16 %v1045
    %v1054 = vpack.c.b16 %v1051, %v1050
    %v1055 = vpack.c.b16 %v1053, %v1052
    %v1059 = vsel %vm239, %v1041, 0
    %1061 = vmatprep.subr.bf16.mxu0 0
    %1062 = vmatpush1.bf16.msra.mxu0 %v1054
    %1063 = vmatprep.subr.bf16.mxu0 0
    %1064 = vmatpush1.bf16.msra.mxu0 %v1055
    %1065 = vmatprep.subr.bf16.mxu0 0
    %1066 = vmatpush1.bf16.msra.mxu0 0
    %1067 = vmatprep.subr.bf16.mxu0 0
    %1068 = vmatpush1.bf16.msra.mxu0 0
    %1069 = vmatprep.subr.bf16.mxu0 0
    %1070 = vmatpush1.bf16.msra.mxu0 0
    %1071 = vmatprep.subr.bf16.mxu0 0
    %1072 = vmatpush1.bf16.msra.mxu0 0
    %1073 = vmatprep.subr.bf16.mxu0 0
    %1074 = vmatpush1.bf16.msra.mxu0 0
    %1075 = vmatprep.subr.bf16.mxu0 0
    %1076 = vmatpush1.bf16.msra.mxu0 0
    %1077 = vmatprep.subr.bf16.mxu0 0
    %1078 = vmatpush1.bf16.msra.mxu0 0
    %1079 = vmatprep.subr.bf16.mxu0 0
    %1080 = vmatpush1.bf16.msra.mxu0 0
    %1081 = vmatprep.subr.bf16.mxu0 0
    %1082 = vmatpush1.bf16.msra.mxu0 0
    %1083 = vmatprep.subr.bf16.mxu0 0
    %1084 = vmatpush1.bf16.msra.mxu0 0
    %1085 = vmatprep.subr.bf16.mxu0 0
    %1086 = vmatpush1.bf16.msra.mxu0 0
    %1087 = vmatprep.subr.bf16.mxu0 0
    %1088 = vmatpush1.bf16.msra.mxu0 0
    %1089 = vmatprep.subr.bf16.mxu0 0
    %1090 = vmatpush1.bf16.msra.mxu0 0
    %1091 = vmatprep.subr.bf16.mxu0 0
    %1092 = vmatpush1.bf16.msra.mxu0 0
    %1093 = vmatprep.mubr.bf16.mxu0 0
    %1094 = vmatmul.mubr.bf16.gmra.mrb[0].mxu0 %v1059
    %v1095 = vpop.f32.mrb[0].mxu0
    %v1096 = vadd.f32 %v341, %v1095
    %v1097 = vpop.f32.mrb[0].mxu0
    %v1098 = vpop.f32.mrb[0].mxu0
    %v1099 = vpop.f32.mrb[0].mxu0
    %1100 = vdwg.mxu0
    %s1101 = scalar_lea.vmem [#allocation3], 8
    %v1102 = vld [vmem:[%s1101] sm:$0xff]
    %v1103 = vadd.f32 %v1102, %v1096
    %v1104 = vxor.u32 %v1103, 2147483648
    %v1105 = vmul.f32 %v1104, 1.442695
    %v1106 = vpow.pop %v1105
    %v1107 = vadd.f32 %v1106, 1.0
    %v1108 = vrcp.pop %v1107
    %v1109 = vmul.f32 1.0, %v1108
    %1111 = vrot.lane.b32.xlu0 %v1096, 64
    %v1112 = vpop.permute.xlu0 %1111
    %v1114 = vmul.f32 %v1109, %v1112
    %1116 = vrot.lane.b32.xlu0 %v1114, 64
    %v1117 = vpop.permute.xlu0 %1116
    %v1119 = vadd.f32 %v1102, %v1117
    %v1120 = vtanh.pop %v1119
    %v1121 = vsub.f32 1.0, %v1109
    %1123 = vrot.lane.b32.xlu0 %v1120, 96
    %v1124 = vpop.permute.xlu0 %1123
    %v1126 = vmul.f32 %v1121, %v1124
    %1128 = vrot.lane.b32.xlu0 %v1040, 32
    %v1129 = vpop.permute.xlu0 %1128
    %v1131 = vmul.f32 %v1109, %v1129
    %v1132 = vadd.f32 %v1126, %v1131
    %v1133 = vstv %s1039
    %vm1134 = vcmp.gt.s32.totalorder %v326, %v1133
    %v1135 = vsel %vm1134, 1, 0
    %1136 = vset.pattern.permute.xlu0 0
    %1137 = vperm.xlu0 %1136, %v1135
    %v1138 = vpop.permute.xlu0 %1137
    %vm1139 = vcmp.eq.s32.totalorder %v1138, 1
    %v1140 = vsel %vm1139, %v1132, %v1129
    %1142 = vrot.lane.b32.xlu0 %v1140, 96
    %v1143 = vpop.permute.xlu0 %1142
    %1145 = vst.msk [vmem:[#allocation2] sm:$0xff] %vm239, %v1143
    %v1146 = vsel %vm1139, %v1132, 0.0
    %v1147 = vpack.c.bf16 %v1146, %v1146
    %v1149 = vunpack.c.l.b16 %v1147
    %v1150 = vpack.c.b16 %v1149, %v1149
    %1151 = vrot.lane.b32.xlu0 %v1150, 96
    %v1152 = vpop.permute.xlu0 %1151
    %s1154 = scalar_lea.vmem [#allocation4], 4
    %1155 = vst.msk [vmem:[%s1154] sm:$0xf] %vm452, %v1152
    %v1156 = vld [vmem:[#allocation2] sm:$0xff]
    %v1157 = vpack.c.bf16 %v1156, %v1156
    %v1158 = vld [vmem:[#allocation11] sm:$0xf]
    %v1159 = vld [vmem:[#allocation11 + $0x4] sm:$0xf]
    %v1160 = vld [vmem:[#allocation11 + $0x8] sm:$0xf]
    %v1161 = vld [vmem:[#allocation11 + $0xc] sm:$0xf]
    %v1166 = vunpack.c.l.b16 %v1158
    %v1167 = vunpack.c.l.b16 %v1159
    %v1168 = vunpack.c.l.b16 %v1160
    %v1169 = vunpack.c.l.b16 %v1161
    %v1170 = vpack.c.b16 %v1167, %v1166
    %v1171 = vpack.c.b16 %v1169, %v1168
    %v1175 = vsel %vm239, %v1157, 0
    %1177 = vmatprep.subr.bf16.mxu0 0
    %1178 = vmatpush1.bf16.msra.mxu0 %v1170
    %1179 = vmatprep.subr.bf16.mxu0 0
    %1180 = vmatpush1.bf16.msra.mxu0 %v1171
    %1181 = vmatprep.subr.bf16.mxu0 0
    %1182 = vmatpush1.bf16.msra.mxu0 0
    %1183 = vmatprep.subr.bf16.mxu0 0
    %1184 = vmatpush1.bf16.msra.mxu0 0
    %1185 = vmatprep.subr.bf16.mxu0 0
    %1186 = vmatpush1.bf16.msra.mxu0 0
    %1187 = vmatprep.subr.bf16.mxu0 0
    %1188 = vmatpush1.bf16.msra.mxu0 0
    %1189 = vmatprep.subr.bf16.mxu0 0
    %1190 = vmatpush1.bf16.msra.mxu0 0
    %1191 = vmatprep.subr.bf16.mxu0 0
    %1192 = vmatpush1.bf16.msra.mxu0 0
    %1193 = vmatprep.subr.bf16.mxu0 0
    %1194 = vmatpush1.bf16.msra.mxu0 0
    %1195 = vmatprep.subr.bf16.mxu0 0
    %1196 = vmatpush1.bf16.msra.mxu0 0
    %1197 = vmatprep.subr.bf16.mxu0 0
    %1198 = vmatpush1.bf16.msra.mxu0 0
    %1199 = vmatprep.subr.bf16.mxu0 0
    %1200 = vmatpush1.bf16.msra.mxu0 0
    %1201 = vmatprep.subr.bf16.mxu0 0
    %1202 = vmatpush1.bf16.msra.mxu0 0
    %1203 = vmatprep.subr.bf16.mxu0 0
    %1204 = vmatpush1.bf16.msra.mxu0 0
    %1205 = vmatprep.subr.bf16.mxu0 0
    %1206 = vmatpush1.bf16.msra.mxu0 0
    %1207 = vmatprep.subr.bf16.mxu0 0
    %1208 = vmatpush1.bf16.msra.mxu0 0
    %1209 = vmatprep.mubr.bf16.mxu0 0
    %1210 = vmatmul.mubr.bf16.gmra.mrb[0].mxu0 %v1175
    %v1211 = vpop.f32.mrb[0].mxu0
    %v1212 = vadd.f32 %v341, %v1211
    %v1213 = vpop.f32.mrb[0].mxu0
    %v1214 = vpop.f32.mrb[0].mxu0
    %v1215 = vpop.f32.mrb[0].mxu0
    %1216 = vdwg.mxu0
    %v1217 = vld [vmem:[#allocation3] sm:$0xff]
    %v1218 = vadd.f32 %v1217, %v1212
    %v1219 = vxor.u32 %v1218, 2147483648
    %v1220 = vmul.f32 %v1219, 1.442695
    %v1221 = vpow.pop %v1220
    %v1222 = vadd.f32 %v1221, 1.0
    %v1223 = vrcp.pop %v1222
    %v1224 = vmul.f32 1.0, %v1223
    %1226 = vrot.lane.b32.xlu0 %v1212, 64
    %v1227 = vpop.permute.xlu0 %1226
    %v1229 = vmul.f32 %v1224, %v1227
    %1231 = vrot.lane.b32.xlu0 %v1229, 64
    %v1232 = vpop.permute.xlu0 %1231
    %v1234 = vadd.f32 %v1217, %v1232
    %v1235 = vtanh.pop %v1234
    %v1236 = vsub.f32 1.0, %v1224
    %1238 = vrot.lane.b32.xlu0 %v1235, 96
    %v1239 = vpop.permute.xlu0 %1238
    %v1241 = vmul.f32 %v1236, %v1239
    %1243 = vrot.lane.b32.xlu0 %v1156, 32
    %v1244 = vpop.permute.xlu0 %1243
    %v1246 = vmul.f32 %v1224, %v1244
    %v1247 = vadd.f32 %v1241, %v1246
    %v1248 = vstv %s329
    %vm1249 = vcmp.gt.s32.totalorder %v326, %v1248
    %v1250 = vsel %vm1249, 1, 0
    %1251 = vset.pattern.permute.xlu0 0
    %1252 = vperm.xlu0 %1251, %v1250
    %v1253 = vpop.permute.xlu0 %1252
    %vm1254 = vcmp.eq.s32.totalorder %v1253, 1
    %v1255 = vsel %vm1254, %v1247, %v1244
    %1257 = vrot.lane.b32.xlu0 %v1255, 96
    %v1258 = vpop.permute.xlu0 %1257
    %1260 = vst.msk [vmem:[#allocation2] sm:$0xff] %vm239, %v1258
    %v1261 = vsel %vm1254, %v1247, 0.0
    %v1262 = vpack.c.bf16 %v1261, %v1261
    %v1264 = vunpack.c.l.b16 %v1262
    %v1265 = vpack.c.b16 %v1264, %v1264
    %1266 = vrot.lane.b32.xlu0 %v1265, 96
    %v1267 = vpop.permute.xlu0 %1266
    %1269 = vst.msk [vmem:[#allocation4] sm:$0xf] %vm452, %v1267
    %v1270 = vld [vmem:[#allocation2] sm:$0xff]
    %1271 = vst.msk [vmem:[#allocation23] sm:$0xff] %vm239, %v1270
    %v1272 = vld [vmem:[#allocation16] sm:$0xf]
    %v1273 = vld [vmem:[#allocation16 + $0x4] sm:$0xf]
    %v1274 = vld [vmem:[#allocation16 + $0x8] sm:$0xf]
    %v1275 = vld [vmem:[#allocation16 + $0xc] sm:$0xf]
    %v1276 = vld [vmem:[#allocation16 + $0x10] sm:$0xf]
    %v1277 = vld [vmem:[#allocation16 + $0x14] sm:$0xf]
    %v1278 = vld [vmem:[#allocation16 + $0x18] sm:$0xf]
    %v1279 = vld [vmem:[#allocation16 + $0x1c] sm:$0xf]
    %v1280 = vld [vmem:[#allocation4] sm:$0xf]
    %v1281 = vld [vmem:[#allocation4 + $0x4] sm:$0xf]
    %v1282 = vld [vmem:[#allocation4 + $0x8] sm:$0xf]
    %v1283 = vld [vmem:[#allocation4 + $0xc] sm:$0xf]
    %v1284 = vld [vmem:[#allocation4 + $0x10] sm:$0xf]
    %v1285 = vld [vmem:[#allocation4 + $0x14] sm:$0xf]
    %v1286 = vld [vmem:[#allocation4 + $0x18] sm:$0xf]
    %v1287 = vld [vmem:[#allocation4 + $0x1c] sm:$0xf]
    %v1288 = vld [vmem:[#allocation17] sm:$0xf]
    %v1289 = vld [vmem:[#allocation17 + $0x4] sm:$0xf]
    %v1290 = vld [vmem:[#allocation17 + $0x8] sm:$0xf]
    %v1291 = vld [vmem:[#allocation17 + $0xc] sm:$0xf]
    %v1292 = vld [vmem:[#allocation19] sm:$0xf]
    %v1293 = vld [vmem:[#allocation19 + $0x4] sm:$0xf]
    %v1294 = vld [vmem:[#allocation19 + $0x8] sm:$0xf]
    %v1295 = vld [vmem:[#allocation19 + $0xc] sm:$0xf]
    %v1304 = vunpack.c.l.b16 %v1280
    %v1305 = vunpack.c.l.b16 %v1281
    %v1306 = vunpack.c.l.b16 %v1282
    %v1307 = vunpack.c.l.b16 %v1283
    %v1308 = vunpack.c.l.b16 %v1284
    %v1309 = vunpack.c.l.b16 %v1285
    %v1310 = vunpack.c.l.b16 %v1286
    %v1311 = vunpack.c.l.b16 %v1287
    %v1312 = vpack.c.b16 %v1305, %v1304
    %v1313 = vpack.c.b16 %v1307, %v1306
    %v1314 = vpack.c.b16 %v1309, %v1308
    %v1315 = vpack.c.b16 %v1311, %v1310
    %v1320 = vunpack.c.l.b16 %v1292
    %v1321 = vunpack.c.l.b16 %v1293
    %v1322 = vunpack.c.l.b16 %v1294
    %v1323 = vunpack.c.l.b16 %v1295
    %v1324 = vpack.c.b16 %v1321, %v1320
    %v1325 = vpack.c.b16 %v1323, %v1322
    %v1329 = vsel %vm239, %v1312, 0
    %v1332 = vsel %vm239, %v1313, 0
    %v1335 = vsel %vm239, %v1314, 0
    %v1338 = vsel %vm239, %v1315, 0
    %1340 = vmatprep.subr.bf16.mxu0 0
    %1341 = vmatpush1.bf16.msra.mxu0 %v1324
    %1342 = vmatprep.subr.bf16.mxu0 0
    %1343 = vmatpush1.bf16.msra.mxu0 %v1325
    %1344 = vmatprep.subr.bf16.mxu0 0
    %1345 = vmatpush1.bf16.msra.mxu0 0
    %1346 = vmatprep.subr.bf16.mxu0 0
    %1347 = vmatpush1.bf16.msra.mxu0 0
    %1348 = vmatprep.subr.bf16.mxu0 0
    %1349 = vmatpush1.bf16.msra.mxu0 0
    %1350 = vmatprep.subr.bf16.mxu0 0
    %1351 = vmatpush1.bf16.msra.mxu0 0
    %1352 = vmatprep.subr.bf16.mxu0 0
    %1353 = vmatpush1.bf16.msra.mxu0 0
    %1354 = vmatprep.subr.bf16.mxu0 0
    %1355 = vmatpush1.bf16.msra.mxu0 0
    %1356 = vmatprep.subr.bf16.mxu0 0
    %1357 = vmatpush1.bf16.msra.mxu0 0
    %1358 = vmatprep.subr.bf16.mxu0 0
    %1359 = vmatpush1.bf16.msra.mxu0 0
    %1360 = vmatprep.subr.bf16.mxu0 0
    %1361 = vmatpush1.bf16.msra.mxu0 0
    %1362 = vmatprep.subr.bf16.mxu0 0
    %1363 = vmatpush1.bf16.msra.mxu0 0
    %1364 = vmatprep.subr.bf16.mxu0 0
    %1365 = vmatpush1.bf16.msra.mxu0 0
    %1366 = vmatprep.subr.bf16.mxu0 0
    %1367 = vmatpush1.bf16.msra.mxu0 0
    %1368 = vmatprep.subr.bf16.mxu0 0
    %1369 = vmatpush1.bf16.msra.mxu0 0
    %1370 = vmatprep.subr.bf16.mxu0 0
    %1371 = vmatpush1.bf16.msra.mxu0 0
    %1372 = vmatprep.mubr.bf16.mxu0 0
    %1373 = vmatmul.mubr.bf16.gmra.mrb[0].mxu0 %v1329
    %v1374 = vpop.f32.mrb[0].mxu0
    %v1375 = vadd.f32 0.0, %v1374
    %v1376 = vpop.f32.mrb[0].mxu0
    %v1377 = vpop.f32.mrb[0].mxu0
    %v1378 = vadd.f32 0.0, %v1377
    %v1379 = vpop.f32.mrb[0].mxu0
    %1380 = vmatprep.mubr.bf16.mxu0 0
    %1381 = vmatmul.mubr.bf16.gmra.mrb[0].mxu0 %v1332
    %v1382 = vpop.f32.mrb[0].mxu0
    %v1383 = vadd.f32 0.0, %v1382
    %v1384 = vpop.f32.mrb[0].mxu0
    %v1385 = vpop.f32.mrb[0].mxu0
    %v1386 = vadd.f32 0.0, %v1385
    %v1387 = vpop.f32.mrb[0].mxu0
    %1388 = vmatprep.mubr.bf16.mxu0 0
    %1389 = vmatmul.mubr.bf16.gmra.mrb[0].mxu0 %v1335
    %v1390 = vpop.f32.mrb[0].mxu0
    %v1391 = vadd.f32 0.0, %v1390
    %v1392 = vpop.f32.mrb[0].mxu0
    %v1393 = vpop.f32.mrb[0].mxu0
    %v1394 = vadd.f32 0.0, %v1393
    %v1395 = vpop.f32.mrb[0].mxu0
    %1396 = vmatprep.mubr.bf16.mxu0 0
    %1397 = vmatmul.mubr.bf16.gmra.mrb[0].mxu0 %v1338
    %v1398 = vpop.f32.mrb[0].mxu0
    %v1399 = vadd.f32 0.0, %v1398
    %v1400 = vpop.f32.mrb[0].mxu0
    %v1401 = vpop.f32.mrb[0].mxu0
    %v1402 = vadd.f32 0.0, %v1401
    %v1403 = vpop.f32.mrb[0].mxu0
    %1404 = vdwg.mxu0
    %v1413 = vunpack.c.l.b16 %v1272
    %v1414 = vunpack.c.l.b16 %v1273
    %v1415 = vunpack.c.l.b16 %v1274
    %v1416 = vunpack.c.l.b16 %v1275
    %v1417 = vunpack.c.l.b16 %v1276
    %v1418 = vunpack.c.l.b16 %v1277
    %v1419 = vunpack.c.l.b16 %v1278
    %v1420 = vunpack.c.l.b16 %v1279
    %v1421 = vpack.c.b16 %v1414, %v1413
    %v1422 = vpack.c.b16 %v1416, %v1415
    %v1423 = vpack.c.b16 %v1418, %v1417
    %v1424 = vpack.c.b16 %v1420, %v1419
    %v1429 = vunpack.c.l.b16 %v1288
    %v1430 = vunpack.c.l.b16 %v1289
    %v1431 = vunpack.c.l.b16 %v1290
    %v1432 = vunpack.c.l.b16 %v1291
    %v1433 = vpack.c.b16 %v1430, %v1429
    %v1434 = vpack.c.b16 %v1432, %v1431
    %v1438 = vsel %vm239, %v1421, 0
    %v1441 = vsel %vm239, %v1422, 0
    %v1444 = vsel %vm239, %v1423, 0
    %v1447 = vsel %vm239, %v1424, 0
    %1449 = vmatprep.subr.bf16.mxu0 0
    %1450 = vmatpush1.bf16.msra.mxu0 %v1433
    %1451 = vmatprep.subr.bf16.mxu0 0
    %1452 = vmatpush1.bf16.msra.mxu0 %v1434
    %1453 = vmatprep.subr.bf16.mxu0 0
    %1454 = vmatpush1.bf16.msra.mxu0 0
    %1455 = vmatprep.subr.bf16.mxu0 0
    %1456 = vmatpush1.bf16.msra.mxu0 0
    %1457 = vmatprep.subr.bf16.mxu0 0
    %1458 = vmatpush1.bf16.msra.mxu0 0
    %1459 = vmatprep.subr.bf16.mxu0 0
    %1460 = vmatpush1.bf16.msra.mxu0 0
    %1461 = vmatprep.subr.bf16.mxu0 0
    %1462 = vmatpush1.bf16.msra.mxu0 0
    %1463 = vmatprep.subr.bf16.mxu0 0
    %1464 = vmatpush1.bf16.msra.mxu0 0
    %1465 = vmatprep.subr.bf16.mxu0 0
    %1466 = vmatpush1.bf16.msra.mxu0 0
    %1467 = vmatprep.subr.bf16.mxu0 0
    %1468 = vmatpush1.bf16.msra.mxu0 0
    %1469 = vmatprep.subr.bf16.mxu0 0
    %1470 = vmatpush1.bf16.msra.mxu0 0
    %1471 = vmatprep.subr.bf16.mxu0 0
    %1472 = vmatpush1.bf16.msra.mxu0 0
    %1473 = vmatprep.subr.bf16.mxu0 0
    %1474 = vmatpush1.bf16.msra.mxu0 0
    %1475 = vmatprep.subr.bf16.mxu0 0
    %1476 = vmatpush1.bf16.msra.mxu0 0
    %1477 = vmatprep.subr.bf16.mxu0 0
    %1478 = vmatpush1.bf16.msra.mxu0 0
    %1479 = vmatprep.subr.bf16.mxu0 0
    %1480 = vmatpush1.bf16.msra.mxu0 0
    %1481 = vmatprep.mubr.bf16.mxu0 0
    %1482 = vmatmul.mubr.bf16.gmra.mrb[0].mxu0 %v1438
    %v1483 = vpop.f32.mrb[0].mxu0
    %v1484 = vadd.f32 %v1375, %v1483
    %v1485 = vpop.f32.mrb[0].mxu0
    %v1486 = vpop.f32.mrb[0].mxu0
    %v1487 = vadd.f32 %v1378, %v1486
    %v1488 = vpop.f32.mrb[0].mxu0
    %1489 = vmatprep.mubr.bf16.mxu0 0
    %1490 = vmatmul.mubr.bf16.gmra.mrb[0].mxu0 %v1441
    %v1491 = vpop.f32.mrb[0].mxu0
    %v1492 = vadd.f32 %v1383, %v1491
    %v1493 = vpop.f32.mrb[0].mxu0
    %v1494 = vpop.f32.mrb[0].mxu0
    %v1495 = vadd.f32 %v1386, %v1494
    %v1496 = vpop.f32.mrb[0].mxu0
    %1497 = vmatprep.mubr.bf16.mxu0 0
    %1498 = vmatmul.mubr.bf16.gmra.mrb[0].mxu0 %v1444
    %v1499 = vpop.f32.mrb[0].mxu0
    %v1500 = vadd.f32 %v1391, %v1499
    %v1501 = vpop.f32.mrb[0].mxu0
    %v1502 = vpop.f32.mrb[0].mxu0
    %v1503 = vadd.f32 %v1394, %v1502
    %v1504 = vpop.f32.mrb[0].mxu0
    %1505 = vmatprep.mubr.bf16.mxu0 0
    %1506 = vmatmul.mubr.bf16.gmra.mrb[0].mxu0 %v1447
    %v1507 = vpop.f32.mrb[0].mxu0
    %v1508 = vadd.f32 %v1399, %v1507
    %v1509 = vpop.f32.mrb[0].mxu0
    %v1510 = vpop.f32.mrb[0].mxu0
    %v1511 = vadd.f32 %v1402, %v1510
    %v1512 = vpop.f32.mrb[0].mxu0
    %1513 = vdwg.mxu0
    %v1514 = vld [vmem:[#allocation20] sm:$0x1]
    %v1516 = vlaneseq
    %v1517 = vshrl.u32 %v1516, 7
    %v1518 = vsub.s32 0, %v1517
    %v1519 = vrot.slane %v1514, %v1518
    %v1521 = vadd.f32 %v1484, %v1519
    %v1522 = vadd.f32 %v1487, %v1519
    %v1523 = vadd.f32 %v1492, %v1519
    %v1524 = vadd.f32 %v1495, %v1519
    %v1525 = vadd.f32 %v1500, %v1519
    %v1526 = vadd.f32 %v1503, %v1519
    %v1527 = vadd.f32 %v1508, %v1519
    %v1528 = vadd.f32 %v1511, %v1519
    %1529 = vst.msk [vmem:[#allocation22] sm:$0xff] %vm239, %v1521
    %1530 = vst.msk [vmem:[#allocation22 + $0x8] sm:$0xff] %vm239, %v1522
    %1531 = vst.msk [vmem:[#allocation22 + $0x10] sm:$0xff] %vm239, %v1523
    %1532 = vst.msk [vmem:[#allocation22 + $0x18] sm:$0xff] %vm239, %v1524
    %1533 = vst.msk [vmem:[#allocation22 + $0x20] sm:$0xff] %vm239, %v1525
    %1534 = vst.msk [vmem:[#allocation22 + $0x28] sm:$0xff] %vm239, %v1526
    %1535 = vst.msk [vmem:[#allocation22 + $0x30] sm:$0xff] %vm239, %v1527
    %1536 = vst.msk [vmem:[#allocation22 + $0x38] sm:$0xff] %vm239, %v1528
    // Predicated region
    $region86: #{encoder_forward.3} parent=1 // pred_check
      _
    $region87: #{encoder_forward.3} parent=1 // pred_check_branch
      %1538 = sbr.rel (0) target = $region89
    $region88: #{encoder_forward.3} parent=1 // pred_region
      %s1539 = ssub.s32 0, 0
      %s1540 = smul.u32 8, %s1539
      %s1542 = ssub.s32 1024, 1024
      %1543 = vsyncadd [#allocation7], %s1542
      %s1544 = smul.addr %s1540, 128
      %s1545 = scalar_lea.hbm %s10, %s1544
      %s1546 = sshll.u32 [#allocation22], 4
      %s1547 = int_to_ptr.vmem [resolvable:$true] %s1546
      %1552 = dma.vmem_to_hbm [thread:$0]  %s1547, 1024, %s1545, [#allocation7], 128, 128, 8
    $region89: #{encoder_forward.3} parent=1 // pred_fallthru
      _
    // Predicated region
    $region90: #{encoder_forward.3} parent=1 // pred_check
      _
    $region91: #{encoder_forward.3} parent=1 // pred_check_branch
      %1554 = sbr.rel (0) target = $region93
    $region92: #{encoder_forward.3} parent=1 // pred_region
      %s1556 = ssub.s32 128, 128
      %1557 = vsyncadd [#allocation24], %s1556
      %s1559 = sshll.u32 [#allocation23], 4
      %s1560 = int_to_ptr.vmem [resolvable:$true] %s1559
      %1562 = dma.vmem_to_hbm [thread:$0]  %s1560, 128, %s11, [#allocation24]
    $region93: #{encoder_forward.3} parent=1 // pred_fallthru
      _
    // Predicated region
    $region94: #{encoder_forward.3} parent=1 // pred_check
      _
    $region95: #{encoder_forward.3} parent=1 // pred_check_branch
      %1564 = sbr.rel (0) target = $region97
    $region96: #{encoder_forward.3} parent=1 // pred_region
      %1565 = dma.done [#allocation7], 1024
    $region97: #{encoder_forward.3} parent=1 // pred_fallthru
      _
    // Predicated region
    $region98: #{encoder_forward.3} parent=1 // pred_check
      _
    $region99: #{encoder_forward.3} parent=1 // pred_check_branch
      %1567 = sbr.rel (0) target = $region101
    $region100: #{encoder_forward.3} parent=1 // pred_region
      %1568 = dma.done [#allocation24], 128
    $region101: #{encoder_forward.3} parent=1 // pred_fallthru
      _
    %1569 = vsyncpa [#allocation6], 1
    %1570 = vsyncpa [#allocation9], 1
    %1571 = vsyncpa [#allocation12], 1
    %1572 = vsyncpa [#allocation15], 1
    %1573 = vsyncpa [#allocation18], 1
    %1574 = vsyncpa [#allocation21], 1
    %1575 = vsyncpa [#allocation7], 1
    %1576 = vsyncpa [#allocation24], 1

// kernel: encoder_forward.2
$region0: #{encoder_forward.2}
  #allocation0 [shape = 'u32[]', space=smem, size = 0x4, offset = 0x4, fixed_abs, tag = 'smem constant byte address 0x4 - core index']
  #allocation1 [shape = 'u32[144,128]{1,0:T(1,128)}', space=vmem, size = 0x12000, scoped, tag = 'internal scratch']
  #allocation2 [shape = 'f32[8,32]{1,0:T(8,128)}', space=vmem, size = 0x1000, scoped, tag = 'scratch operand']
  #allocation3 [shape = 'f32[8,8,96]{2,1,0:T(8,128)}', space=vmem, size = 0x8000, scoped, tag = 'scratch operand']
  %s0 = inlined_call_operand.hbm [shape: bf16[8,8,32], index: 0, kind: input, shape index: {}]
  %s1 = inlined_call_operand.hbm [shape: s32[8,1], index: 1, kind: input, shape index: {}]
  %s2 = inlined_call_operand.hbm [shape: bf16[32,96], index: 2, kind: input, shape index: {}]
  %s3 = inlined_call_operand.hbm [shape: bf16[32,96], index: 3, kind: input, shape index: {}]
  %s4 = inlined_call_operand.hbm [shape: f32[1,96], index: 4, kind: input, shape index: {}]
  %s5 = inlined_call_operand.hbm [shape: f32[1,96], index: 5, kind: input, shape index: {}]
  %s6 = inlined_call_operand.hbm [shape: bf16[8,8,32], index: 6, kind: output, shape index: {0}]
  %s7 = inlined_call_operand.hbm [shape: f32[8,32], index: 7, kind: output, shape index: {1}]
  %8 = xla_tuple %s6, %s7
  %s9 = sld [smem:[#allocation0]]
  $region70: #{encoder_forward.2} parent=0
    _
  %s11 = ssub.s32 1, %s9
  %s12 = scalar_select 0, %s11, %s9
  $region1: #{encoder_forward.2} parent=0
    #allocation4 [shape = 'u8[16384]{0}', space=vmem, size = 0x4000, scoped, tag = 'input window, operand 0, single buffered']
    #allocation5 [shape = 's32[1]{0}', space=sflag, size = 0x4, scoped, tag = 'scoped memory for encoder_forward.2']
    #allocation6 [shape = 's32[1]{0}', space=sflag, size = 0x4, scoped, tag = 'scoped memory for encoder_forward.2']
    #allocation7 [shape = 'u8[4096]{0}', space=vmem, size = 0x1000, scoped, tag = 'input window, operand 1, single buffered']
    #allocation8 [shape = 's32[1]{0}', space=sflag, size = 0x4, scoped, tag = 'scoped memory for encoder_forward.2']
    #allocation9 [shape = 'u8[8192]{0}', space=vmem, size = 0x2000, scoped, tag = 'input window, operand 2, single buffered']
    #allocation10 [shape = 'u8[8192]{0}', space=vmem, size = 0x2000, scoped, tag = 'input window, operand 3, single buffered']
    #allocation11 [shape = 's32[1]{0}', space=sflag, size = 0x4, scoped, tag = 'scoped memory for encoder_forward.2']
    #allocation12 [shape = 'u8[512]{0}', space=vmem, size = 0x400, scoped, tag = 'input window, operand 4, single buffered']
    #allocation13 [shape = 'u8[512]{0}', space=vmem, size = 0x400, scoped, tag = 'input window, operand 5, single buffered']
    #allocation14 [shape = 's32[1]{0}', space=sflag, size = 0x4, scoped, tag = 'scoped memory for encoder_forward.2']
    #allocation15 [shape = 'u8[16384]{0}', space=vmem, size = 0x4000, scoped, tag = 'output window, operand 0, single buffered']
    #allocation16 [shape = 'u8[4096]{0}', space=vmem, size = 0x1000, scoped, tag = 'output window, operand 1, single buffered']
    #allocation17 [shape = 's32[1]{0}', space=sflag, size = 0x4, scoped, tag = 'scoped memory for encoder_forward.2']
    %13 = vsyncpa [#allocation5], 0
    %14 = vsyncpa [#allocation8], 0
    %15 = vsyncpa [#allocation11], 0
    %16 = vsyncpa [#allocation14], 0
    %17 = vsyncpa [#allocation6], 0
    %18 = vsyncpa [#allocation17], 0
    // Predicated region
    $region2: #{encoder_forward.2} parent=1 // pred_check
      _
    $region3: #{encoder_forward.2} parent=1 // pred_check_branch
      %20 = sbr.rel (0) target = $region5
    $region4: #{encoder_forward.2} parent=1 // pred_region
      %s22 = ssub.s32 512, 512
      %23 = vsyncadd [#allocation5], %s22
      %s24 = sshll.u32 [#allocation4], 4
      %s25 = int_to_ptr.vmem [resolvable:$true] %s24
      %30 = dma.hbm_to_vmem [thread:$0]  %s0, 512, %s25, [#allocation5], 64, 64, 4
    $region5: #{encoder_forward.2} parent=1 // pred_fallthru
      _
    // Predicated region
    $region6: #{encoder_forward.2} parent=1 // pred_check
      _
    $region7: #{encoder_forward.2} parent=1 // pred_check_branch
      %32 = sbr.rel (0) target = $region9
    $region8: #{encoder_forward.2} parent=1 // pred_region
      %s34 = ssub.s32 128, 128
      %35 = vsyncadd [#allocation8], %s34
      %s37 = sshll.u32 [#allocation7], 4
      %s38 = int_to_ptr.vmem [resolvable:$true] %s37
      %40 = dma.hbm_to_vmem [thread:$0]  %s1, 128, %s38, [#allocation8]
    $region9: #{encoder_forward.2} parent=1 // pred_fallthru
      _
    // Predicated region
    $region10: #{encoder_forward.2} parent=1 // pred_check
      _
    $region11: #{encoder_forward.2} parent=1 // pred_check_branch
      %42 = sbr.rel (0) target = $region13
    $region12: #{encoder_forward.2} parent=1 // pred_region
      %s44 = ssub.s32 256, 256
      %45 = vsyncadd [#allocation8], %s44
      %s46 = sshll.u32 [#allocation9], 4
      %s47 = int_to_ptr.vmem [resolvable:$true] %s46
      %52 = dma.hbm_to_vmem [thread:$0]  %s2, 256, %s47, [#allocation8], 64, 64, 4
    $region13: #{encoder_forward.2} parent=1 // pred_fallthru
      _
    // Predicated region
    $region14: #{encoder_forward.2} parent=1 // pred_check
      _
    $region15: #{encoder_forward.2} parent=1 // pred_check_branch
      %54 = sbr.rel (0) target = $region17
    $region16: #{encoder_forward.2} parent=1 // pred_region
      %s56 = ssub.s32 256, 256
      %57 = vsyncadd [#allocation11], %s56
      %s58 = sshll.u32 [#allocation10], 4
      %s59 = int_to_ptr.vmem [resolvable:$true] %s58
      %64 = dma.hbm_to_vmem [thread:$0]  %s3, 256, %s59, [#allocation11], 64, 64, 4
    $region17: #{encoder_forward.2} parent=1 // pred_fallthru
      _
    // Predicated region
    $region18: #{encoder_forward.2} parent=1 // pred_check
      _
    $region19: #{encoder_forward.2} parent=1 // pred_check_branch
      %66 = sbr.rel (0) target = $region21
    $region20: #{encoder_forward.2} parent=1 // pred_region
      %s68 = ssub.s32 16, 16
      %69 = vsyncadd [#allocation11], %s68
      %s71 = sshll.u32 [#allocation12], 4
      %s72 = int_to_ptr.vmem [resolvable:$true] %s71
      %74 = dma.hbm_to_vmem [thread:$0]  %s4, 16, %s72, [#allocation11]
    $region21: #{encoder_forward.2} parent=1 // pred_fallthru
      _
    // Predicated region
    $region22: #{encoder_forward.2} parent=1 // pred_check
      _
    $region23: #{encoder_forward.2} parent=1 // pred_check_branch
      %76 = sbr.rel (0) target = $region25
    $region24: #{encoder_forward.2} parent=1 // pred_region
      %s78 = ssub.s32 16, 16
      %79 = vsyncadd [#allocation14], %s78
      %s81 = sshll.u32 [#allocation13], 4
      %s82 = int_to_ptr.vmem [resolvable:$true] %s81
      %84 = dma.hbm_to_vmem [thread:$0]  %s5, 16, %s82, [#allocation14]
    $region25: #{encoder_forward.2} parent=1 // pred_fallthru
      _
    // Predicated region
    $region26: #{encoder_forward.2} parent=1 // pred_check
      _
    $region27: #{encoder_forward.2} parent=1 // pred_check_branch
      %86 = sbr.rel (0) target = $region29
    $region28: #{encoder_forward.2} parent=1 // pred_region
      %87 = dma.done [#allocation5], 512
    $region29: #{encoder_forward.2} parent=1 // pred_fallthru
      _
    // Predicated region
    $region30: #{encoder_forward.2} parent=1 // pred_check
      _
    $region31: #{encoder_forward.2} parent=1 // pred_check_branch
      %89 = sbr.rel (0) target = $region33
    $region32: #{encoder_forward.2} parent=1 // pred_region
      %90 = dma.done [#allocation8], 128
    $region33: #{encoder_forward.2} parent=1 // pred_fallthru
      _
    // Predicated region
    $region34: #{encoder_forward.2} parent=1 // pred_check
      _
    $region35: #{encoder_forward.2} parent=1 // pred_check_branch
      %92 = sbr.rel (0) target = $region37
    $region36: #{encoder_forward.2} parent=1 // pred_region
      %93 = dma.done [#allocation8], 256
    $region37: #{encoder_forward.2} parent=1 // pred_fallthru
      _
    // Predicated region
    $region38: #{encoder_forward.2} parent=1 // pred_check
      _
    $region39: #{encoder_forward.2} parent=1 // pred_check_branch
      %95 = sbr.rel (0) target = $region41
    $region40: #{encoder_forward.2} parent=1 // pred_region
      %96 = dma.done [#allocation11], 256
    $region41: #{encoder_forward.2} parent=1 // pred_fallthru
      _
    // Predicated region
    $region42: #{encoder_forward.2} parent=1 // pred_check
      _
    $region43: #{encoder_forward.2} parent=1 // pred_check_branch
      %98 = sbr.rel (0) target = $region45
    $region44: #{encoder_forward.2} parent=1 // pred_region
      %99 = dma.done [#allocation11], 16
    $region45: #{encoder_forward.2} parent=1 // pred_fallthru
      _
    // Predicated region
    $region46: #{encoder_forward.2} parent=1 // pred_check
      _
    $region47: #{encoder_forward.2} parent=1 // pred_check_branch
      %101 = sbr.rel (0) target = $region49
    $region48: #{encoder_forward.2} parent=1 // pred_region
      %102 = dma.done [#allocation14], 16
    $region49: #{encoder_forward.2} parent=1 // pred_fallthru
      _
    %p104 = scmp.eq.s32.totalorder 0, 0
    // Predicated region
    $region50: #{encoder_forward.2} parent=1 // pred_check
      %p105 = pneg %p104
    $region51: #{encoder_forward.2} parent=1 // pred_check_branch
      %107 = sbr.rel (%p105) target = $region53
    $region52: #{encoder_forward.2} parent=1 // pred_region
      %vm108 = vcmask 261120
      %109 = vst.msk [vmem:[#allocation2] sm:$0xff] %vm108, 0.0
    $region53: #{encoder_forward.2} parent=1 // pred_fallthru
      _
    %v110 = vld [vmem:[#allocation4] sm:$0xf]
    %v111 = vld [vmem:[#allocation4 + $0x4] sm:$0xf]
    %v112 = vld [vmem:[#allocation4 + $0x8] sm:$0xf]
    %v113 = vld [vmem:[#allocation4 + $0xc] sm:$0xf]
    %v114 = vld [vmem:[#allocation4 + $0x10] sm:$0xf]
    %v115 = vld [vmem:[#allocation4 + $0x14] sm:$0xf]
    %v116 = vld [vmem:[#allocation4 + $0x18] sm:$0xf]
    %v117 = vld [vmem:[#allocation4 + $0x1c] sm:$0xf]
    %v118 = vld [vmem:[#allocation9] sm:$0xf]
    %v119 = vld [vmem:[#allocation9 + $0x4] sm:$0xf]
    %v120 = vld [vmem:[#allocation9 + $0x8] sm:$0xf]
    %v121 = vld [vmem:[#allocation9 + $0xc] sm:$0xf]
    %v122 = vld [vmem:[#allocation12] sm:$0x1]
    %v124 = vlaneseq
    %v125 = vshrl.u32 %v124, 7
    %v126 = vsub.s32 0, %v125
    %v127 = vrot.slane %v122, %v126
    %v137 = vunpack.c.l.b16 %v110
    %v138 = vunpack.c.l.b16 %v111
    %v139 = vunpack.c.l.b16 %v112
    %v140 = vunpack.c.l.b16 %v113
    %v141 = vunpack.c.l.b16 %v114
    %v142 = vunpack.c.l.b16 %v115
    %v143 = vunpack.c.l.b16 %v116
    %v144 = vunpack.c.l.b16 %v117
    %v145 = vpack.c.b16 %v138, %v137
    %v146 = vpack.c.b16 %v140, %v139
    %v147 = vpack.c.b16 %v142, %v141
    %v148 = vpack.c.b16 %v144, %v143
    %v153 = vunpack.c.l.b16 %v118
    %v154 = vunpack.c.l.b16 %v119
    %v155 = vunpack.c.l.b16 %v120
    %v156 = vunpack.c.l.b16 %v121
    %v157 = vpack.c.b16 %v154, %v153
    %v158 = vpack.c.b16 %v156, %v155
    %vm161 = vcmask 261120
    %v163 = vsel %vm161, %v145, 0
    %v166 = vsel %vm161, %v146, 0
    %v169 = vsel %vm161, %v147, 0
    %v172 = vsel %vm161, %v148, 0
    %174 = vmatprep.subr.bf16.mxu0 0
    %175 = vmatpush1.bf16.msra.mxu0 %v157
    %176 = vmatprep.subr.bf16.mxu0 0
    %177 = vmatpush1.bf16.msra.mxu0 %v158
    %178 = vmatprep.subr.bf16.mxu0 0
    %179 = vmatpush1.bf16.msra.mxu0 0
    %180 = vmatprep.subr.bf16.mxu0 0
    %181 = vmatpush1.bf16.msra.mxu0 0
    %182 = vmatprep.subr.bf16.mxu0 0
    %183 = vmatpush1.bf16.msra.mxu0 0
    %184 = vmatprep.subr.bf16.mxu0 0
    %185 = vmatpush1.bf16.msra.mxu0 0
    %186 = vmatprep.subr.bf16.mxu0 0
    %187 = vmatpush1.bf16.msra.mxu0 0
    %188 = vmatprep.subr.bf16.mxu0 0
    %189 = vmatpush1.bf16.msra.mxu0 0
    %190 = vmatprep.subr.bf16.mxu0 0
    %191 = vmatpush1.bf16.msra.mxu0 0
    %192 = vmatprep.subr.bf16.mxu0 0
    %193 = vmatpush1.bf16.msra.mxu0 0
    %194 = vmatprep.subr.bf16.mxu0 0
    %195 = vmatpush1.bf16.msra.mxu0 0
    %196 = vmatprep.subr.bf16.mxu0 0
    %197 = vmatpush1.bf16.msra.mxu0 0
    %198 = vmatprep.subr.bf16.mxu0 0
    %199 = vmatpush1.bf16.msra.mxu0 0
    %200 = vmatprep.subr.bf16.mxu0 0
    %201 = vmatpush1.bf16.msra.mxu0 0
    %202 = vmatprep.subr.bf16.mxu0 0
    %203 = vmatpush1.bf16.msra.mxu0 0
    %204 = vmatprep.subr.bf16.mxu0 0
    %205 = vmatpush1.bf16.msra.mxu0 0
    %206 = vmatprep.mubr.bf16.mxu0 0
    %207 = vmatmul.mubr.bf16.gmra.mrb[0].mxu0 %v163
    %v208 = vpop.f32.mrb[0].mxu0
    %v209 = vadd.f32 %v127, %v208
    %v210 = vpop.f32.mrb[0].mxu0
    %v211 = vpop.f32.mrb[0].mxu0
    %v212 = vadd.f32 %v127, %v211
    %v213 = vpop.f32.mrb[0].mxu0
    %214 = vmatprep.mubr.bf16.mxu0 0
    %215 = vmatmul.mubr.bf16.gmra.mrb[0].mxu0 %v166
    %v216 = vpop.f32.mrb[0].mxu0
    %v217 = vadd.f32 %v127, %v216
    %v218 = vpop.f32.mrb[0].mxu0
    %v219 = vpop.f32.mrb[0].mxu0
    %v220 = vadd.f32 %v127, %v219
    %v221 = vpop.f32.mrb[0].mxu0
    %222 = vmatprep.mubr.bf16.mxu0 0
    %223 = vmatmul.mubr.bf16.gmra.mrb[0].mxu0 %v169
    %v224 = vpop.f32.mrb[0].mxu0
    %v225 = vadd.f32 %v127, %v224
    %v226 = vpop.f32.mrb[0].mxu0
    %v227 = vpop.f32.mrb[0].mxu0
    %v228 = vadd.f32 %v127, %v227
    %v229 = vpop.f32.mrb[0].mxu0
    %230 = vmatprep.mubr.bf16.mxu0 0
    %231 = vmatmul.mubr.bf16.gmra.mrb[0].mxu0 %v172
    %v232 = vpop.f32.mrb[0].mxu0
    %v233 = vadd.f32 %v127, %v232
    %v234 = vpop.f32.mrb[0].mxu0
    %v235 = vpop.f32.mrb[0].mxu0
    %v236 = vadd.f32 %v127, %v235
    %v237 = vpop.f32.mrb[0].mxu0
    %238 = vdwg.mxu0
    %vm239 = vcmask 785408
    %240 = vst.msk [vmem:[#allocation3] sm:$0xff] %vm239, %v209
    %241 = vst.msk [vmem:[#allocation3 + $0x8] sm:$0xff] %vm239, %v212
    %242 = vst.msk [vmem:[#allocation3 + $0x10] sm:$0xff] %vm239, %v217
    %243 = vst.msk [vmem:[#allocation3 + $0x18] sm:$0xff] %vm239, %v220
    %244 = vst.msk [vmem:[#allocation3 + $0x20] sm:$0xff] %vm239, %v225
    %245 = vst.msk [vmem:[#allocation3 + $0x28] sm:$0xff] %vm239, %v228
    %246 = vst.msk [vmem:[#allocation3 + $0x30] sm:$0xff] %vm239, %v233
    %247 = vst.msk [vmem:[#allocation3 + $0x38] sm:$0xff] %vm239, %v236
    %v248 = vld [vmem:[#allocation7] sm:$0xff]
    %v249 = vld [vmem:[#allocation13] sm:$0x1]
    %s250 = smul.u32 0, 8
    %v251 = vld [vmem:[#allocation2] sm:$0xff]
    %v252 = vpack.c.bf16 %v251, %v251
    %v253 = vld [vmem:[#allocation10] sm:$0xf]
    %v254 = vld [vmem:[#allocation10 + $0x4] sm:$0xf]
    %v255 = vld [vmem:[#allocation10 + $0x8] sm:$0xf]
    %v256 = vld [vmem:[#allocation10 + $0xc] sm:$0xf]
    %v258 = vlaneseq
    %v259 = vshrl.u32 %v258, 7
    %v260 = vsub.s32 0, %v259
    %v261 = vrot.slane %v249, %v260
    %v267 = vunpack.c.l.b16 %v253
    %v268 = vunpack.c.l.b16 %v254
    %v269 = vunpack.c.l.b16 %v255
    %v270 = vunpack.c.l.b16 %v256
    %v271 = vpack.c.b16 %v268, %v267
    %v272 = vpack.c.b16 %v270, %v269
    %v276 = vsel %vm161, %v252, 0
    %278 = vmatprep.subr.bf16.mxu0 0
    %279 = vmatpush1.bf16.msra.mxu0 %v271
    %280 = vmatprep.subr.bf16.mxu0 0
    %281 = vmatpush1.bf16.msra.mxu0 %v272
    %282 = vmatprep.subr.bf16.mxu0 0
    %283 = vmatpush1.bf16.msra.mxu0 0
    %284 = vmatprep.subr.bf16.mxu0 0
    %285 = vmatpush1.bf16.msra.mxu0 0
    %286 = vmatprep.subr.bf16.mxu0 0
    %287 = vmatpush1.bf16.msra.mxu0 0
    %288 = vmatprep.subr.bf16.mxu0 0
    %289 = vmatpush1.bf16.msra.mxu0 0
    %290 = vmatprep.subr.bf16.mxu0 0
    %291 = vmatpush1.bf16.msra.mxu0 0
    %292 = vmatprep.subr.bf16.mxu0 0
    %293 = vmatpush1.bf16.msra.mxu0 0
    %294 = vmatprep.subr.bf16.mxu0 0
    %295 = vmatpush1.bf16.msra.mxu0 0
    %296 = vmatprep.subr.bf16.mxu0 0
    %297 = vmatpush1.bf16.msra.mxu0 0
    %298 = vmatprep.subr.bf16.mxu0 0
    %299 = vmatpush1.bf16.msra.mxu0 0
    %300 = vmatprep.subr.bf16.mxu0 0
    %301 = vmatpush1.bf16.msra.mxu0 0
    %302 = vmatprep.subr.bf16.mxu0 0
    %303 = vmatpush1.bf16.msra.mxu0 0
    %304 = vmatprep.subr.bf16.mxu0 0
    %305 = vmatpush1.bf16.msra.mxu0 0
    %306 = vmatprep.subr.bf16.mxu0 0
    %307 = vmatpush1.bf16.msra.mxu0 0
    %308 = vmatprep.subr.bf16.mxu0 0
    %309 = vmatpush1.bf16.msra.mxu0 0
    %310 = vmatprep.mubr.bf16.mxu0 0
    %311 = vmatmul.mubr.bf16.gmra.mrb[0].mxu0 %v276
    %v312 = vpop.f32.mrb[0].mxu0
    %v313 = vadd.f32 %v261, %v312
    %v314 = vpop.f32.mrb[0].mxu0
    %v315 = vpop.f32.mrb[0].mxu0
    %v316 = vpop.f32.mrb[0].mxu0
    %317 = vdwg.mxu0
    %v318 = vld [vmem:[#allocation3] sm:$0xff]
    %v319 = vadd.f32 %v318, %v313
    %v320 = vxor.u32 %v319, 2147483648
    %v321 = vmul.f32 %v320, 1.442695
    %v322 = vpow.pop %v321
    %v323 = vadd.f32 %v322, 1.0
    %v324 = vrcp.pop %v323
    %v325 = vmul.f32 1.0, %v324
    %327 = vrot.lane.b32.xlu0 %v313, 64
    %v328 = vpop.permute.xlu0 %327
    %v330 = vmul.f32 %v325, %v328
    %332 = vrot.lane.b32.xlu0 %v330, 64
    %v333 = vpop.permute.xlu0 %332
    %v335 = vadd.f32 %v318, %v333
    %v336 = vtanh.pop %v335
    %v337 = vsub.f32 1.0, %v325
    %339 = vrot.lane.b32.xlu0 %v336, 96
    %v340 = vpop.permute.xlu0 %339
    %v342 = vmul.f32 %v337, %v340
    %344 = vrot.lane.b32.xlu0 %v251, 32
    %v345 = vpop.permute.xlu0 %344
    %v347 = vmul.f32 %v325, %v345
    %v348 = vadd.f32 %v342, %v347
    %v349 = vstv %s250
    %vm350 = vcmp.gt.s32.totalorder %v248, %v349
    %v351 = vsel %vm350, 1, 0
    %352 = vset.pattern.permute.xlu0 0
    %353 = vperm.xlu0 %352, %v351
    %v354 = vpop.permute.xlu0 %353
    %vm355 = vcmp.eq.s32.totalorder %v354, 1
    %v356 = vsel %vm355, %v348, %v345
    %358 = vrot.lane.b32.xlu0 %v356, 96
    %v359 = vpop.permute.xlu0 %358
    %361 = vst.msk [vmem:[#allocation2] sm:$0xff] %vm161, %v359
    %v362 = vsel %vm355, %v348, 0.0
    %v363 = vpack.c.bf16 %v362, %v362
    %v365 = vunpack.c.l.b16 %v363
    %v366 = vpack.c.b16 %v365, %v365
    %367 = vrot.lane.b32.xlu0 %v366, 96
    %v368 = vpop.permute.xlu0 %367
    %vm370 = vcmask 257024
    %371 = vst.msk [vmem:[#allocation15] sm:$0xf] %vm370, %v368
    %s372 = sadd.s32 %s250, 1
    %v373 = vld [vmem:[#allocation2] sm:$0xff]
    %v374 = vpack.c.bf16 %v373, %v373
    %v375 = vld [vmem:[#allocation10] sm:$0xf]
    %v376 = vld [vmem:[#allocation10 + $0x4] sm:$0xf]
    %v377 = vld [vmem:[#allocation10 + $0x8] sm:$0xf]
    %v378 = vld [vmem:[#allocation10 + $0xc] sm:$0xf]
    %v383 = vunpack.c.l.b16 %v375
    %v384 = vunpack.c.l.b16 %v376
    %v385 = vunpack.c.l.b16 %v377
    %v386 = vunpack.c.l.b16 %v378
    %v387 = vpack.c.b16 %v384, %v383
    %v388 = vpack.c.b16 %v386, %v385
    %v392 = vsel %vm161, %v374, 0
    %394 = vmatprep.subr.bf16.mxu0 0
    %395 = vmatpush1.bf16.msra.mxu0 %v387
    %396 = vmatprep.subr.bf16.mxu0 0
    %397 = vmatpush1.bf16.msra.mxu0 %v388
    %398 = vmatprep.subr.bf16.mxu0 0
    %399 = vmatpush1.bf16.msra.mxu0 0
    %400 = vmatprep.subr.bf16.mxu0 0
    %401 = vmatpush1.bf16.msra.mxu0 0
    %402 = vmatprep.subr.bf16.mxu0 0
    %403 = vmatpush1.bf16.msra.mxu0 0
    %404 = vmatprep.subr.bf16.mxu0 0
    %405 = vmatpush1.bf16.msra.mxu0 0
    %406 = vmatprep.subr.bf16.mxu0 0
    %407 = vmatpush1.bf16.msra.mxu0 0
    %408 = vmatprep.subr.bf16.mxu0 0
    %409 = vmatpush1.bf16.msra.mxu0 0
    %410 = vmatprep.subr.bf16.mxu0 0
    %411 = vmatpush1.bf16.msra.mxu0 0
    %412 = vmatprep.subr.bf16.mxu0 0
    %413 = vmatpush1.bf16.msra.mxu0 0
    %414 = vmatprep.subr.bf16.mxu0 0
    %415 = vmatpush1.bf16.msra.mxu0 0
    %416 = vmatprep.subr.bf16.mxu0 0
    %417 = vmatpush1.bf16.msra.mxu0 0
    %418 = vmatprep.subr.bf16.mxu0 0
    %419 = vmatpush1.bf16.msra.mxu0 0
    %420 = vmatprep.subr.bf16.mxu0 0
    %421 = vmatpush1.bf16.msra.mxu0 0
    %422 = vmatprep.subr.bf16.mxu0 0
    %423 = vmatpush1.bf16.msra.mxu0 0
    %424 = vmatprep.subr.bf16.mxu0 0
    %425 = vmatpush1.bf16.msra.mxu0 0
    %426 = vmatprep.mubr.bf16.mxu0 0
    %427 = vmatmul.mubr.bf16.gmra.mrb[0].mxu0 %v392
    %v428 = vpop.f32.mrb[0].mxu0
    %v429 = vadd.f32 %v261, %v428
    %v430 = vpop.f32.mrb[0].mxu0
    %v431 = vpop.f32.mrb[0].mxu0
    %v432 = vpop.f32.mrb[0].mxu0
    %433 = vdwg.mxu0
    %s434 = scalar_lea.vmem [#allocation3], 8
    %v435 = vld [vmem:[%s434] sm:$0xff]
    %v436 = vadd.f32 %v435, %v429
    %v437 = vxor.u32 %v436, 2147483648
    %v438 = vmul.f32 %v437, 1.442695
    %v439 = vpow.pop %v438
    %v440 = vadd.f32 %v439, 1.0
    %v441 = vrcp.pop %v440
    %v442 = vmul.f32 1.0, %v441
    %444 = vrot.lane.b32.xlu0 %v429, 64
    %v445 = vpop.permute.xlu0 %444
    %v447 = vmul.f32 %v442, %v445
    %449 = vrot.lane.b32.xlu0 %v447, 64
    %v450 = vpop.permute.xlu0 %449
    %v452 = vadd.f32 %v435, %v450
    %v453 = vtanh.pop %v452
    %v454 = vsub.f32 1.0, %v442
    %456 = vrot.lane.b32.xlu0 %v453, 96
    %v457 = vpop.permute.xlu0 %456
    %v459 = vmul.f32 %v454, %v457
    %461 = vrot.lane.b32.xlu0 %v373, 32
    %v462 = vpop.permute.xlu0 %461
    %v464 = vmul.f32 %v442, %v462
    %v465 = vadd.f32 %v459, %v464
    %v466 = vstv %s372
    %vm467 = vcmp.gt.s32.totalorder %v248, %v466
    %v468 = vsel %vm467, 1, 0
    %469 = vset.pattern.permute.xlu0 0
    %470 = vperm.xlu0 %469, %v468
    %v471 = vpop.permute.xlu0 %470
    %vm472 = vcmp.eq.s32.totalorder %v471, 1
    %v473 = vsel %vm472, %v465, %v462
    %475 = vrot.lane.b32.xlu0 %v473, 96
    %v476 = vpop.permute.xlu0 %475
    %478 = vst.msk [vmem:[#allocation2] sm:$0xff] %vm161, %v476
    %v479 = vsel %vm472, %v465, 0.0
    %v480 = vpack.c.bf16 %v479, %v479
    %v482 = vunpack.c.l.b16 %v480
    %v483 = vpack.c.b16 %v482, %v482
    %484 = vrot.lane.b32.xlu0 %v483, 96
    %v485 = vpop.permute.xlu0 %484
    %s487 = scalar_lea.vmem [#allocation15], 4
    %488 = vst.msk [vmem:[%s487] sm:$0xf] %vm370, %v485
    %s489 = sadd.s32 %s250, 2
    %v490 = vld [vmem:[#allocation2] sm:$0xff]
    %v491 = vpack.c.bf16 %v490, %v490
    %v492 = vld [vmem:[#allocation10] sm:$0xf]
    %v493 = vld [vmem:[#allocation10 + $0x4] sm:$0xf]
    %v494 = vld [vmem:[#allocation10 + $0x8] sm:$0xf]
    %v495 = vld [vmem:[#allocation10 + $0xc] sm:$0xf]
    %v500 = vunpack.c.l.b16 %v492
    %v501 = vunpack.c.l.b16 %v493
    %v502 = vunpack.c.l.b16 %v494
    %v503 = vunpack.c.l.b16 %v495
    %v504 = vpack.c.b16 %v501, %v500
    %v505 = vpack.c.b16 %v503, %v502
    %v509 = vsel %vm161, %v491, 0
    %511 = vmatprep.subr.bf16.mxu0 0
    %512 = vmatpush1.bf16.msra.mxu0 %v504
    %513 = vmatprep.subr.bf16.mxu0 0
    %514 = vmatpush1.bf16.msra.mxu0 %v505
    %515 = vmatprep.subr.bf16.mxu0 0
    %516 = vmatpush1.bf16.msra.mxu0 0
    %517 = vmatprep.subr.bf16.mxu0 0
    %518 = vmatpush1.bf16.msra.mxu0 0
    %519 = vmatprep.subr.bf16.mxu0 0
    %520 = vmatpush1.bf16.msra.mxu0 0
    %521 = vmatprep.subr.bf16.mxu0 0
    %522 = vmatpush1.bf16.msra.mxu0 0
    %523 = vmatprep.subr.bf16.mxu0 0
    %524 = vmatpush1.bf16.msra.mxu0 0
    %525 = vmatprep.subr.bf16.mxu0 0
    %526 = vmatpush1.bf16.msra.mxu0 0
    %527 = vmatprep.subr.bf16.mxu0 0
    %528 = vmatpush1.bf16.msra.mxu0 0
    %529 = vmatprep.subr.bf16.mxu0 0
    %530 = vmatpush1.bf16.msra.mxu0 0
    %531 = vmatprep.subr.bf16.mxu0 0
    %532 = vmatpush1.bf16.msra.mxu0 0
    %533 = vmatprep.subr.bf16.mxu0 0
    %534 = vmatpush1.bf16.msra.mxu0 0
    %535 = vmatprep.subr.bf16.mxu0 0
    %536 = vmatpush1.bf16.msra.mxu0 0
    %537 = vmatprep.subr.bf16.mxu0 0
    %538 = vmatpush1.bf16.msra.mxu0 0
    %539 = vmatprep.subr.bf16.mxu0 0
    %540 = vmatpush1.bf16.msra.mxu0 0
    %541 = vmatprep.subr.bf16.mxu0 0
    %542 = vmatpush1.bf16.msra.mxu0 0
    %543 = vmatprep.mubr.bf16.mxu0 0
    %544 = vmatmul.mubr.bf16.gmra.mrb[0].mxu0 %v509
    %v545 = vpop.f32.mrb[0].mxu0
    %v546 = vadd.f32 %v261, %v545
    %v547 = vpop.f32.mrb[0].mxu0
    %v548 = vpop.f32.mrb[0].mxu0
    %v549 = vpop.f32.mrb[0].mxu0
    %550 = vdwg.mxu0
    %s551 = scalar_lea.vmem [#allocation3], 16
    %v552 = vld [vmem:[%s551] sm:$0xff]
    %v553 = vadd.f32 %v552, %v546
    %v554 = vxor.u32 %v553, 2147483648
    %v555 = vmul.f32 %v554, 1.442695
    %v556 = vpow.pop %v555
    %v557 = vadd.f32 %v556, 1.0
    %v558 = vrcp.pop %v557
    %v559 = vmul.f32 1.0, %v558
    %561 = vrot.lane.b32.xlu0 %v546, 64
    %v562 = vpop.permute.xlu0 %561
    %v564 = vmul.f32 %v559, %v562
    %566 = vrot.lane.b32.xlu0 %v564, 64
    %v567 = vpop.permute.xlu0 %566
    %v569 = vadd.f32 %v552, %v567
    %v570 = vtanh.pop %v569
    %v571 = vsub.f32 1.0, %v559
    %573 = vrot.lane.b32.xlu0 %v570, 96
    %v574 = vpop.permute.xlu0 %573
    %v576 = vmul.f32 %v571, %v574
    %578 = vrot.lane.b32.xlu0 %v490, 32
    %v579 = vpop.permute.xlu0 %578
    %v581 = vmul.f32 %v559, %v579
    %v582 = vadd.f32 %v576, %v581
    %v583 = vstv %s489
    %vm584 = vcmp.gt.s32.totalorder %v248, %v583
    %v585 = vsel %vm584, 1, 0
    %586 = vset.pattern.permute.xlu0 0
    %587 = vperm.xlu0 %586, %v585
    %v588 = vpop.permute.xlu0 %587
    %vm589 = vcmp.eq.s32.totalorder %v588, 1
    %v590 = vsel %vm589, %v582, %v579
    %592 = vrot.lane.b32.xlu0 %v590, 96
    %v593 = vpop.permute.xlu0 %592
    %595 = vst.msk [vmem:[#allocation2] sm:$0xff] %vm161, %v593
    %v596 = vsel %vm589, %v582, 0.0
    %v597 = vpack.c.bf16 %v596, %v596
    %v599 = vunpack.c.l.b16 %v597
    %v600 = vpack.c.b16 %v599, %v599
    %601 = vrot.lane.b32.xlu0 %v600, 96
    %v602 = vpop.permute.xlu0 %601
    %s604 = scalar_lea.vmem [#allocation15], 8
    %605 = vst.msk [vmem:[%s604] sm:$0xf] %vm370, %v602
    %s606 = sadd.s32 %s250, 3
    %v607 = vld [vmem:[#allocation2] sm:$0xff]
    %v608 = vpack.c.bf16 %v607, %v607
    %v609 = vld [vmem:[#allocation10] sm:$0xf]
    %v610 = vld [vmem:[#allocation10 + $0x4] sm:$0xf]
    %v611 = vld [vmem:[#allocation10 + $0x8] sm:$0xf]
    %v612 = vld [vmem:[#allocation10 + $0xc] sm:$0xf]
    %v617 = vunpack.c.l.b16 %v609
    %v618 = vunpack.c.l.b16 %v610
    %v619 = vunpack.c.l.b16 %v611
    %v620 = vunpack.c.l.b16 %v612
    %v621 = vpack.c.b16 %v618, %v617
    %v622 = vpack.c.b16 %v620, %v619
    %v626 = vsel %vm161, %v608, 0
    %628 = vmatprep.subr.bf16.mxu0 0
    %629 = vmatpush1.bf16.msra.mxu0 %v621
    %630 = vmatprep.subr.bf16.mxu0 0
    %631 = vmatpush1.bf16.msra.mxu0 %v622
    %632 = vmatprep.subr.bf16.mxu0 0
    %633 = vmatpush1.bf16.msra.mxu0 0
    %634 = vmatprep.subr.bf16.mxu0 0
    %635 = vmatpush1.bf16.msra.mxu0 0
    %636 = vmatprep.subr.bf16.mxu0 0
    %637 = vmatpush1.bf16.msra.mxu0 0
    %638 = vmatprep.subr.bf16.mxu0 0
    %639 = vmatpush1.bf16.msra.mxu0 0
    %640 = vmatprep.subr.bf16.mxu0 0
    %641 = vmatpush1.bf16.msra.mxu0 0
    %642 = vmatprep.subr.bf16.mxu0 0
    %643 = vmatpush1.bf16.msra.mxu0 0
    %644 = vmatprep.subr.bf16.mxu0 0
    %645 = vmatpush1.bf16.msra.mxu0 0
    %646 = vmatprep.subr.bf16.mxu0 0
    %647 = vmatpush1.bf16.msra.mxu0 0
    %648 = vmatprep.subr.bf16.mxu0 0
    %649 = vmatpush1.bf16.msra.mxu0 0
    %650 = vmatprep.subr.bf16.mxu0 0
    %651 = vmatpush1.bf16.msra.mxu0 0
    %652 = vmatprep.subr.bf16.mxu0 0
    %653 = vmatpush1.bf16.msra.mxu0 0
    %654 = vmatprep.subr.bf16.mxu0 0
    %655 = vmatpush1.bf16.msra.mxu0 0
    %656 = vmatprep.subr.bf16.mxu0 0
    %657 = vmatpush1.bf16.msra.mxu0 0
    %658 = vmatprep.subr.bf16.mxu0 0
    %659 = vmatpush1.bf16.msra.mxu0 0
    %660 = vmatprep.mubr.bf16.mxu0 0
    %661 = vmatmul.mubr.bf16.gmra.mrb[0].mxu0 %v626
    %v662 = vpop.f32.mrb[0].mxu0
    %v663 = vadd.f32 %v261, %v662
    %v664 = vpop.f32.mrb[0].mxu0
    %v665 = vpop.f32.mrb[0].mxu0
    %v666 = vpop.f32.mrb[0].mxu0
    %667 = vdwg.mxu0
    %s668 = scalar_lea.vmem [#allocation3], 24
    %v669 = vld [vmem:[%s668] sm:$0xff]
    %v670 = vadd.f32 %v669, %v663
    %v671 = vxor.u32 %v670, 2147483648
    %v672 = vmul.f32 %v671, 1.442695
    %v673 = vpow.pop %v672
    %v674 = vadd.f32 %v673, 1.0
    %v675 = vrcp.pop %v674
    %v676 = vmul.f32 1.0, %v675
    %678 = vrot.lane.b32.xlu0 %v663, 64
    %v679 = vpop.permute.xlu0 %678
    %v681 = vmul.f32 %v676, %v679
    %683 = vrot.lane.b32.xlu0 %v681, 64
    %v684 = vpop.permute.xlu0 %683
    %v686 = vadd.f32 %v669, %v684
    %v687 = vtanh.pop %v686
    %v688 = vsub.f32 1.0, %v676
    %690 = vrot.lane.b32.xlu0 %v687, 96
    %v691 = vpop.permute.xlu0 %690
    %v693 = vmul.f32 %v688, %v691
    %695 = vrot.lane.b32.xlu0 %v607, 32
    %v696 = vpop.permute.xlu0 %695
    %v698 = vmul.f32 %v676, %v696
    %v699 = vadd.f32 %v693, %v698
    %v700 = vstv %s606
    %vm701 = vcmp.gt.s32.totalorder %v248, %v700
    %v702 = vsel %vm701, 1, 0
    %703 = vset.pattern.permute.xlu0 0
    %704 = vperm.xlu0 %703, %v702
    %v705 = vpop.permute.xlu0 %704
    %vm706 = vcmp.eq.s32.totalorder %v705, 1
    %v707 = vsel %vm706, %v699, %v696
    %709 = vrot.lane.b32.xlu0 %v707, 96
    %v710 = vpop.permute.xlu0 %709
    %712 = vst.msk [vmem:[#allocation2] sm:$0xff] %vm161, %v710
    %v713 = vsel %vm706, %v699, 0.0
    %v714 = vpack.c.bf16 %v713, %v713
    %v716 = vunpack.c.l.b16 %v714
    %v717 = vpack.c.b16 %v716, %v716
    %718 = vrot.lane.b32.xlu0 %v717, 96
    %v719 = vpop.permute.xlu0 %718
    %s721 = scalar_lea.vmem [#allocation15], 12
    %722 = vst.msk [vmem:[%s721] sm:$0xf] %vm370, %v719
    %s723 = sadd.s32 %s250, 4
    %v724 = vld [vmem:[#allocation2] sm:$0xff]
    %v725 = vpack.c.bf16 %v724, %v724
    %v726 = vld [vmem:[#allocation10] sm:$0xf]
    %v727 = vld [vmem:[#allocation10 + $0x4] sm:$0xf]
    %v728 = vld [vmem:[#allocation10 + $0x8] sm:$0xf]
    %v729 = vld [vmem:[#allocation10 + $0xc] sm:$0xf]
    %v734 = vunpack.c.l.b16 %v726
    %v735 = vunpack.c.l.b16 %v727
    %v736 = vunpack.c.l.b16 %v728
    %v737 = vunpack.c.l.b16 %v729
    %v738 = vpack.c.b16 %v735, %v734
    %v739 = vpack.c.b16 %v737, %v736
    %v743 = vsel %vm161, %v725, 0
    %745 = vmatprep.subr.bf16.mxu0 0
    %746 = vmatpush1.bf16.msra.mxu0 %v738
    %747 = vmatprep.subr.bf16.mxu0 0
    %748 = vmatpush1.bf16.msra.mxu0 %v739
    %749 = vmatprep.subr.bf16.mxu0 0
    %750 = vmatpush1.bf16.msra.mxu0 0
    %751 = vmatprep.subr.bf16.mxu0 0
    %752 = vmatpush1.bf16.msra.mxu0 0
    %753 = vmatprep.subr.bf16.mxu0 0
    %754 = vmatpush1.bf16.msra.mxu0 0
    %755 = vmatprep.subr.bf16.mxu0 0
    %756 = vmatpush1.bf16.msra.mxu0 0
    %757 = vmatprep.subr.bf16.mxu0 0
    %758 = vmatpush1.bf16.msra.mxu0 0
    %759 = vmatprep.subr.bf16.mxu0 0
    %760 = vmatpush1.bf16.msra.mxu0 0
    %761 = vmatprep.subr.bf16.mxu0 0
    %762 = vmatpush1.bf16.msra.mxu0 0
    %763 = vmatprep.subr.bf16.mxu0 0
    %764 = vmatpush1.bf16.msra.mxu0 0
    %765 = vmatprep.subr.bf16.mxu0 0
    %766 = vmatpush1.bf16.msra.mxu0 0
    %767 = vmatprep.subr.bf16.mxu0 0
    %768 = vmatpush1.bf16.msra.mxu0 0
    %769 = vmatprep.subr.bf16.mxu0 0
    %770 = vmatpush1.bf16.msra.mxu0 0
    %771 = vmatprep.subr.bf16.mxu0 0
    %772 = vmatpush1.bf16.msra.mxu0 0
    %773 = vmatprep.subr.bf16.mxu0 0
    %774 = vmatpush1.bf16.msra.mxu0 0
    %775 = vmatprep.subr.bf16.mxu0 0
    %776 = vmatpush1.bf16.msra.mxu0 0
    %777 = vmatprep.mubr.bf16.mxu0 0
    %778 = vmatmul.mubr.bf16.gmra.mrb[0].mxu0 %v743
    %v779 = vpop.f32.mrb[0].mxu0
    %v780 = vadd.f32 %v261, %v779
    %v781 = vpop.f32.mrb[0].mxu0
    %v782 = vpop.f32.mrb[0].mxu0
    %v783 = vpop.f32.mrb[0].mxu0
    %784 = vdwg.mxu0
    %s785 = scalar_lea.vmem [#allocation3], 32
    %v786 = vld [vmem:[%s785] sm:$0xff]
    %v787 = vadd.f32 %v786, %v780
    %v788 = vxor.u32 %v787, 2147483648
    %v789 = vmul.f32 %v788, 1.442695
    %v790 = vpow.pop %v789
    %v791 = vadd.f32 %v790, 1.0
    %v792 = vrcp.pop %v791
    %v793 = vmul.f32 1.0, %v792
    %795 = vrot.lane.b32.xlu0 %v780, 64
    %v796 = vpop.permute.xlu0 %795
    %v798 = vmul.f32 %v793, %v796
    %800 = vrot.lane.b32.xlu0 %v798, 64
    %v801 = vpop.permute.xlu0 %800
    %v803 = vadd.f32 %v786, %v801
    %v804 = vtanh.pop %v803
    %v805 = vsub.f32 1.0, %v793
    %807 = vrot.lane.b32.xlu0 %v804, 96
    %v808 = vpop.permute.xlu0 %807
    %v810 = vmul.f32 %v805, %v808
    %812 = vrot.lane.b32.xlu0 %v724, 32
    %v813 = vpop.permute.xlu0 %812
    %v815 = vmul.f32 %v793, %v813
    %v816 = vadd.f32 %v810, %v815
    %v817 = vstv %s723
    %vm818 = vcmp.gt.s32.totalorder %v248, %v817
    %v819 = vsel %vm818, 1, 0
    %820 = vset.pattern.permute.xlu0 0
    %821 = vperm.xlu0 %820, %v819
    %v822 = vpop.permute.xlu0 %821
    %vm823 = vcmp.eq.s32.totalorder %v822, 1
    %v824 = vsel %vm823, %v816, %v813
    %826 = vrot.lane.b32.xlu0 %v824, 96
    %v827 = vpop.permute.xlu0 %826
    %829 = vst.msk [vmem:[#allocation2] sm:$0xff] %vm161, %v827
    %v830 = vsel %vm823, %v816, 0.0
    %v831 = vpack.c.bf16 %v830, %v830
    %v833 = vunpack.c.l.b16 %v831
    %v834 = vpack.c.b16 %v833, %v833
    %835 = vrot.lane.b32.xlu0 %v834, 96
    %v836 = vpop.permute.xlu0 %835
    %s838 = scalar_lea.vmem [#allocation15], 16
    %839 = vst.msk [vmem:[%s838] sm:$0xf] %vm370, %v836
    %s840 = sadd.s32 %s250, 5
    %v841 = vld [vmem:[#allocation2] sm:$0xff]
    %v842 = vpack.c.bf16 %v841, %v841
    %v843 = vld [vmem:[#allocation10] sm:$0xf]
    %v844 = vld [vmem:[#allocation10 + $0x4] sm:$0xf]
    %v845 = vld [vmem:[#allocation10 + $0x8] sm:$0xf]
    %v846 = vld [vmem:[#allocation10 + $0xc] sm:$0xf]
    %v851 = vunpack.c.l.b16 %v843
    %v852 = vunpack.c.l.b16 %v844
    %v853 = vunpack.c.l.b16 %v845
    %v854 = vunpack.c.l.b16 %v846
    %v855 = vpack.c.b16 %v852, %v851
    %v856 = vpack.c.b16 %v854, %v853
    %v860 = vsel %vm161, %v842, 0
    %862 = vmatprep.subr.bf16.mxu0 0
    %863 = vmatpush1.bf16.msra.mxu0 %v855
    %864 = vmatprep.subr.bf16.mxu0 0
    %865 = vmatpush1.bf16.msra.mxu0 %v856
    %866 = vmatprep.subr.bf16.mxu0 0
    %867 = vmatpush1.bf16.msra.mxu0 0
    %868 = vmatprep.subr.bf16.mxu0 0
    %869 = vmatpush1.bf16.msra.mxu0 0
    %870 = vmatprep.subr.bf16.mxu0 0
    %871 = vmatpush1.bf16.msra.mxu0 0
    %872 = vmatprep.subr.bf16.mxu0 0
    %873 = vmatpush1.bf16.msra.mxu0 0
    %874 = vmatprep.subr.bf16.mxu0 0
    %875 = vmatpush1.bf16.msra.mxu0 0
    %876 = vmatprep.subr.bf16.mxu0 0
    %877 = vmatpush1.bf16.msra.mxu0 0
    %878 = vmatprep.subr.bf16.mxu0 0
    %879 = vmatpush1.bf16.msra.mxu0 0
    %880 = vmatprep.subr.bf16.mxu0 0
    %881 = vmatpush1.bf16.msra.mxu0 0
    %882 = vmatprep.subr.bf16.mxu0 0
    %883 = vmatpush1.bf16.msra.mxu0 0
    %884 = vmatprep.subr.bf16.mxu0 0
    %885 = vmatpush1.bf16.msra.mxu0 0
    %886 = vmatprep.subr.bf16.mxu0 0
    %887 = vmatpush1.bf16.msra.mxu0 0
    %888 = vmatprep.subr.bf16.mxu0 0
    %889 = vmatpush1.bf16.msra.mxu0 0
    %890 = vmatprep.subr.bf16.mxu0 0
    %891 = vmatpush1.bf16.msra.mxu0 0
    %892 = vmatprep.subr.bf16.mxu0 0
    %893 = vmatpush1.bf16.msra.mxu0 0
    %894 = vmatprep.mubr.bf16.mxu0 0
    %895 = vmatmul.mubr.bf16.gmra.mrb[0].mxu0 %v860
    %v896 = vpop.f32.mrb[0].mxu0
    %v897 = vadd.f32 %v261, %v896
    %v898 = vpop.f32.mrb[0].mxu0
    %v899 = vpop.f32.mrb[0].mxu0
    %v900 = vpop.f32.mrb[0].mxu0
    %901 = vdwg.mxu0
    %s902 = scalar_lea.vmem [#allocation3], 40
    %v903 = vld [vmem:[%s902] sm:$0xff]
    %v904 = vadd.f32 %v903, %v897
    %v905 = vxor.u32 %v904, 2147483648
    %v906 = vmul.f32 %v905, 1.442695
    %v907 = vpow.pop %v906
    %v908 = vadd.f32 %v907, 1.0
    %v909 = vrcp.pop %v908
    %v910 = vmul.f32 1.0, %v909
    %912 = vrot.lane.b32.xlu0 %v897, 64
    %v913 = vpop.permute.xlu0 %912
    %v915 = vmul.f32 %v910, %v913
    %917 = vrot.lane.b32.xlu0 %v915, 64
    %v918 = vpop.permute.xlu0 %917
    %v920 = vadd.f32 %v903, %v918
    %v921 = vtanh.pop %v920
    %v922 = vsub.f32 1.0, %v910
    %924 = vrot.lane.b32.xlu0 %v921, 96
    %v925 = vpop.permute.xlu0 %924
    %v927 = vmul.f32 %v922, %v925
    %929 = vrot.lane.b32.xlu0 %v841, 32
    %v930 = vpop.permute.xlu0 %929
    %v932 = vmul.f32 %v910, %v930
    %v933 = vadd.f32 %v927, %v932
    %v934 = vstv %s840
    %vm935 = vcmp.gt.s32.totalorder %v248, %v934
    %v936 = vsel %vm935, 1, 0
    %937 = vset.pattern.permute.xlu0 0
    %938 = vperm.xlu0 %937, %v936
    %v939 = vpop.permute.xlu0 %938
    %vm940 = vcmp.eq.s32.totalorder %v939, 1
    %v941 = vsel %vm940, %v933, %v930
    %943 = vrot.lane.b32.xlu0 %v941, 96
    %v944 = vpop.permute.xlu0 %943
    %946 = vst.msk [vmem:[#allocation2] sm:$0xff] %vm161, %v944
    %v947 = vsel %vm940, %v933, 0.0
    %v948 = vpack.c.bf16 %v947, %v947
    %v950 = vunpack.c.l.b16 %v948
    %v951 = vpack.c.b16 %v950, %v950
    %952 = vrot.lane.b32.xlu0 %v951, 96
    %v953 = vpop.permute.xlu0 %952
    %s955 = scalar_lea.vmem [#allocation15], 20
    %956 = vst.msk [vmem:[%s955] sm:$0xf] %vm370, %v953
    %s957 = sadd.s32 %s250, 6
    %v958 = vld [vmem:[#allocation2] sm:$0xff]
    %v959 = vpack.c.bf16 %v958, %v958
    %v960 = vld [vmem:[#allocation10] sm:$0xf]
    %v961 = vld [vmem:[#allocation10 + $0x4] sm:$0xf]
    %v962 = vld [vmem:[#allocation10 + $0x8] sm:$0xf]
    %v963 = vld [vmem:[#allocation10 + $0xc] sm:$0xf]
    %v968 = vunpack.c.l.b16 %v960
    %v969 = vunpack.c.l.b16 %v961
    %v970 = vunpack.c.l.b16 %v962
    %v971 = vunpack.c.l.b16 %v963
    %v972 = vpack.c.b16 %v969, %v968
    %v973 = vpack.c.b16 %v971, %v970
    %v977 = vsel %vm161, %v959, 0
    %979 = vmatprep.subr.bf16.mxu0 0
    %980 = vmatpush1.bf16.msra.mxu0 %v972
    %981 = vmatprep.subr.bf16.mxu0 0
    %982 = vmatpush1.bf16.msra.mxu0 %v973
    %983 = vmatprep.subr.bf16.mxu0 0
    %984 = vmatpush1.bf16.msra.mxu0 0
    %985 = vmatprep.subr.bf16.mxu0 0
    %986 = vmatpush1.bf16.msra.mxu0 0
    %987 = vmatprep.subr.bf16.mxu0 0
    %988 = vmatpush1.bf16.msra.mxu0 0
    %989 = vmatprep.subr.bf16.mxu0 0
    %990 = vmatpush1.bf16.msra.mxu0 0
    %991 = vmatprep.subr.bf16.mxu0 0
    %992 = vmatpush1.bf16.msra.mxu0 0
    %993 = vmatprep.subr.bf16.mxu0 0
    %994 = vmatpush1.bf16.msra.mxu0 0
    %995 = vmatprep.subr.bf16.mxu0 0
    %996 = vmatpush1.bf16.msra.mxu0 0
    %997 = vmatprep.subr.bf16.mxu0 0
    %998 = vmatpush1.bf16.msra.mxu0 0
    %999 = vmatprep.subr.bf16.mxu0 0
    %1000 = vmatpush1.bf16.msra.mxu0 0
    %1001 = vmatprep.subr.bf16.mxu0 0
    %1002 = vmatpush1.bf16.msra.mxu0 0
    %1003 = vmatprep.subr.bf16.mxu0 0
    %1004 = vmatpush1.bf16.msra.mxu0 0
    %1005 = vmatprep.subr.bf16.mxu0 0
    %1006 = vmatpush1.bf16.msra.mxu0 0
    %1007 = vmatprep.subr.bf16.mxu0 0
    %1008 = vmatpush1.bf16.msra.mxu0 0
    %1009 = vmatprep.subr.bf16.mxu0 0
    %1010 = vmatpush1.bf16.msra.mxu0 0
    %1011 = vmatprep.mubr.bf16.mxu0 0
    %1012 = vmatmul.mubr.bf16.gmra.mrb[0].mxu0 %v977
    %v1013 = vpop.f32.mrb[0].mxu0
    %v1014 = vadd.f32 %v261, %v1013
    %v1015 = vpop.f32.mrb[0].mxu0
    %v1016 = vpop.f32.mrb[0].mxu0
    %v1017 = vpop.f32.mrb[0].mxu0
    %1018 = vdwg.mxu0
    %s1019 = scalar_lea.vmem [#allocation3], 48
    %v1020 = vld [vmem:[%s1019] sm:$0xff]
    %v1021 = vadd.f32 %v1020, %v1014
    %v1022 = vxor.u32 %v1021, 2147483648
    %v1023 = vmul.f32 %v1022, 1.442695
    %v1024 = vpow.pop %v1023
    %v1025 = vadd.f32 %v1024, 1.0
    %v1026 = vrcp.pop %v1025
    %v1027 = vmul.f32 1.0, %v1026
    %1029 = vrot.lane.b32.xlu0 %v1014, 64
    %v1030 = vpop.permute.xlu0 %1029
    %v1032 = vmul.f32 %v1027, %v1030
    %1034 = vrot.lane.b32.xlu0 %v1032, 64
    %v1035 = vpop.permute.xlu0 %1034
    %v1037 = vadd.f32 %v1020, %v1035
    %v1038 = vtanh.pop %v1037
    %v1039 = vsub.f32 1.0, %v1027
    %1041 = vrot.lane.b32.xlu0 %v1038, 96
    %v1042 = vpop.permute.xlu0 %1041
    %v1044 = vmul.f32 %v1039, %v1042
    %1046 = vrot.lane.b32.xlu0 %v958, 32
    %v1047 = vpop.permute.xlu0 %1046
    %v1049 = vmul.f32 %v1027, %v1047
    %v1050 = vadd.f32 %v1044, %v1049
    %v1051 = vstv %s957
    %vm1052 = vcmp.gt.s32.totalorder %v248, %v1051
    %v1053 = vsel %vm1052, 1, 0
    %1054 = vset.pattern.permute.xlu0 0
    %1055 = vperm.xlu0 %1054, %v1053
    %v1056 = vpop.permute.xlu0 %1055
    %vm1057 = vcmp.eq.s32.totalorder %v1056, 1
    %v1058 = vsel %vm1057, %v1050, %v1047
    %1060 = vrot.lane.b32.xlu0 %v1058, 96
    %v1061 = vpop.permute.xlu0 %1060
    %1063 = vst.msk [vmem:[#allocation2] sm:$0xff] %vm161, %v1061
    %v1064 = vsel %vm1057, %v1050, 0.0
    %v1065 = vpack.c.bf16 %v1064, %v1064
    %v1067 = vunpack.c.l.b16 %v1065
    %v1068 = vpack.c.b16 %v1067, %v1067
    %1069 = vrot.lane.b32.xlu0 %v1068, 96
    %v1070 = vpop.permute.xlu0 %1069
    %s1072 = scalar_lea.vmem [#allocation15], 24
    %1073 = vst.msk [vmem:[%s1072] sm:$0xf] %vm370, %v1070
    %s1074 = sadd.s32 %s250, 7
    %v1075 = vld [vmem:[#allocation2] sm:$0xff]
    %v1076 = vpack.c.bf16 %v1075, %v1075
    %v1077 = vld [vmem:[#allocation10] sm:$0xf]
    %v1078 = vld [vmem:[#allocation10 + $0x4] sm:$0xf]
    %v1079 = vld [vmem:[#allocation10 + $0x8] sm:$0xf]
    %v1080 = vld [vmem:[#allocation10 + $0xc] sm:$0xf]
    %v1085 = vunpack.c.l.b16 %v1077
    %v1086 = vunpack.c.l.b16 %v1078
    %v1087 = vunpack.c.l.b16 %v1079
    %v1088 = vunpack.c.l.b16 %v1080
    %v1089 = vpack.c.b16 %v1086, %v1085
    %v1090 = vpack.c.b16 %v1088, %v1087
    %v1094 = vsel %vm161, %v1076, 0
    %1096 = vmatprep.subr.bf16.mxu0 0
    %1097 = vmatpush1.bf16.msra.mxu0 %v1089
    %1098 = vmatprep.subr.bf16.mxu0 0
    %1099 = vmatpush1.bf16.msra.mxu0 %v1090
    %1100 = vmatprep.subr.bf16.mxu0 0
    %1101 = vmatpush1.bf16.msra.mxu0 0
    %1102 = vmatprep.subr.bf16.mxu0 0
    %1103 = vmatpush1.bf16.msra.mxu0 0
    %1104 = vmatprep.subr.bf16.mxu0 0
    %1105 = vmatpush1.bf16.msra.mxu0 0
    %1106 = vmatprep.subr.bf16.mxu0 0
    %1107 = vmatpush1.bf16.msra.mxu0 0
    %1108 = vmatprep.subr.bf16.mxu0 0
    %1109 = vmatpush1.bf16.msra.mxu0 0
    %1110 = vmatprep.subr.bf16.mxu0 0
    %1111 = vmatpush1.bf16.msra.mxu0 0
    %1112 = vmatprep.subr.bf16.mxu0 0
    %1113 = vmatpush1.bf16.msra.mxu0 0
    %1114 = vmatprep.subr.bf16.mxu0 0
    %1115 = vmatpush1.bf16.msra.mxu0 0
    %1116 = vmatprep.subr.bf16.mxu0 0
    %1117 = vmatpush1.bf16.msra.mxu0 0
    %1118 = vmatprep.subr.bf16.mxu0 0
    %1119 = vmatpush1.bf16.msra.mxu0 0
    %1120 = vmatprep.subr.bf16.mxu0 0
    %1121 = vmatpush1.bf16.msra.mxu0 0
    %1122 = vmatprep.subr.bf16.mxu0 0
    %1123 = vmatpush1.bf16.msra.mxu0 0
    %1124 = vmatprep.subr.bf16.mxu0 0
    %1125 = vmatpush1.bf16.msra.mxu0 0
    %1126 = vmatprep.subr.bf16.mxu0 0
    %1127 = vmatpush1.bf16.msra.mxu0 0
    %1128 = vmatprep.mubr.bf16.mxu0 0
    %1129 = vmatmul.mubr.bf16.gmra.mrb[0].mxu0 %v1094
    %v1130 = vpop.f32.mrb[0].mxu0
    %v1131 = vadd.f32 %v261, %v1130
    %v1132 = vpop.f32.mrb[0].mxu0
    %v1133 = vpop.f32.mrb[0].mxu0
    %v1134 = vpop.f32.mrb[0].mxu0
    %1135 = vdwg.mxu0
    %s1136 = scalar_lea.vmem [#allocation3], 56
    %v1137 = vld [vmem:[%s1136] sm:$0xff]
    %v1138 = vadd.f32 %v1137, %v1131
    %v1139 = vxor.u32 %v1138, 2147483648
    %v1140 = vmul.f32 %v1139, 1.442695
    %v1141 = vpow.pop %v1140
    %v1142 = vadd.f32 %v1141, 1.0
    %v1143 = vrcp.pop %v1142
    %v1144 = vmul.f32 1.0, %v1143
    %1146 = vrot.lane.b32.xlu0 %v1131, 64
    %v1147 = vpop.permute.xlu0 %1146
    %v1149 = vmul.f32 %v1144, %v1147
    %1151 = vrot.lane.b32.xlu0 %v1149, 64
    %v1152 = vpop.permute.xlu0 %1151
    %v1154 = vadd.f32 %v1137, %v1152
    %v1155 = vtanh.pop %v1154
    %v1156 = vsub.f32 1.0, %v1144
    %1158 = vrot.lane.b32.xlu0 %v1155, 96
    %v1159 = vpop.permute.xlu0 %1158
    %v1161 = vmul.f32 %v1156, %v1159
    %1163 = vrot.lane.b32.xlu0 %v1075, 32
    %v1164 = vpop.permute.xlu0 %1163
    %v1166 = vmul.f32 %v1144, %v1164
    %v1167 = vadd.f32 %v1161, %v1166
    %v1168 = vstv %s1074
    %vm1169 = vcmp.gt.s32.totalorder %v248, %v1168
    %v1170 = vsel %vm1169, 1, 0
    %1171 = vset.pattern.permute.xlu0 0
    %1172 = vperm.xlu0 %1171, %v1170
    %v1173 = vpop.permute.xlu0 %1172
    %vm1174 = vcmp.eq.s32.totalorder %v1173, 1
    %v1175 = vsel %vm1174, %v1167, %v1164
    %1177 = vrot.lane.b32.xlu0 %v1175, 96
    %v1178 = vpop.permute.xlu0 %1177
    %1180 = vst.msk [vmem:[#allocation2] sm:$0xff] %vm161, %v1178
    %v1181 = vsel %vm1174, %v1167, 0.0
    %v1182 = vpack.c.bf16 %v1181, %v1181
    %v1184 = vunpack.c.l.b16 %v1182
    %v1185 = vpack.c.b16 %v1184, %v1184
    %1186 = vrot.lane.b32.xlu0 %v1185, 96
    %v1187 = vpop.permute.xlu0 %1186
    %s1189 = scalar_lea.vmem [#allocation15], 28
    %1190 = vst.msk [vmem:[%s1189] sm:$0xf] %vm370, %v1187
    %v1191 = vld [vmem:[#allocation2] sm:$0xff]
    %1192 = vst.msk [vmem:[#allocation16] sm:$0xff] %vm161, %v1191
    // Predicated region
    $region54: #{encoder_forward.2} parent=1 // pred_check
      _
    $region55: #{encoder_forward.2} parent=1 // pred_check_branch
      %1194 = sbr.rel (0) target = $region57
    $region56: #{encoder_forward.2} parent=1 // pred_region
      %s1196 = ssub.s32 512, 512
      %1197 = vsyncadd [#allocation6], %s1196
      %s1198 = sshll.u32 [#allocation15], 4
      %s1199 = int_to_ptr.vmem [resolvable:$true] %s1198
      %1204 = dma.vmem_to_hbm [thread:$0]  %s1199, 512, %s6, [#allocation6], 64, 64, 4
    $region57: #{encoder_forward.2} parent=1 // pred_fallthru
      _
    // Predicated region
    $region58: #{encoder_forward.2} parent=1 // pred_check
      _
    $region59: #{encoder_forward.2} parent=1 // pred_check_branch
      %1206 = sbr.rel (0) target = $region61
    $region60: #{encoder_forward.2} parent=1 // pred_region
      %s1208 = ssub.s32 128, 128
      %1209 = vsyncadd [#allocation17], %s1208
      %s1211 = sshll.u32 [#allocation16], 4
      %s1212 = int_to_ptr.vmem [resolvable:$true] %s1211
      %1214 = dma.vmem_to_hbm [thread:$0]  %s1212, 128, %s7, [#allocation17]
    $region61: #{encoder_forward.2} parent=1 // pred_fallthru
      _
    // Predicated region
    $region62: #{encoder_forward.2} parent=1 // pred_check
      _
    $region63: #{encoder_forward.2} parent=1 // pred_check_branch
      %1216 = sbr.rel (0) target = $region65
    $region64: #{encoder_forward.2} parent=1 // pred_region
      %1217 = dma.done [#allocation6], 512
    $region65: #{encoder_forward.2} parent=1 // pred_fallthru
      _
    // Predicated region
    $region66: #{encoder_forward.2} parent=1 // pred_check
      _
    $region67: #{encoder_forward.2} parent=1 // pred_check_branch
      %1219 = sbr.rel (0) target = $region69
    $region68: #{encoder_forward.2} parent=1 // pred_region
      %1220 = dma.done [#allocation17], 128
    $region69: #{encoder_forward.2} parent=1 // pred_fallthru
      _
    %1221 = vsyncpa [#allocation5], 1
    %1222 = vsyncpa [#allocation8], 1
    %1223 = vsyncpa [#allocation11], 1
    %1224 = vsyncpa [#allocation14], 1
    %1225 = vsyncpa [#allocation6], 1
    %1226 = vsyncpa [#allocation17], 1

</llo_original>
